<compile_context>
chip_gen: v7x
topology: tpu7x:2x2x1
jax: 0.10.0
libtpu: 0.0.40
codegen_flags: <defaults>
</compile_context>

<pallas_src>
import jax
import jax.numpy as jnp
from jax.experimental import pallas as pl
from jax.experimental.pallas import tpu as pltpu


# ------------------------------- helpers -----------------------------------

def _cdiv(a, b):
    return (a + b - 1) // b


def _round_up(a, b):
    return _cdiv(a, b) * b


def _pick_co_tile(cout):
    """Cout tile: full if small, else largest nice divisor (<=128; bump to 256
    on v6e/v7x at full scale)."""
    if cout <= 128:
        return cout
    for t in (128, 64, 32, 16, 8):
        if cout % t == 0:
            return t
    return cout


# ------------------------ Conv3d + BN + ReLU kernel -------------------------

def conv3d_bn_relu(x, w, b, gamma, beta, mean, var, *, eps=1e-5,
                   p_tile_target=4096):
    """Conv3d (stride 1, valid) + BatchNorm3d (eval) + ReLU as one Pallas GEMM.

    x: (B, Cin, D, H, W); w: (Cout, Cin, k, k, k); BN params are per-Cout.
    Returns (B, Cout, Do, Ho, Wo) bfloat16.
    """
    B, Cin, D, H, W = x.shape
    Cout, _, k, _, _ = w.shape
    Do, Ho, Wo = D - k + 1, H - k + 1, W - k + 1
    P = D * H * W
    k2 = k * k

    co_tile = _pick_co_tile(Cout)
    n_co = Cout // co_tile

    # Lane tile over flattened output positions.  Multiple of 128; if the grid
    # would otherwise have a single tile (B*n_co == 1), cap p_tile so n_p >= 2
    # and both v7x TensorCores get work.
    p_tile = min(p_tile_target, _round_up(P, 128))
    if B * n_co == 1:
        p_tile = min(p_tile, max(128, _round_up(_cdiv(P, 2), 128)))
    n_p = _cdiv(P, p_tile)
    blocks_per_tile = p_tile // 128

    # Per-(kd, kh) shifts; kw (0..k-1) is handled in-kernel with tiny slices.
    shifts = [kd * H * W + kh * W for kd in range(k) for kh in range(k)]
    max_shift = shifts[-1]

    # Each pre-shifted view row must cover all P tiles plus the 128-lane
    # kw-overlap block.
    Lwin = n_p * p_tile + 128

    # Pad per-(kd,kh) slab rows to a sublane multiple of 8 so the in-kernel
    # K-concat is alignment-free; weight columns are padded identically.
    Kp = _round_up(k2 * Cin, 8)
    K_total = k * Kp

    # --- build the k^2 pre-shifted, flattened, lane-padded bf16 views -------
    x_flat = x.reshape(B, Cin, P).astype(jnp.bfloat16)
    x_pad = jnp.pad(x_flat, ((0, 0), (0, 0), (0, max_shift + Lwin - P)))
    views = [x_pad[:, :, s:s + Lwin] for s in shifts]            # k^2 static slices
    xs = jnp.stack(views, axis=1).reshape(B, k2 * Cin, Lwin)      # rows: (kd,kh,cin)
    xs = jnp.pad(xs, ((0, 0), (0, Kp - k2 * Cin), (0, 0)))        # (B, Kp, Lwin)

    # --- fold BN (eval mode) into weight / bias ------------------------------
    # Weight columns ordered (kw, kd, kh, cin) with per-kw zero-padded slabs,
    # matching the in-kernel patch-row order.
    scale = gamma / jnp.sqrt(var + eps)                                   # (Cout,)
    w_r = jnp.transpose(w, (0, 4, 2, 3, 1)).reshape(Cout, k, k2 * Cin)
    w_r = jnp.pad(w_r, ((0, 0), (0, 0), (0, Kp - k2 * Cin)))
    wf = (w_r.reshape(Cout, K_total) * scale[:, None]).astype(jnp.bfloat16)
    bias = (scale * (b - mean) + beta)[:, None].astype(jnp.float32)       # (Cout, 1)

    # ------------------------------- kernel ----------------------------------
    def kernel(w_ref, b_ref, x0_ref, x1_ref, o_ref):
        # Current p_tile block plus a 128-lane overlap block (for kw shifts).
        xc = jnp.concatenate([x0_ref[...], x1_ref[...]], axis=-1)    # (Kp, p_tile+128)
        # Patch matrix built in VMEM only: k small lane shifts, no k^3 shuffle.
        patches = jnp.concatenate(
            [xc[:, kw:kw + p_tile] for kw in range(k)], axis=0)      # (K_total, p_tile)
        acc = jnp.dot(w_ref[...], patches,
                      preferred_element_type=jnp.float32)            # (co_tile, p_tile) f32
        o_ref[...] = jnp.maximum(acc + b_ref[...], 0.0).astype(o_ref.dtype)

    out = pl.pallas_call(
        kernel,
        out_shape=jax.ShapeDtypeStruct((B, Cout, n_p * p_tile), jnp.bfloat16),
        grid=(B, n_co, n_p),
        in_specs=[
            # Weight / bias depend only on the Cout tile -> VMEM-resident
            # across the innermost P-tile axis (no per-P re-DMA).
            pl.BlockSpec((co_tile, K_total), lambda bb, cc, pp: (cc, 0)),
            pl.BlockSpec((co_tile, 1), lambda bb, cc, pp: (cc, 0)),
            # Main block of the pre-shifted views + 128-lane overlap block.
            pl.BlockSpec((None, Kp, p_tile), lambda bb, cc, pp: (bb, 0, pp)),
            pl.BlockSpec((None, Kp, 128),
                         lambda bb, cc, pp: (bb, 0, (pp + 1) * blocks_per_tile)),
        ],
        out_specs=pl.BlockSpec((None, co_tile, p_tile),
                               lambda bb, cc, pp: (bb, cc, pp)),
        compiler_params=pltpu.CompilerParams(
            dimension_semantics=("parallel", "parallel", "parallel"),
            vmem_limit_bytes=64 * 1024 * 1024),
    )(wf, bias, xs, xs)

    # Keep only valid conv positions (d < Do, h < Ho, w < Wo).  Garbage columns
    # (finite: zero-padded tails through bias+ReLU) are sliced away here.
    out = out[:, :, :P].reshape(B, Cout, D, H, W)
    return out[:, :, :Do, :Ho, :Wo]


# ------------------------------- JAX glue -----------------------------------

def avg_pool3d(x, k=3):
    """AvgPool3d(kernel=k, stride=k, no pad): block mean, f32 accumulate."""
    B, C, D, H, W = x.shape
    Do, Ho, Wo = D // k, H // k, W // k
    x = x[:, :, :Do * k, :Ho * k, :Wo * k].astype(jnp.float32)
    x = x.reshape(B, C, Do, k, Ho, k, Wo, k)
    return x.mean(axis=(3, 5, 7)).astype(jnp.bfloat16)


def linear_head(x, w, b):
    # Tiny (num_classes=2) matmul: left to XLA per the perf review.
    return x.astype(jnp.float32) @ w.astype(jnp.float32) + b.astype(jnp.float32)


# ------------------------------ model setup ---------------------------------

def _proj_out_features(spatial, embed_dim, k):
    s = spatial
    s = s - k + 1          # conv1
    s = s // 3             # avgpool 3
    s = s - k + 1          # conv2
    s = s // 3             # avgpool 3
    s = s - k + 1          # conv3
    assert s >= 1, "input spatial size too small for this config"
    return embed_dim * s ** 3


def init_params(key, *, embed_dim=32, num_classes=2, kernel_size=3, spatial=35):
    c1, c2, c3 = embed_dim // 4, embed_dim // 2, embed_dim
    keys = jax.random.split(key, 20)
    ki = iter(range(20))

    def conv_p(cout, cin, ks):
        fan_in = cin * ks ** 3
        w = jax.random.normal(keys[next(ki)], (cout, cin, ks, ks, ks),
                              jnp.float32) / jnp.sqrt(float(fan_in))
        b = 0.1 * jax.random.normal(keys[next(ki)], (cout,), jnp.float32)
        return w, b

    def bn_p(c):
        gamma = 1.0 + 0.1 * jax.random.normal(keys[next(ki)], (c,), jnp.float32)
        beta = 0.1 * jax.random.normal(keys[next(ki)], (c,), jnp.float32)
        mean = 0.1 * jax.random.normal(keys[next(ki)], (c,), jnp.float32)
        var = 0.5 + jax.random.uniform(keys[next(ki)], (c,), jnp.float32)
        return gamma, beta, mean, var

    params = {
        "conv1": conv_p(c1, 1, kernel_size), "bn1": bn_p(c1),
        "conv2": conv_p(c2, c1, kernel_size), "bn2": bn_p(c2),
        "conv3": conv_p(c3, c2, kernel_size), "bn3": bn_p(c3),
    }
    feat = _proj_out_features(spatial, embed_dim, kernel_size)
    wh = jax.random.normal(keys[next(ki)], (feat, num_classes),
                           jnp.float32) / jnp.sqrt(float(feat))
    bh = 0.1 * jax.random.normal(keys[next(ki)], (num_classes,), jnp.float32)
    params["head"] = (wh, bh)
    return params


def forward(params, x):
    w, b = params["conv1"]; g, bt, m, v = params["bn1"]
    x = conv3d_bn_relu(x, w, b, g, bt, m, v)
    x = avg_pool3d(x, 3)
    w, b = params["conv2"]; g, bt, m, v = params["bn2"]
    x = conv3d_bn_relu(x, w, b, g, bt, m, v)
    x = avg_pool3d(x, 3)
    w, b = params["conv3"]; g, bt, m, v = params["bn3"]
    x = conv3d_bn_relu(x, w, b, g, bt, m, v)
    B = x.shape[0]
    x = x.reshape(B, -1)                 # same C-major flatten as torch .view(B, -1)
    wh, bh = params["head"]
    return linear_head(x, wh, bh)


if __name__ == "__main__":
    EMBED_DIM = 32      # scaled-down from 768 for a small runnable example
    NUM_CLASSES = 2
    KERNEL_SIZE = 3     # scaled-down from 5
    SPATIAL = 35        # 35 -> conv 33 -> pool 11 -> conv 9 -> pool 3 -> conv 1
    BATCH = 2

    key = jax.random.PRNGKey(0)
    pkey, xkey = jax.random.split(key)
    params = init_params(pkey, embed_dim=EMBED_DIM, num_classes=NUM_CLASSES,
                         kernel_size=KERNEL_SIZE, spatial=SPATIAL)
    x = jax.random.normal(xkey, (BATCH, 1, SPATIAL, SPATIAL, SPATIAL), jnp.float32)

    fwd = jax.jit(forward)
    y = fwd(params, x)
    y = jax.block_until_ready(y)
    assert y.shape == (BATCH, NUM_CLASSES) and y.dtype == jnp.float32
    print("KERNEL_OK")
</pallas_src>

<mosaic_0001>
module attributes {stable_mosaic.version = 11 : i64} {
  func.func @kernel(%arg0: i32, %arg1: i32, %arg2: i32, %arg3: memref<8x48xbf16, #tpu.memory_space<vmem>>, %arg4: memref<8x1xf32, #tpu.memory_space<vmem>>, %arg5: memref<1x16x4096xbf16, #tpu.memory_space<vmem>>, %arg6: memref<1x16x128xbf16, #tpu.memory_space<vmem>>, %arg7: memref<1x8x4096xbf16, #tpu.memory_space<vmem>>) attributes {dimension_semantics = [#tpu.dimension_semantics<parallel>, #tpu.dimension_semantics<parallel>, #tpu.dimension_semantics<parallel>], iteration_bounds = array<i64: 2, 1, 11>, scalar_prefetch = 0 : i64, scratch_operands = 0 : i64, tpu.core_type = #tpu.core_type<tc>, window_params = [{transform_indices = @transform_0, window_bounds = array<i64: 8, 48>}, {transform_indices = @transform_1, window_bounds = array<i64: 8, 1>}, {transform_indices = @transform_2, window_bounds = array<i64: 1, 16, 4096>}, {transform_indices = @transform_3, window_bounds = array<i64: 1, 16, 128>}, {transform_indices = @transform_4, window_bounds = array<i64: 1, 8, 4096>}]} {
    %c0 = arith.constant 0 : index
    %c0_0 = arith.constant 0 : index
    %c0_1 = arith.constant 0 : index
    %0 = vector.load %arg5[%c0, %c0_0, %c0_1] : memref<1x16x4096xbf16, #tpu.memory_space<vmem>>, vector<1x16x4096xbf16>
    %1 = vector.shape_cast %0 : vector<1x16x4096xbf16> to vector<16x4096xbf16>
    %c0_2 = arith.constant 0 : index
    %c0_3 = arith.constant 0 : index
    %c0_4 = arith.constant 0 : index
    %2 = vector.load %arg6[%c0_2, %c0_3, %c0_4] : memref<1x16x128xbf16, #tpu.memory_space<vmem>>, vector<1x16x128xbf16>
    %3 = vector.shape_cast %2 : vector<1x16x128xbf16> to vector<16x128xbf16>
    %4 = tpu.concatenate %1, %3 in 1 : vector<16x4096xbf16>, vector<16x128xbf16> -> vector<16x4224xbf16>
    %5 = vector.extract_strided_slice %4 {offsets = [0, 0], sizes = [16, 4096], strides = [1, 1]} : vector<16x4224xbf16> to vector<16x4096xbf16>
    %6 = vector.extract_strided_slice %4 {offsets = [0, 1], sizes = [16, 4096], strides = [1, 1]} : vector<16x4224xbf16> to vector<16x4096xbf16>
    %7 = vector.extract_strided_slice %4 {offsets = [0, 2], sizes = [16, 4096], strides = [1, 1]} : vector<16x4224xbf16> to vector<16x4096xbf16>
    %8 = tpu.concatenate %5, %6, %7 in 0 : vector<16x4096xbf16>, vector<16x4096xbf16>, vector<16x4096xbf16> -> vector<48x4096xbf16>
    %c0_5 = arith.constant 0 : index
    %c0_6 = arith.constant 0 : index
    %9 = vector.load %arg3[%c0_5, %c0_6] : memref<8x48xbf16, #tpu.memory_space<vmem>>, vector<8x48xbf16>
    %cst = arith.constant dense<0.000000e+00> : vector<8x4096xf32>
    %10 = tpu.matmul %9, %8, %cst {dimension_numbers = #tpu.dot_dimension_numbers<[1], [0], [0], [1], [0, 0, 1, 1], [], []>} : vector<8x48xbf16>, vector<48x4096xbf16>, vector<8x4096xf32> -> vector<8x4096xf32>
    %c0_7 = arith.constant 0 : index
    %c0_8 = arith.constant 0 : index
    %11 = vector.load %arg4[%c0_7, %c0_8] : memref<8x1xf32, #tpu.memory_space<vmem>>, vector<8x1xf32>
    %12 = vector.broadcast %11 : vector<8x1xf32> to vector<8x4096xf32>
    %13 = arith.addf %10, %12 : vector<8x4096xf32>
    %cst_9 = arith.constant 0.000000e+00 : f32
    %14 = vector.broadcast %cst_9 : f32 to vector<8x4096xf32>
    %15 = arith.maximumf %13, %14 : vector<8x4096xf32>
    %16 = arith.truncf %15 : vector<8x4096xf32> to vector<8x4096xbf16>
    %c0_10 = arith.constant 0 : index
    %c0_11 = arith.constant 0 : index
    %c0_12 = arith.constant 0 : index
    %17 = vector.load %arg7[%c0_10, %c0_11, %c0_12] : memref<1x8x4096xbf16, #tpu.memory_space<vmem>>, vector<1x8x4096xbf16>
    %18 = vector.shape_cast %17 : vector<1x8x4096xbf16> to vector<8x4096xbf16>
    %19 = vector.shape_cast %16 : vector<8x4096xbf16> to vector<1x8x4096xbf16>
    tpu.vector_store %arg7[%c0_10, %c0_11, %c0_12], %19 {strides = array<i32>} : memref<1x8x4096xbf16, #tpu.memory_space<vmem>>, vector<1x8x4096xbf16>,
    return
  }
  func.func @transform_0(%arg0: i32, %arg1: i32, %arg2: i32) -> (i32, i32) {
    %c0_i32 = arith.constant 0 : i32
    %c0_i32_0 = arith.constant 0 : i32
    return %arg1, %c0_i32 : i32, i32
  }
  func.func @transform_1(%arg0: i32, %arg1: i32, %arg2: i32) -> (i32, i32) {
    %c0_i32 = arith.constant 0 : i32
    %c0_i32_0 = arith.constant 0 : i32
    return %arg1, %c0_i32 : i32, i32
  }
  func.func @transform_2(%arg0: i32, %arg1: i32, %arg2: i32) -> (i32, i32, i32) {
    %c0_i32 = arith.constant 0 : i32
    %c0_i32_0 = arith.constant 0 : i32
    return %arg0, %c0_i32, %arg2 : i32, i32, i32
  }
  func.func @transform_3(%arg0: i32, %arg1: i32, %arg2: i32) -> (i32, i32, i32) {
    %c1_i32 = arith.constant 1 : i32
    %0 = arith.addi %arg2, %c1_i32 : i32
    %c32_i32 = arith.constant 32 : i32
    %1 = arith.muli %0, %c32_i32 : i32
    %c0_i32 = arith.constant 0 : i32
    %c0_i32_0 = arith.constant 0 : i32
    return %arg0, %c0_i32, %1 : i32, i32, i32
  }
  func.func @transform_4(%arg0: i32, %arg1: i32, %arg2: i32) -> (i32, i32, i32) {
    %c0_i32 = arith.constant 0 : i32
    return %arg0, %arg1, %arg2 : i32, i32, i32
  }
}

module attributes {stable_mosaic.version = 11 : i64} {
  func.func @kernel(%arg0: i32, %arg1: i32, %arg2: i32, %arg3: memref<16x216xbf16, #tpu.memory_space<vmem>>, %arg4: memref<16x1xf32, #tpu.memory_space<vmem>>, %arg5: memref<1x72x1408xbf16, #tpu.memory_space<vmem>>, %arg6: memref<1x72x128xbf16, #tpu.memory_space<vmem>>, %arg7: memref<1x16x1408xbf16, #tpu.memory_space<vmem>>) attributes {dimension_semantics = [#tpu.dimension_semantics<parallel>, #tpu.dimension_semantics<parallel>, #tpu.dimension_semantics<parallel>], iteration_bounds = array<i64: 2, 1, 1>, scalar_prefetch = 0 : i64, scratch_operands = 0 : i64, tpu.core_type = #tpu.core_type<tc>, window_params = [{transform_indices = @transform_0, window_bounds = array<i64: 16, 216>}, {transform_indices = @transform_1, window_bounds = array<i64: 16, 1>}, {transform_indices = @transform_2, window_bounds = array<i64: 1, 72, 1408>}, {transform_indices = @transform_3, window_bounds = array<i64: 1, 72, 128>}, {transform_indices = @transform_4, window_bounds = array<i64: 1, 16, 1408>}]} {
    %c0 = arith.constant 0 : index
    %c0_0 = arith.constant 0 : index
    %c0_1 = arith.constant 0 : index
    %0 = vector.load %arg5[%c0, %c0_0, %c0_1] : memref<1x72x1408xbf16, #tpu.memory_space<vmem>>, vector<1x72x1408xbf16>
    %1 = vector.shape_cast %0 : vector<1x72x1408xbf16> to vector<72x1408xbf16>
    %c0_2 = arith.constant 0 : index
    %c0_3 = arith.constant 0 : index
    %c0_4 = arith.constant 0 : index
    %2 = vector.load %arg6[%c0_2, %c0_3, %c0_4] : memref<1x72x128xbf16, #tpu.memory_space<vmem>>, vector<1x72x128xbf16>
    %3 = vector.shape_cast %2 : vector<1x72x128xbf16> to vector<72x128xbf16>
    %4 = tpu.concatenate %1, %3 in 1 : vector<72x1408xbf16>, vector<72x128xbf16> -> vector<72x1536xbf16>
    %5 = vector.extract_strided_slice %4 {offsets = [0, 0], sizes = [72, 1408], strides = [1, 1]} : vector<72x1536xbf16> to vector<72x1408xbf16>
    %6 = vector.extract_strided_slice %4 {offsets = [0, 1], sizes = [72, 1408], strides = [1, 1]} : vector<72x1536xbf16> to vector<72x1408xbf16>
    %7 = vector.extract_strided_slice %4 {offsets = [0, 2], sizes = [72, 1408], strides = [1, 1]} : vector<72x1536xbf16> to vector<72x1408xbf16>
    %8 = tpu.concatenate %5, %6, %7 in 0 : vector<72x1408xbf16>, vector<72x1408xbf16>, vector<72x1408xbf16> -> vector<216x1408xbf16>
    %c0_5 = arith.constant 0 : index
    %c0_6 = arith.constant 0 : index
    %9 = vector.load %arg3[%c0_5, %c0_6] : memref<16x216xbf16, #tpu.memory_space<vmem>>, vector<16x216xbf16>
    %cst = arith.constant dense<0.000000e+00> : vector<16x1408xf32>
    %10 = tpu.matmul %9, %8, %cst {dimension_numbers = #tpu.dot_dimension_numbers<[1], [0], [0], [1], [0, 0, 1, 1], [], []>} : vector<16x216xbf16>, vector<216x1408xbf16>, vector<16x1408xf32> -> vector<16x1408xf32>
    %c0_7 = arith.constant 0 : index
    %c0_8 = arith.constant 0 : index
    %11 = vector.load %arg4[%c0_7, %c0_8] : memref<16x1xf32, #tpu.memory_space<vmem>>, vector<16x1xf32>
    %12 = vector.broadcast %11 : vector<16x1xf32> to vector<16x1408xf32>
    %13 = arith.addf %10, %12 : vector<16x1408xf32>
    %cst_9 = arith.constant 0.000000e+00 : f32
    %14 = vector.broadcast %cst_9 : f32 to vector<16x1408xf32>
    %15 = arith.maximumf %13, %14 : vector<16x1408xf32>
    %16 = arith.truncf %15 : vector<16x1408xf32> to vector<16x1408xbf16>
    %c0_10 = arith.constant 0 : index
    %c0_11 = arith.constant 0 : index
    %c0_12 = arith.constant 0 : index
    %17 = vector.load %arg7[%c0_10, %c0_11, %c0_12] : memref<1x16x1408xbf16, #tpu.memory_space<vmem>>, vector<1x16x1408xbf16>
    %18 = vector.shape_cast %17 : vector<1x16x1408xbf16> to vector<16x1408xbf16>
    %19 = vector.shape_cast %16 : vector<16x1408xbf16> to vector<1x16x1408xbf16>
    tpu.vector_store %arg7[%c0_10, %c0_11, %c0_12], %19 {strides = array<i32>} : memref<1x16x1408xbf16, #tpu.memory_space<vmem>>, vector<1x16x1408xbf16>,
    return
  }
  func.func @transform_0(%arg0: i32, %arg1: i32, %arg2: i32) -> (i32, i32) {
    %c0_i32 = arith.constant 0 : i32
    %c0_i32_0 = arith.constant 0 : i32
    return %arg1, %c0_i32 : i32, i32
  }
  func.func @transform_1(%arg0: i32, %arg1: i32, %arg2: i32) -> (i32, i32) {
    %c0_i32 = arith.constant 0 : i32
    %c0_i32_0 = arith.constant 0 : i32
    return %arg1, %c0_i32 : i32, i32
  }
  func.func @transform_2(%arg0: i32, %arg1: i32, %arg2: i32) -> (i32, i32, i32) {
    %c0_i32 = arith.constant 0 : i32
    %c0_i32_0 = arith.constant 0 : i32
    return %arg0, %c0_i32, %arg2 : i32, i32, i32
  }
  func.func @transform_3(%arg0: i32, %arg1: i32, %arg2: i32) -> (i32, i32, i32) {
    %c1_i32 = arith.constant 1 : i32
    %0 = arith.addi %arg2, %c1_i32 : i32
    %c11_i32 = arith.constant 11 : i32
    %1 = arith.muli %0, %c11_i32 : i32
    %c0_i32 = arith.constant 0 : i32
    %c0_i32_0 = arith.constant 0 : i32
    return %arg0, %c0_i32, %1 : i32, i32, i32
  }
  func.func @transform_4(%arg0: i32, %arg1: i32, %arg2: i32) -> (i32, i32, i32) {
    %c0_i32 = arith.constant 0 : i32
    return %arg0, %arg1, %arg2 : i32, i32, i32
  }
}

module attributes {stable_mosaic.version = 11 : i64} {
  func.func @kernel(%arg0: i32, %arg1: i32, %arg2: i32, %arg3: memref<32x432xbf16, #tpu.memory_space<vmem>>, %arg4: memref<32x1xf32, #tpu.memory_space<vmem>>, %arg5: memref<1x144x128xbf16, #tpu.memory_space<vmem>>, %arg6: memref<1x144x128xbf16, #tpu.memory_space<vmem>>, %arg7: memref<1x32x128xbf16, #tpu.memory_space<vmem>>) attributes {dimension_semantics = [#tpu.dimension_semantics<parallel>, #tpu.dimension_semantics<parallel>, #tpu.dimension_semantics<parallel>], iteration_bounds = array<i64: 2, 1, 1>, scalar_prefetch = 0 : i64, scratch_operands = 0 : i64, tpu.core_type = #tpu.core_type<tc>, window_params = [{transform_indices = @transform_0, window_bounds = array<i64: 32, 432>}, {transform_indices = @transform_1, window_bounds = array<i64: 32, 1>}, {transform_indices = @transform_2, window_bounds = array<i64: 1, 144, 128>}, {transform_indices = @transform_3, window_bounds = array<i64: 1, 144, 128>}, {transform_indices = @transform_4, window_bounds = array<i64: 1, 32, 128>}]} {
    %c0 = arith.constant 0 : index
    %c0_0 = arith.constant 0 : index
    %c0_1 = arith.constant 0 : index
    %0 = vector.load %arg5[%c0, %c0_0, %c0_1] : memref<1x144x128xbf16, #tpu.memory_space<vmem>>, vector<1x144x128xbf16>
    %1 = vector.shape_cast %0 : vector<1x144x128xbf16> to vector<144x128xbf16>
    %c0_2 = arith.constant 0 : index
    %c0_3 = arith.constant 0 : index
    %c0_4 = arith.constant 0 : index
    %2 = vector.load %arg6[%c0_2, %c0_3, %c0_4] : memref<1x144x128xbf16, #tpu.memory_space<vmem>>, vector<1x144x128xbf16>
    %3 = vector.shape_cast %2 : vector<1x144x128xbf16> to vector<144x128xbf16>
    %4 = tpu.concatenate %1, %3 in 1 : vector<144x128xbf16>, vector<144x128xbf16> -> vector<144x256xbf16>
    %5 = vector.extract_strided_slice %4 {offsets = [0, 0], sizes = [144, 128], strides = [1, 1]} : vector<144x256xbf16> to vector<144x128xbf16>
    %6 = vector.extract_strided_slice %4 {offsets = [0, 1], sizes = [144, 128], strides = [1, 1]} : vector<144x256xbf16> to vector<144x128xbf16>
    %7 = vector.extract_strided_slice %4 {offsets = [0, 2], sizes = [144, 128], strides = [1, 1]} : vector<144x256xbf16> to vector<144x128xbf16>
    %8 = tpu.concatenate %5, %6, %7 in 0 : vector<144x128xbf16>, vector<144x128xbf16>, vector<144x128xbf16> -> vector<432x128xbf16>
    %c0_5 = arith.constant 0 : index
    %c0_6 = arith.constant 0 : index
    %9 = vector.load %arg3[%c0_5, %c0_6] : memref<32x432xbf16, #tpu.memory_space<vmem>>, vector<32x432xbf16>
    %cst = arith.constant dense<0.000000e+00> : vector<32x128xf32>
    %10 = tpu.matmul %9, %8, %cst {dimension_numbers = #tpu.dot_dimension_numbers<[1], [0], [0], [1], [0, 0, 1, 1], [], []>} : vector<32x432xbf16>, vector<432x128xbf16>, vector<32x128xf32> -> vector<32x128xf32>
    %c0_7 = arith.constant 0 : index
    %c0_8 = arith.constant 0 : index
    %11 = vector.load %arg4[%c0_7, %c0_8] : memref<32x1xf32, #tpu.memory_space<vmem>>, vector<32x1xf32>
    %12 = vector.broadcast %11 : vector<32x1xf32> to vector<32x128xf32>
    %13 = arith.addf %10, %12 : vector<32x128xf32>
    %cst_9 = arith.constant 0.000000e+00 : f32
    %14 = vector.broadcast %cst_9 : f32 to vector<32x128xf32>
    %15 = arith.maximumf %13, %14 : vector<32x128xf32>
    %16 = arith.truncf %15 : vector<32x128xf32> to vector<32x128xbf16>
    %c0_10 = arith.constant 0 : index
    %c0_11 = arith.constant 0 : index
    %c0_12 = arith.constant 0 : index
    %17 = vector.load %arg7[%c0_10, %c0_11, %c0_12] : memref<1x32x128xbf16, #tpu.memory_space<vmem>>, vector<1x32x128xbf16>
    %18 = vector.shape_cast %17 : vector<1x32x128xbf16> to vector<32x128xbf16>
    %19 = vector.shape_cast %16 : vector<32x128xbf16> to vector<1x32x128xbf16>
    tpu.vector_store %arg7[%c0_10, %c0_11, %c0_12], %19 {strides = array<i32>} : memref<1x32x128xbf16, #tpu.memory_space<vmem>>, vector<1x32x128xbf16>,
    return
  }
  func.func @transform_0(%arg0: i32, %arg1: i32, %arg2: i32) -> (i32, i32) {
    %c0_i32 = arith.constant 0 : i32
    %c0_i32_0 = arith.constant 0 : i32
    return %arg1, %c0_i32 : i32, i32
  }
  func.func @transform_1(%arg0: i32, %arg1: i32, %arg2: i32) -> (i32, i32) {
    %c0_i32 = arith.constant 0 : i32
    %c0_i32_0 = arith.constant 0 : i32
    return %arg1, %c0_i32 : i32, i32
  }
  func.func @transform_2(%arg0: i32, %arg1: i32, %arg2: i32) -> (i32, i32, i32) {
    %c0_i32 = arith.constant 0 : i32
    %c0_i32_0 = arith.constant 0 : i32
    return %arg0, %c0_i32, %arg2 : i32, i32, i32
  }
  func.func @transform_3(%arg0: i32, %arg1: i32, %arg2: i32) -> (i32, i32, i32) {
    %c1_i32 = arith.constant 1 : i32
    %0 = arith.addi %arg2, %c1_i32 : i32
    %c1_i32_0 = arith.constant 1 : i32
    %1 = arith.muli %0, %c1_i32_0 : i32
    %c0_i32 = arith.constant 0 : i32
    %c0_i32_1 = arith.constant 0 : i32
    return %arg0, %c0_i32, %1 : i32, i32, i32
  }
  func.func @transform_4(%arg0: i32, %arg1: i32, %arg2: i32) -> (i32, i32, i32) {
    %c0_i32 = arith.constant 0 : i32
    return %arg0, %arg1, %arg2 : i32, i32, i32
  }
}

</mosaic_0001>

<llo_original>
// kernel: forward.3
$region0: #{forward.3}
  #allocation0 [shape = 'u32[]', space=smem, size = 0x4, offset = 0x4, fixed_abs, tag = 'smem constant byte address 0x4 - core index']
  #allocation1 [shape = 'u32[144,128]{1,0:T(1,128)}', space=vmem, size = 0x12000, scoped, tag = 'internal scratch']
  %s0 = inlined_call_operand.hbm [shape: bf16[8,48], index: 0, kind: input, shape index: {}]
  %s1 = inlined_call_operand.hbm [shape: f32[8,1], index: 1, kind: input, shape index: {}]
  %s2 = inlined_call_operand.hbm [shape: bf16[2,16,45184], index: 2, kind: input, shape index: {}, may-alias: {2,3}]
  %s3 = inlined_call_operand.hbm [shape: bf16[2,16,45184], index: 3, kind: input, shape index: {}, may-alias: {2,3}]
  %s4 = inlined_call_operand.hbm [shape: bf16[2,8,45056], index: 4, kind: output, shape index: {}]
  %s5 = sld [smem:[#allocation0]]
  $region65: #{forward.3} parent=0
    _
  %s7 = ssub.s32 1, %s5
  %s8 = scalar_select 0, %s7, %s5
  $region1: #{forward.3} parent=0
    #allocation2 [shape = 'u8[2048]{0}', space=vmem, size = 0x800, scoped, tag = 'input window, operand 0, single buffered']
    #allocation3 [shape = 's32[2]{0}', space=sflag, size = 0x8, scoped, tag = 'scoped memory for forward.3']
    #allocation4 [shape = 's32[2]{0}', space=sflag, size = 0x8, scoped, tag = 'scoped memory for forward.3']
    #allocation5 [shape = 'u8[4096]{0}', space=vmem, size = 0x1000, scoped, tag = 'input window, operand 1, single buffered']
    #allocation6 [shape = 's32[1]{0}', space=sflag, size = 0x4, scoped, tag = 'scoped memory for forward.3']
    #allocation7 [shape = 'u8[262144]{0}', space=vmem, size = 0x40000, scoped, tag = 'input window, operand 2']
    #allocation8 [shape = 'u8[8192]{0}', space=vmem, size = 0x2000, scoped, tag = 'input window, operand 3']
    #allocation9 [shape = 'u8[131072]{0}', space=vmem, size = 0x20000, scoped, tag = 'output window, operand 0']
    %9 = vsyncpa [#allocation3], 0
    %10 = vsyncpa [#allocation6], 0
    %11 = vsyncpa [#allocation4], 0
    %s12 = scalar_lea.sflag [#allocation4], 1
    %13 = vsyncpa %s12, 0
    loop: start=0, step=1, limit=24
    $region2: #{forward.3} parent=1 // loop_pre_header
      _
    $region3: #{forward.3} parent=1 // loop_header
      %s15 = sphi 0, %s19
      %p16 = scmp.ge.s32.totalorder %s15, 24
      %s22 = sphi 0, %s41
      %s23 = sphi 0, %s37
      %s24 = sphi 0, %s33
      %s25 = sphi 0, %s22
      %s26 = sphi 0, %s23
      %s27 = sphi 0, %s24
      %s28 = sphi 0, %s25
      %s29 = sphi 0, %s26
      %s30 = sphi 0, %s27
      %s44 = sphi 0, %s46
      %s47 = sphi 0, %s44
      %s48 = sphi 0, %s47
      %s64 = sphi 0, %s48
      %s70 = sphi 0, %s72
      %s73 = sphi 0, %s70
      %s74 = sphi 0, %s73
      %s90 = sphi 0, %s74
      %s98 = sphi 0, %s100
      %s101 = sphi 0, %s98
      %s102 = sphi 0, %s101
      %s118 = sphi 0, %s102
      %s130 = sphi 0, %s132
      %s133 = sphi 0, %s130
      %s134 = sphi 0, %s133
      %s150 = sphi 0, %s134
      %s160 = sphi 0, %s162
      %s163 = sphi 0, %s160
      %s164 = sphi 0, %s163
      %s180 = sphi 0, %s164
    $region4: #{forward.3} parent=1 // loop_header_branch
      %18 = sbr.rel (%p16) target = $region8
    $region5: #{forward.3} parent=1 // loop_body
      %s20 = ssub.s32 %s15, 1
      %s21 = ssub.s32 %s15, 2
      %s31 = sadd.s32 1, %s24
      %p32 = scmp.ge.s32.totalorder %s31, 11
      %s33 = scalar_select %p32, 0, %s31
      %s34 = sadd.s32 1, %s23
      %s35 = scalar_select %p32, %s34, %s23
      %p36 = scmp.ge.s32.totalorder %s35, 1
      %s37 = scalar_select %p36, 0, %s35
      %s38 = sadd.s32 1, %s22
      %s39 = scalar_select %p36, %s38, %s22
      %p40 = scmp.ge.s32.totalorder %s39, 2
      %s41 = scalar_select %p40, 0, %s39
      %s42 = ssub.s32 %s23, %s37
      %p43 = scmp.eq.s32.totalorder %s42, 0
      %s45 = sadd.s32 %s44, 1
      %s46 = scalar_select %p43, %s44, %s45
      %p49 = pneg %p43
      %p50 = scmp.eq.s32.totalorder %s15, 21
      %p51 = por %p49, %p50
      %p52 = scmp.ne.s32.totalorder %s44, %s47
      %p53 = scmp.eq.s32.totalorder %s15, 0
      %p54 = por %p52, %p53
      %p55 = scmp.ne.s32.totalorder %s44, %s47
      %p56 = scmp.eq.s32.totalorder %s20, 21
      %p57 = por %p55, %p56
      %p58 = scmp.ne.s32.totalorder %s47, %s48
      %p59 = scmp.eq.s32.totalorder %s20, 0
      %p60 = por %p58, %p59
      %p61 = scmp.ne.s32.totalorder %s47, %s48
      %p62 = scmp.eq.s32.totalorder %s21, 21
      %p63 = por %p61, %p62
      %p65 = scmp.ne.s32.totalorder %s48, %s64
      %p66 = scmp.eq.s32.totalorder %s21, 0
      %p67 = por %p65, %p66
      %s68 = ssub.s32 %s23, %s37
      %p69 = scmp.eq.s32.totalorder %s68, 0
      %s71 = sadd.s32 %s70, 1
      %s72 = scalar_select %p69, %s70, %s71
      %p75 = pneg %p69
      %p76 = scmp.eq.s32.totalorder %s15, 21
      %p77 = por %p75, %p76
      %p78 = scmp.ne.s32.totalorder %s70, %s73
      %p79 = scmp.eq.s32.totalorder %s15, 0
      %p80 = por %p78, %p79
      %p81 = scmp.ne.s32.totalorder %s70, %s73
      %p82 = scmp.eq.s32.totalorder %s20, 21
      %p83 = por %p81, %p82
      %p84 = scmp.ne.s32.totalorder %s73, %s74
      %p85 = scmp.eq.s32.totalorder %s20, 0
      %p86 = por %p84, %p85
      %p87 = scmp.ne.s32.totalorder %s73, %s74
      %p88 = scmp.eq.s32.totalorder %s21, 21
      %p89 = por %p87, %p88
      %p91 = scmp.ne.s32.totalorder %s74, %s90
      %p92 = scmp.eq.s32.totalorder %s21, 0
      %p93 = por %p91, %p92
      %s94 = ssub.s32 %s22, %s41
      %s95 = ssub.s32 %s24, %s33
      %s96 = sor.u32 %s94, %s95
      %p97 = scmp.eq.s32.totalorder %s96, 0
      %s99 = sadd.s32 %s98, 1
      %s100 = scalar_select %p97, %s98, %s99
      %p103 = pneg %p97
      %p104 = scmp.eq.s32.totalorder %s15, 21
      %p105 = por %p103, %p104
      %p106 = scmp.ne.s32.totalorder %s98, %s101
      %p107 = scmp.eq.s32.totalorder %s15, 0
      %p108 = por %p106, %p107
      %p109 = scmp.ne.s32.totalorder %s98, %s101
      %p110 = scmp.eq.s32.totalorder %s20, 21
      %p111 = por %p109, %p110
      %p112 = scmp.ne.s32.totalorder %s101, %s102
      %p113 = scmp.eq.s32.totalorder %s20, 0
      %p114 = por %p112, %p113
      %p115 = scmp.ne.s32.totalorder %s101, %s102
      %p116 = scmp.eq.s32.totalorder %s21, 21
      %p117 = por %p115, %p116
      %p119 = scmp.ne.s32.totalorder %s102, %s118
      %p120 = scmp.eq.s32.totalorder %s21, 0
      %p121 = por %p119, %p120
      %s122 = sadd.s32 %s24, 1
      %s123 = smul.u32 %s122, 32
      %s124 = sadd.s32 %s33, 1
      %s125 = smul.u32 %s124, 32
      %s126 = ssub.s32 %s22, %s41
      %s127 = ssub.s32 %s123, %s125
      %s128 = sor.u32 %s126, %s127
      %p129 = scmp.eq.s32.totalorder %s128, 0
      %s131 = sadd.s32 %s130, 1
      %s132 = scalar_select %p129, %s130, %s131
      %p135 = pneg %p129
      %p136 = scmp.eq.s32.totalorder %s15, 21
      %p137 = por %p135, %p136
      %p138 = scmp.ne.s32.totalorder %s130, %s133
      %p139 = scmp.eq.s32.totalorder %s15, 0
      %p140 = por %p138, %p139
      %p141 = scmp.ne.s32.totalorder %s130, %s133
      %p142 = scmp.eq.s32.totalorder %s20, 21
      %p143 = por %p141, %p142
      %p144 = scmp.ne.s32.totalorder %s133, %s134
      %p145 = scmp.eq.s32.totalorder %s20, 0
      %p146 = por %p144, %p145
      %p147 = scmp.ne.s32.totalorder %s133, %s134
      %p148 = scmp.eq.s32.totalorder %s21, 21
      %p149 = por %p147, %p148
      %p151 = scmp.ne.s32.totalorder %s134, %s150
      %p152 = scmp.eq.s32.totalorder %s21, 0
      %p153 = por %p151, %p152
      %s154 = ssub.s32 %s22, %s41
      %s155 = ssub.s32 %s23, %s37
      %s156 = sor.u32 %s154, %s155
      %s157 = ssub.s32 %s24, %s33
      %s158 = sor.u32 %s156, %s157
      %p159 = scmp.eq.s32.totalorder %s158, 0
      %s161 = sadd.s32 %s160, 1
      %s162 = scalar_select %p159, %s160, %s161
      %p165 = pneg %p159
      %p166 = scmp.eq.s32.totalorder %s15, 21
      %p167 = por %p165, %p166
      %p168 = scmp.ne.s32.totalorder %s160, %s163
      %p169 = scmp.eq.s32.totalorder %s15, 0
      %p170 = por %p168, %p169
      %p171 = scmp.ne.s32.totalorder %s160, %s163
      %p172 = scmp.eq.s32.totalorder %s20, 21
      %p173 = por %p171, %p172
      %p174 = scmp.ne.s32.totalorder %s163, %s164
      %p175 = scmp.eq.s32.totalorder %s20, 0
      %p176 = por %p174, %p175
      %p177 = scmp.ne.s32.totalorder %s163, %s164
      %p178 = scmp.eq.s32.totalorder %s21, 21
      %p179 = por %p177, %p178
      %p181 = scmp.ne.s32.totalorder %s164, %s180
      %p182 = scmp.eq.s32.totalorder %s21, 0
      %p183 = por %p181, %p182
      %p184 = scmp.le.s32.totalorder 1, %s15
      %p185 = scmp.lt.s32.totalorder %s15, 23
      %p186 = pnand %p184, %p185
      %p187 = pneg %p186
      // Predicated region
      $region9: #{forward.3} parent=5 // pred_check
        _
      $region10: #{forward.3} parent=5 // pred_check_branch
        %189 = sbr.rel (%p186) target = $region12
      $region11: #{forward.3} parent=5 // pred_region
        %s190 = ssub.s32 %s15, 1
        // Predicated region
        $region13: #{forward.3} parent=11 // pred_check
          %p191 = pneg %p60
        $region14: #{forward.3} parent=11 // pred_check_branch
          %193 = sbr.rel (%p191) target = $region16
        $region15: #{forward.3} parent=11 // pred_region
          %s195 = ssub.s32 64, 64
          %196 = vsyncadd [#allocation3], %s195
          %s197 = smul.addr %s26, 64
          %s198 = scalar_lea.hbm %s0, %s197
          %s200 = sshll.u32 [#allocation2], 4
          %s201 = int_to_ptr.vmem [resolvable:$true] %s200
          %203 = dma.hbm_to_vmem [thread:$0]  %s198, 64, %s201, [#allocation3]
        $region16: #{forward.3} parent=11 // pred_fallthru
          _
        // Predicated region
        $region17: #{forward.3} parent=11 // pred_check
          %p204 = pneg %p86
        $region18: #{forward.3} parent=11 // pred_check_branch
          %206 = sbr.rel (%p204) target = $region20
        $region19: #{forward.3} parent=11 // pred_region
          %s208 = ssub.s32 128, 128
          %209 = vsyncadd [#allocation6], %s208
          %s210 = smul.addr %s26, 128
          %s211 = scalar_lea.hbm %s1, %s210
          %s213 = sshll.u32 [#allocation5], 4
          %s214 = int_to_ptr.vmem [resolvable:$true] %s213
          %216 = dma.hbm_to_vmem [thread:$0]  %s211, 128, %s214, [#allocation6]
        $region20: #{forward.3} parent=11 // pred_fallthru
          _
      $region12: #{forward.3} parent=5 // pred_fallthru
        _
      %p217 = scmp.lt.s32.totalorder %s15, 22
      // Predicated region
      $region21: #{forward.3} parent=5 // pred_check
        %p218 = pneg %p217
      $region22: #{forward.3} parent=5 // pred_check_branch
        %220 = sbr.rel (%p218) target = $region24
      $region23: #{forward.3} parent=5 // pred_region
        // Predicated region
        $region25: #{forward.3} parent=23 // pred_check
          %p221 = pneg %p108
        $region26: #{forward.3} parent=23 // pred_check_branch
          %223 = sbr.rel (%p221) target = $region28
        $region27: #{forward.3} parent=23 // pred_region
          %s224 = sand.u32 %s15, 1
          %s225 = scalar_lea.sflag [#allocation3], %s224
          %s226 = sand.u32 %s98, 1
          %s227 = smul.addr %s226, 256
          %s228 = scalar_lea.vmem [#allocation7], %s227
          %s229 = smul.u32 32, %s24
          %s230 = ssub.s32 353, %s229
          %p231 = scmp.lt.s32.totalorder %s230, 32
          %s232 = scalar_select %p231, %s230, 32
          %s233 = smul.u32 128, %s232
          %s235 = ssub.s32 4096, %s233
          %236 = vsyncadd %s225, %s235
          %p237 = scmp.ne.s32.totalorder 0, %s233
          %s238 = smul.addr %s22, 706
          %s239 = sadd.s32 %s229, %s238
          %s240 = smul.addr %s239, 64
          %s241 = scalar_lea.hbm %s2, %s240
          %s242 = smul.u32 %s232, 4
          %s243 = smul.u32 %s242, 2
          %s244 = sshll.u32 %s228, 4
          %s245 = int_to_ptr.vmem [resolvable:$true] %s244
          %s246 = sshll.u32 %s243, 4
          %250 = dma.hbm_to_vmem [thread:$0]  (%p237), %s241, %s246, %s245, %s225, 22592, 2048, %s242
        $region28: #{forward.3} parent=23 // pred_fallthru
          _
        // Predicated region
        $region29: #{forward.3} parent=23 // pred_check
          %p251 = pneg %p140
        $region30: #{forward.3} parent=23 // pred_check_branch
          %253 = sbr.rel (%p251) target = $region32
        $region31: #{forward.3} parent=23 // pred_region
          %s254 = sand.u32 %s15, 1
          %s255 = scalar_lea.sflag [#allocation3], %s254
          %s256 = sand.u32 %s130, 1
          %s257 = smul.addr %s256, 8
          %s258 = scalar_lea.vmem [#allocation8], %s257
          %s259 = sadd.s32 %s24, 1
          %s260 = smul.u32 %s259, 32
          %s262 = ssub.s32 128, 128
          %263 = vsyncadd %s255, %s262
          %s264 = smul.addr %s22, 706
          %s265 = sadd.s32 %s260, %s264
          %s266 = smul.addr %s265, 64
          %s267 = scalar_lea.hbm %s3, %s266
          %s268 = sshll.u32 %s258, 4
          %s269 = int_to_ptr.vmem [resolvable:$true] %s268
          %274 = dma.hbm_to_vmem [thread:$0]  %s267, 128, %s269, %s255, 22592, 64, 4
        $region32: #{forward.3} parent=23 // pred_fallthru
          _
      $region24: #{forward.3} parent=5 // pred_fallthru
        _
      %p275 = scmp.le.s32.totalorder 1, %s15
      %p276 = scmp.lt.s32.totalorder %s15, 23
      %p277 = pnand %p275, %p276
      %p278 = pneg %p277
      // Predicated region
      $region33: #{forward.3} parent=5 // pred_check
        _
      $region34: #{forward.3} parent=5 // pred_check_branch
        %280 = sbr.rel (%p277) target = $region36
      $region35: #{forward.3} parent=5 // pred_region
        %s281 = ssub.s32 %s15, 1
        // Predicated region
        $region37: #{forward.3} parent=35 // pred_check
          %p282 = pneg %p60
        $region38: #{forward.3} parent=35 // pred_check_branch
          %284 = sbr.rel (%p282) target = $region40
        $region39: #{forward.3} parent=35 // pred_region
          %285 = dma.done [#allocation3], 64
        $region40: #{forward.3} parent=35 // pred_fallthru
          _
        // Predicated region
        $region41: #{forward.3} parent=35 // pred_check
          %p286 = pneg %p86
        $region42: #{forward.3} parent=35 // pred_check_branch
          %288 = sbr.rel (%p286) target = $region44
        $region43: #{forward.3} parent=35 // pred_region
          %289 = dma.done [#allocation6], 128
        $region44: #{forward.3} parent=35 // pred_fallthru
          _
        %s290 = sand.u32 %s20, 1
        %s291 = scalar_lea.sflag [#allocation3], %s290
        %s292 = sand.u32 %s101, 1
        %s293 = smul.addr %s292, 256
        %s294 = scalar_lea.vmem [#allocation7], %s293
        // Predicated region
        $region45: #{forward.3} parent=35 // pred_check
          %p295 = pneg %p114
        $region46: #{forward.3} parent=35 // pred_check_branch
          %297 = sbr.rel (%p295) target = $region48
        $region47: #{forward.3} parent=35 // pred_region
          %298 = dma.done %s291, 4096
        $region48: #{forward.3} parent=35 // pred_fallthru
          _
        %s299 = sand.u32 %s20, 1
        %s300 = scalar_lea.sflag [#allocation3], %s299
        %s301 = sand.u32 %s133, 1
        %s302 = smul.addr %s301, 8
        %s303 = scalar_lea.vmem [#allocation8], %s302
        // Predicated region
        $region49: #{forward.3} parent=35 // pred_check
          %p304 = pneg %p146
        $region50: #{forward.3} parent=35 // pred_check_branch
          %306 = sbr.rel (%p304) target = $region52
        $region51: #{forward.3} parent=35 // pred_region
          %307 = dma.done %s300, 128
        $region52: #{forward.3} parent=35 // pred_fallthru
          _
        %p308 = pneg %p60
        %p309 = pneg %p57
        %p310 = pneg %p86
        %p311 = pneg %p83
        %s312 = sand.u32 %s20, 1
        %s313 = scalar_lea.sflag [#allocation3], %s312
        %s314 = sand.u32 %s101, 1
        %s315 = smul.addr %s314, 256
        %s316 = scalar_lea.vmem [#allocation7], %s315
        %p317 = pneg %p114
        %p318 = pneg %p111
        %s319 = sand.u32 %s20, 1
        %s320 = scalar_lea.sflag [#allocation3], %s319
        %s321 = sand.u32 %s133, 1
        %s322 = smul.addr %s321, 8
        %s323 = scalar_lea.vmem [#allocation8], %s322
        %p324 = pneg %p146
        %p325 = pneg %p143
        %p326 = pneg %p176
        %p327 = pneg %p173
        %s328 = sand.u32 %s163, 1
        %s329 = scalar_lea.sflag [#allocation4], %s328
        %s330 = sand.u32 %s163, 1
        %s331 = smul.addr %s330, 128
        %s332 = scalar_lea.vmem [#allocation9], %s331
        %s333 = smul.u32 32, %s27
        %s334 = ssub.s32 353, %s333
        %p335 = scmp.lt.s32.totalorder %s334, 32
        %s336 = scalar_select %p335, %s334, 32
        %s337 = smul.u32 128, %s336
        %s338 = sadd.s32 %s27, 1
        %s339 = smul.u32 %s338, 32
        %s340 = smul.u32 32, %s27
        %v342 = vld [vmem:[%s294] sm:$0xff]
        %v343 = vld [vmem:[%s294 + $0x8] sm:$0xff]
        %v344 = vld [vmem:[%s294 + $0x10] sm:$0xff]
        %v345 = vld [vmem:[%s294 + $0x18] sm:$0xff]
        %v346 = vld [vmem:[%s294 + $0x20] sm:$0xff]
        %v347 = vld [vmem:[%s294 + $0x28] sm:$0xff]
        %v348 = vld [vmem:[%s294 + $0x30] sm:$0xff]
        %v349 = vld [vmem:[%s294 + $0x38] sm:$0xff]
        %v350 = vld [vmem:[%s294 + $0x40] sm:$0xff]
        %v351 = vld [vmem:[%s294 + $0x48] sm:$0xff]
        %v352 = vld [vmem:[%s294 + $0x50] sm:$0xff]
        %v353 = vld [vmem:[%s294 + $0x58] sm:$0xff]
        %v354 = vld [vmem:[%s294 + $0x60] sm:$0xff]
        %v355 = vld [vmem:[%s294 + $0x68] sm:$0xff]
        %v356 = vld [vmem:[%s294 + $0x70] sm:$0xff]
        %v357 = vld [vmem:[%s294 + $0x78] sm:$0xff]
        %v358 = vld [vmem:[%s294 + $0x80] sm:$0xff]
        %v359 = vld [vmem:[%s294 + $0x88] sm:$0xff]
        %v360 = vld [vmem:[%s294 + $0x90] sm:$0xff]
        %v361 = vld [vmem:[%s294 + $0x98] sm:$0xff]
        %v362 = vld [vmem:[%s294 + $0xa0] sm:$0xff]
        %v363 = vld [vmem:[%s294 + $0xa8] sm:$0xff]
        %v364 = vld [vmem:[%s294 + $0xb0] sm:$0xff]
        %v365 = vld [vmem:[%s294 + $0xb8] sm:$0xff]
        %v366 = vld [vmem:[%s294 + $0xc0] sm:$0xff]
        %v367 = vld [vmem:[%s294 + $0xc8] sm:$0xff]
        %v368 = vld [vmem:[%s294 + $0xd0] sm:$0xff]
        %v369 = vld [vmem:[%s294 + $0xd8] sm:$0xff]
        %v370 = vld [vmem:[%s294 + $0xe0] sm:$0xff]
        %v371 = vld [vmem:[%s294 + $0xe8] sm:$0xff]
        %v372 = vld [vmem:[%s294 + $0xf0] sm:$0xff]
        %v373 = vld [vmem:[%s294 + $0xf8] sm:$0xff]
        %v374 = vld [vmem:[%s303] sm:$0xf]
        %v375 = vld [vmem:[%s303 + $0x4] sm:$0xf]
        %v408 = vunpack.c.l.b16 %v342
        %v409 = vunpack.c.h.b16 %v342
        %v410 = vunpack.c.l.b16 %v343
        %v411 = vunpack.c.h.b16 %v343
        %v412 = vunpack.c.l.b16 %v344
        %v413 = vunpack.c.h.b16 %v344
        %v414 = vunpack.c.l.b16 %v345
        %v415 = vunpack.c.h.b16 %v345
        %v416 = vunpack.c.l.b16 %v346
        %v417 = vunpack.c.h.b16 %v346
        %v418 = vunpack.c.l.b16 %v347
        %v419 = vunpack.c.h.b16 %v347
        %v420 = vunpack.c.l.b16 %v348
        %v421 = vunpack.c.h.b16 %v348
        %v422 = vunpack.c.l.b16 %v349
        %v423 = vunpack.c.h.b16 %v349
        %v424 = vunpack.c.l.b16 %v350
        %v425 = vunpack.c.h.b16 %v350
        %v426 = vunpack.c.l.b16 %v351
        %v427 = vunpack.c.h.b16 %v351
        %v428 = vunpack.c.l.b16 %v352
        %v429 = vunpack.c.h.b16 %v352
        %v430 = vunpack.c.l.b16 %v353
        %v431 = vunpack.c.h.b16 %v353
        %v432 = vunpack.c.l.b16 %v354
        %v433 = vunpack.c.h.b16 %v354
        %v434 = vunpack.c.l.b16 %v355
        %v435 = vunpack.c.h.b16 %v355
        %v436 = vunpack.c.l.b16 %v356
        %v437 = vunpack.c.h.b16 %v356
        %v438 = vunpack.c.l.b16 %v357
        %v439 = vunpack.c.h.b16 %v357
        %v440 = vunpack.c.l.b16 %v358
        %v441 = vunpack.c.h.b16 %v358
        %v442 = vunpack.c.l.b16 %v359
        %v443 = vunpack.c.h.b16 %v359
        %v444 = vunpack.c.l.b16 %v360
        %v445 = vunpack.c.h.b16 %v360
        %v446 = vunpack.c.l.b16 %v361
        %v447 = vunpack.c.h.b16 %v361
        %v448 = vunpack.c.l.b16 %v362
        %v449 = vunpack.c.h.b16 %v362
        %v450 = vunpack.c.l.b16 %v363
        %v451 = vunpack.c.h.b16 %v363
        %v452 = vunpack.c.l.b16 %v364
        %v453 = vunpack.c.h.b16 %v364
        %v454 = vunpack.c.l.b16 %v365
        %v455 = vunpack.c.h.b16 %v365
        %v456 = vunpack.c.l.b16 %v366
        %v457 = vunpack.c.h.b16 %v366
        %v458 = vunpack.c.l.b16 %v367
        %v459 = vunpack.c.h.b16 %v367
        %v460 = vunpack.c.l.b16 %v368
        %v461 = vunpack.c.h.b16 %v368
        %v462 = vunpack.c.l.b16 %v369
        %v463 = vunpack.c.h.b16 %v369
        %v464 = vunpack.c.l.b16 %v370
        %v465 = vunpack.c.h.b16 %v370
        %v466 = vunpack.c.l.b16 %v371
        %v467 = vunpack.c.h.b16 %v371
        %v468 = vunpack.c.l.b16 %v372
        %v469 = vunpack.c.h.b16 %v372
        %v470 = vunpack.c.l.b16 %v373
        %v471 = vunpack.c.h.b16 %v373
        %v472 = vpack.c.b16 %v440, %v408
        %v473 = vpack.c.b16 %v441, %v409
        %v474 = vpack.c.b16 %v442, %v410
        %v475 = vpack.c.b16 %v443, %v411
        %v476 = vpack.c.b16 %v444, %v412
        %v477 = vpack.c.b16 %v445, %v413
        %v478 = vpack.c.b16 %v446, %v414
        %v479 = vpack.c.b16 %v447, %v415
        %v480 = vpack.c.b16 %v448, %v416
        %v481 = vpack.c.b16 %v449, %v417
        %v482 = vpack.c.b16 %v450, %v418
        %v483 = vpack.c.b16 %v451, %v419
        %v484 = vpack.c.b16 %v452, %v420
        %v485 = vpack.c.b16 %v453, %v421
        %v486 = vpack.c.b16 %v454, %v422
        %v487 = vpack.c.b16 %v455, %v423
        %v488 = vpack.c.b16 %v456, %v424
        %v489 = vpack.c.b16 %v457, %v425
        %v490 = vpack.c.b16 %v458, %v426
        %v491 = vpack.c.b16 %v459, %v427
        %v492 = vpack.c.b16 %v460, %v428
        %v493 = vpack.c.b16 %v461, %v429
        %v494 = vpack.c.b16 %v462, %v430
        %v495 = vpack.c.b16 %v463, %v431
        %v496 = vpack.c.b16 %v464, %v432
        %v497 = vpack.c.b16 %v465, %v433
        %v498 = vpack.c.b16 %v466, %v434
        %v499 = vpack.c.b16 %v467, %v435
        %v500 = vpack.c.b16 %v468, %v436
        %v501 = vpack.c.b16 %v469, %v437
        %v502 = vpack.c.b16 %v470, %v438
        %v503 = vpack.c.b16 %v471, %v439
        %v538 = vunpack.c.l.b16 %v374
        %v539 = vunpack.c.l.b16 %v375
        %v540 = vpack.c.b16 %v539, %v538
        %541 = vrot.lane.b32.xlu0 %v472, 127
        %v542 = vpop.permute.xlu0 %541
        %543 = vrot.lane.b32.xlu0 %v473, 127
        %v544 = vpop.permute.xlu0 %543
        %545 = vrot.lane.b32.xlu0 %v474, 127
        %v546 = vpop.permute.xlu0 %545
        %547 = vrot.lane.b32.xlu0 %v475, 127
        %v548 = vpop.permute.xlu0 %547
        %549 = vrot.lane.b32.xlu0 %v476, 127
        %v550 = vpop.permute.xlu0 %549
        %551 = vrot.lane.b32.xlu0 %v477, 127
        %v552 = vpop.permute.xlu0 %551
        %553 = vrot.lane.b32.xlu0 %v478, 127
        %v554 = vpop.permute.xlu0 %553
        %555 = vrot.lane.b32.xlu0 %v479, 127
        %v556 = vpop.permute.xlu0 %555
        %557 = vrot.lane.b32.xlu0 %v480, 127
        %v558 = vpop.permute.xlu0 %557
        %559 = vrot.lane.b32.xlu0 %v481, 127
        %v560 = vpop.permute.xlu0 %559
        %561 = vrot.lane.b32.xlu0 %v482, 127
        %v562 = vpop.permute.xlu0 %561
        %563 = vrot.lane.b32.xlu0 %v483, 127
        %v564 = vpop.permute.xlu0 %563
        %565 = vrot.lane.b32.xlu0 %v484, 127
        %v566 = vpop.permute.xlu0 %565
        %567 = vrot.lane.b32.xlu0 %v485, 127
        %v568 = vpop.permute.xlu0 %567
        %569 = vrot.lane.b32.xlu0 %v486, 127
        %v570 = vpop.permute.xlu0 %569
        %571 = vrot.lane.b32.xlu0 %v487, 127
        %v572 = vpop.permute.xlu0 %571
        %573 = vrot.lane.b32.xlu0 %v488, 127
        %v574 = vpop.permute.xlu0 %573
        %575 = vrot.lane.b32.xlu0 %v489, 127
        %v576 = vpop.permute.xlu0 %575
        %577 = vrot.lane.b32.xlu0 %v490, 127
        %v578 = vpop.permute.xlu0 %577
        %579 = vrot.lane.b32.xlu0 %v491, 127
        %v580 = vpop.permute.xlu0 %579
        %581 = vrot.lane.b32.xlu0 %v492, 127
        %v582 = vpop.permute.xlu0 %581
        %583 = vrot.lane.b32.xlu0 %v493, 127
        %v584 = vpop.permute.xlu0 %583
        %585 = vrot.lane.b32.xlu0 %v494, 127
        %v586 = vpop.permute.xlu0 %585
        %587 = vrot.lane.b32.xlu0 %v495, 127
        %v588 = vpop.permute.xlu0 %587
        %589 = vrot.lane.b32.xlu0 %v496, 127
        %v590 = vpop.permute.xlu0 %589
        %591 = vrot.lane.b32.xlu0 %v497, 127
        %v592 = vpop.permute.xlu0 %591
        %593 = vrot.lane.b32.xlu0 %v498, 127
        %v594 = vpop.permute.xlu0 %593
        %595 = vrot.lane.b32.xlu0 %v499, 127
        %v596 = vpop.permute.xlu0 %595
        %597 = vrot.lane.b32.xlu0 %v500, 127
        %v598 = vpop.permute.xlu0 %597
        %599 = vrot.lane.b32.xlu0 %v501, 127
        %v600 = vpop.permute.xlu0 %599
        %601 = vrot.lane.b32.xlu0 %v502, 127
        %v602 = vpop.permute.xlu0 %601
        %603 = vrot.lane.b32.xlu0 %v503, 127
        %v604 = vpop.permute.xlu0 %603
        %605 = vrot.lane.b32.xlu0 %v540, 127
        %v606 = vpop.permute.xlu0 %605
        %vm607 = vcmask 1039360
        %v608 = vsel %vm607, %v542, %v544
        %v609 = vsel %vm607, %v544, %v546
        %v610 = vsel %vm607, %v546, %v548
        %v611 = vsel %vm607, %v548, %v550
        %v612 = vsel %vm607, %v550, %v552
        %v613 = vsel %vm607, %v552, %v554
        %v614 = vsel %vm607, %v554, %v556
        %v615 = vsel %vm607, %v556, %v558
        %v616 = vsel %vm607, %v558, %v560
        %v617 = vsel %vm607, %v560, %v562
        %v618 = vsel %vm607, %v562, %v564
        %v619 = vsel %vm607, %v564, %v566
        %v620 = vsel %vm607, %v566, %v568
        %v621 = vsel %vm607, %v568, %v570
        %v622 = vsel %vm607, %v570, %v572
        %v623 = vsel %vm607, %v572, %v574
        %v624 = vsel %vm607, %v574, %v576
        %v625 = vsel %vm607, %v576, %v578
        %v626 = vsel %vm607, %v578, %v580
        %v627 = vsel %vm607, %v580, %v582
        %v628 = vsel %vm607, %v582, %v584
        %v629 = vsel %vm607, %v584, %v586
        %v630 = vsel %vm607, %v586, %v588
        %v631 = vsel %vm607, %v588, %v590
        %v632 = vsel %vm607, %v590, %v592
        %v633 = vsel %vm607, %v592, %v594
        %v634 = vsel %vm607, %v594, %v596
        %v635 = vsel %vm607, %v596, %v598
        %v636 = vsel %vm607, %v598, %v600
        %v637 = vsel %vm607, %v600, %v602
        %v638 = vsel %vm607, %v602, %v604
        %v639 = vsel %vm607, %v604, %v606
        %672 = vrot.lane.b32.xlu0 %v472, 126
        %v673 = vpop.permute.xlu0 %672
        %674 = vrot.lane.b32.xlu0 %v473, 126
        %v675 = vpop.permute.xlu0 %674
        %676 = vrot.lane.b32.xlu0 %v474, 126
        %v677 = vpop.permute.xlu0 %676
        %678 = vrot.lane.b32.xlu0 %v475, 126
        %v679 = vpop.permute.xlu0 %678
        %680 = vrot.lane.b32.xlu0 %v476, 126
        %v681 = vpop.permute.xlu0 %680
        %682 = vrot.lane.b32.xlu0 %v477, 126
        %v683 = vpop.permute.xlu0 %682
        %684 = vrot.lane.b32.xlu0 %v478, 126
        %v685 = vpop.permute.xlu0 %684
        %686 = vrot.lane.b32.xlu0 %v479, 126
        %v687 = vpop.permute.xlu0 %686
        %688 = vrot.lane.b32.xlu0 %v480, 126
        %v689 = vpop.permute.xlu0 %688
        %690 = vrot.lane.b32.xlu0 %v481, 126
        %v691 = vpop.permute.xlu0 %690
        %692 = vrot.lane.b32.xlu0 %v482, 126
        %v693 = vpop.permute.xlu0 %692
        %694 = vrot.lane.b32.xlu0 %v483, 126
        %v695 = vpop.permute.xlu0 %694
        %696 = vrot.lane.b32.xlu0 %v484, 126
        %v697 = vpop.permute.xlu0 %696
        %698 = vrot.lane.b32.xlu0 %v485, 126
        %v699 = vpop.permute.xlu0 %698
        %700 = vrot.lane.b32.xlu0 %v486, 126
        %v701 = vpop.permute.xlu0 %700
        %702 = vrot.lane.b32.xlu0 %v487, 126
        %v703 = vpop.permute.xlu0 %702
        %704 = vrot.lane.b32.xlu0 %v488, 126
        %v705 = vpop.permute.xlu0 %704
        %706 = vrot.lane.b32.xlu0 %v489, 126
        %v707 = vpop.permute.xlu0 %706
        %708 = vrot.lane.b32.xlu0 %v490, 126
        %v709 = vpop.permute.xlu0 %708
        %710 = vrot.lane.b32.xlu0 %v491, 126
        %v711 = vpop.permute.xlu0 %710
        %712 = vrot.lane.b32.xlu0 %v492, 126
        %v713 = vpop.permute.xlu0 %712
        %714 = vrot.lane.b32.xlu0 %v493, 126
        %v715 = vpop.permute.xlu0 %714
        %716 = vrot.lane.b32.xlu0 %v494, 126
        %v717 = vpop.permute.xlu0 %716
        %718 = vrot.lane.b32.xlu0 %v495, 126
        %v719 = vpop.permute.xlu0 %718
        %720 = vrot.lane.b32.xlu0 %v496, 126
        %v721 = vpop.permute.xlu0 %720
        %722 = vrot.lane.b32.xlu0 %v497, 126
        %v723 = vpop.permute.xlu0 %722
        %724 = vrot.lane.b32.xlu0 %v498, 126
        %v725 = vpop.permute.xlu0 %724
        %726 = vrot.lane.b32.xlu0 %v499, 126
        %v727 = vpop.permute.xlu0 %726
        %728 = vrot.lane.b32.xlu0 %v500, 126
        %v729 = vpop.permute.xlu0 %728
        %730 = vrot.lane.b32.xlu0 %v501, 126
        %v731 = vpop.permute.xlu0 %730
        %732 = vrot.lane.b32.xlu0 %v502, 126
        %v733 = vpop.permute.xlu0 %732
        %734 = vrot.lane.b32.xlu0 %v503, 126
        %v735 = vpop.permute.xlu0 %734
        %736 = vrot.lane.b32.xlu0 %v540, 126
        %v737 = vpop.permute.xlu0 %736
        %vm738 = vcmask 1031168
        %v739 = vsel %vm738, %v673, %v675
        %v740 = vsel %vm738, %v675, %v677
        %v741 = vsel %vm738, %v677, %v679
        %v742 = vsel %vm738, %v679, %v681
        %v743 = vsel %vm738, %v681, %v683
        %v744 = vsel %vm738, %v683, %v685
        %v745 = vsel %vm738, %v685, %v687
        %v746 = vsel %vm738, %v687, %v689
        %v747 = vsel %vm738, %v689, %v691
        %v748 = vsel %vm738, %v691, %v693
        %v749 = vsel %vm738, %v693, %v695
        %v750 = vsel %vm738, %v695, %v697
        %v751 = vsel %vm738, %v697, %v699
        %v752 = vsel %vm738, %v699, %v701
        %v753 = vsel %vm738, %v701, %v703
        %v754 = vsel %vm738, %v703, %v705
        %v755 = vsel %vm738, %v705, %v707
        %v756 = vsel %vm738, %v707, %v709
        %v757 = vsel %vm738, %v709, %v711
        %v758 = vsel %vm738, %v711, %v713
        %v759 = vsel %vm738, %v713, %v715
        %v760 = vsel %vm738, %v715, %v717
        %v761 = vsel %vm738, %v717, %v719
        %v762 = vsel %vm738, %v719, %v721
        %v763 = vsel %vm738, %v721, %v723
        %v764 = vsel %vm738, %v723, %v725
        %v765 = vsel %vm738, %v725, %v727
        %v766 = vsel %vm738, %v727, %v729
        %v767 = vsel %vm738, %v729, %v731
        %v768 = vsel %vm738, %v731, %v733
        %v769 = vsel %vm738, %v733, %v735
        %v770 = vsel %vm738, %v735, %v737
        %v803 = vld [vmem:[#allocation2] sm:$0xf]
        %v804 = vld [vmem:[#allocation5] sm:$0xff]
        %806 = vset.pattern.permute.xlu0 0
        %807 = vperm.xlu0 %806, %v804
        %v808 = vpop.permute.xlu0 %807
        %vm810 = vcmask 392192
        %v812 = vsel %vm810, %v803, 0
        %814 = vmatprep.subr.bf16.mxu0 %v473
        %815 = vmatpush1.bf16.msra.mxu0 %v472
        %816 = vmatprep.subr.bf16.mxu0 %v609
        %817 = vmatpush1.bf16.msra.mxu0 %v608
        %818 = vmatprep.subr.bf16.mxu0 %v740
        %819 = vmatpush1.bf16.msra.mxu0 %v739
        %820 = vmatprep.subr.bf16.mxu0 0
        %821 = vmatpush1.bf16.msra.mxu0 0
        %822 = vmatprep.subr.bf16.mxu0 0
        %823 = vmatpush1.bf16.msra.mxu0 0
        %824 = vmatprep.subr.bf16.mxu0 0
        %825 = vmatpush1.bf16.msra.mxu0 0
        %826 = vmatprep.subr.bf16.mxu0 0
        %827 = vmatpush1.bf16.msra.mxu0 0
        %828 = vmatprep.subr.bf16.mxu0 0
        %829 = vmatpush1.bf16.msra.mxu0 0
        %830 = vmatprep.subr.bf16.mxu0 0
        %831 = vmatpush1.bf16.msra.mxu0 0
        %832 = vmatprep.subr.bf16.mxu0 0
        %833 = vmatpush1.bf16.msra.mxu0 0
        %834 = vmatprep.subr.bf16.mxu0 0
        %835 = vmatpush1.bf16.msra.mxu0 0
        %836 = vmatprep.subr.bf16.mxu0 0
        %837 = vmatpush1.bf16.msra.mxu0 0
        %838 = vmatprep.subr.bf16.mxu0 0
        %839 = vmatpush1.bf16.msra.mxu0 0
        %840 = vmatprep.subr.bf16.mxu0 0
        %841 = vmatpush1.bf16.msra.mxu0 0
        %842 = vmatprep.subr.bf16.mxu0 0
        %843 = vmatpush1.bf16.msra.mxu0 0
        %844 = vmatprep.subr.bf16.mxu0 0
        %845 = vmatpush1.bf16.msra.mxu0 0
        %846 = vmatprep.mubr.bf16.mxu0 0
        %847 = vmatmul.mubr.bf16.gmra.mrb[0].mxu0 %v812
        %v848 = vpop.f32.mrb[0].mxu0
        %v849 = vadd.f32 %v808, %v848
        %v850 = vpop.f32.mrb[0].mxu0
        %v851 = vadd.f32 %v808, %v850
        %v852 = vpop.f32.mrb[0].mxu0
        %v853 = vpop.f32.mrb[0].mxu0
        %854 = vdwg.mxu0
        %855 = vmatprep.subr.bf16.mxu0 %v475
        %856 = vmatpush1.bf16.msra.mxu0 %v474
        %857 = vmatprep.subr.bf16.mxu0 %v611
        %858 = vmatpush1.bf16.msra.mxu0 %v610
        %859 = vmatprep.subr.bf16.mxu0 %v742
        %860 = vmatpush1.bf16.msra.mxu0 %v741
        %861 = vmatprep.subr.bf16.mxu0 0
        %862 = vmatpush1.bf16.msra.mxu0 0
        %863 = vmatprep.subr.bf16.mxu0 0
        %864 = vmatpush1.bf16.msra.mxu0 0
        %865 = vmatprep.subr.bf16.mxu0 0
        %866 = vmatpush1.bf16.msra.mxu0 0
        %867 = vmatprep.subr.bf16.mxu0 0
        %868 = vmatpush1.bf16.msra.mxu0 0
        %869 = vmatprep.subr.bf16.mxu0 0
        %870 = vmatpush1.bf16.msra.mxu0 0
        %871 = vmatprep.subr.bf16.mxu0 0
        %872 = vmatpush1.bf16.msra.mxu0 0
        %873 = vmatprep.subr.bf16.mxu0 0
        %874 = vmatpush1.bf16.msra.mxu0 0
        %875 = vmatprep.subr.bf16.mxu0 0
        %876 = vmatpush1.bf16.msra.mxu0 0
        %877 = vmatprep.subr.bf16.mxu0 0
        %878 = vmatpush1.bf16.msra.mxu0 0
        %879 = vmatprep.subr.bf16.mxu0 0
        %880 = vmatpush1.bf16.msra.mxu0 0
        %881 = vmatprep.subr.bf16.mxu0 0
        %882 = vmatpush1.bf16.msra.mxu0 0
        %883 = vmatprep.subr.bf16.mxu0 0
        %884 = vmatpush1.bf16.msra.mxu0 0
        %885 = vmatprep.subr.bf16.mxu0 0
        %886 = vmatpush1.bf16.msra.mxu0 0
        %887 = vmatprep.mubr.bf16.mxu0 0
        %888 = vmatmul.mubr.bf16.gmra.mrb[0].mxu0 %v812
        %v889 = vpop.f32.mrb[0].mxu0
        %v890 = vadd.f32 %v808, %v889
        %v891 = vpop.f32.mrb[0].mxu0
        %v892 = vadd.f32 %v808, %v891
        %v893 = vpop.f32.mrb[0].mxu0
        %v894 = vpop.f32.mrb[0].mxu0
        %895 = vdwg.mxu0
        %896 = vmatprep.subr.bf16.mxu0 %v477
        %897 = vmatpush1.bf16.msra.mxu0 %v476
        %898 = vmatprep.subr.bf16.mxu0 %v613
        %899 = vmatpush1.bf16.msra.mxu0 %v612
        %900 = vmatprep.subr.bf16.mxu0 %v744
        %901 = vmatpush1.bf16.msra.mxu0 %v743
        %902 = vmatprep.subr.bf16.mxu0 0
        %903 = vmatpush1.bf16.msra.mxu0 0
        %904 = vmatprep.subr.bf16.mxu0 0
        %905 = vmatpush1.bf16.msra.mxu0 0
        %906 = vmatprep.subr.bf16.mxu0 0
        %907 = vmatpush1.bf16.msra.mxu0 0
        %908 = vmatprep.subr.bf16.mxu0 0
        %909 = vmatpush1.bf16.msra.mxu0 0
        %910 = vmatprep.subr.bf16.mxu0 0
        %911 = vmatpush1.bf16.msra.mxu0 0
        %912 = vmatprep.subr.bf16.mxu0 0
        %913 = vmatpush1.bf16.msra.mxu0 0
        %914 = vmatprep.subr.bf16.mxu0 0
        %915 = vmatpush1.bf16.msra.mxu0 0
        %916 = vmatprep.subr.bf16.mxu0 0
        %917 = vmatpush1.bf16.msra.mxu0 0
        %918 = vmatprep.subr.bf16.mxu0 0
        %919 = vmatpush1.bf16.msra.mxu0 0
        %920 = vmatprep.subr.bf16.mxu0 0
        %921 = vmatpush1.bf16.msra.mxu0 0
        %922 = vmatprep.subr.bf16.mxu0 0
        %923 = vmatpush1.bf16.msra.mxu0 0
        %924 = vmatprep.subr.bf16.mxu0 0
        %925 = vmatpush1.bf16.msra.mxu0 0
        %926 = vmatprep.subr.bf16.mxu0 0
        %927 = vmatpush1.bf16.msra.mxu0 0
        %928 = vmatprep.mubr.bf16.mxu0 0
        %929 = vmatmul.mubr.bf16.gmra.mrb[0].mxu0 %v812
        %v930 = vpop.f32.mrb[0].mxu0
        %v931 = vadd.f32 %v808, %v930
        %v932 = vpop.f32.mrb[0].mxu0
        %v933 = vadd.f32 %v808, %v932
        %v934 = vpop.f32.mrb[0].mxu0
        %v935 = vpop.f32.mrb[0].mxu0
        %936 = vdwg.mxu0
        %937 = vmatprep.subr.bf16.mxu0 %v479
        %938 = vmatpush1.bf16.msra.mxu0 %v478
        %939 = vmatprep.subr.bf16.mxu0 %v615
        %940 = vmatpush1.bf16.msra.mxu0 %v614
        %941 = vmatprep.subr.bf16.mxu0 %v746
        %942 = vmatpush1.bf16.msra.mxu0 %v745
        %943 = vmatprep.subr.bf16.mxu0 0
        %944 = vmatpush1.bf16.msra.mxu0 0
        %945 = vmatprep.subr.bf16.mxu0 0
        %946 = vmatpush1.bf16.msra.mxu0 0
        %947 = vmatprep.subr.bf16.mxu0 0
        %948 = vmatpush1.bf16.msra.mxu0 0
        %949 = vmatprep.subr.bf16.mxu0 0
        %950 = vmatpush1.bf16.msra.mxu0 0
        %951 = vmatprep.subr.bf16.mxu0 0
        %952 = vmatpush1.bf16.msra.mxu0 0
        %953 = vmatprep.subr.bf16.mxu0 0
        %954 = vmatpush1.bf16.msra.mxu0 0
        %955 = vmatprep.subr.bf16.mxu0 0
        %956 = vmatpush1.bf16.msra.mxu0 0
        %957 = vmatprep.subr.bf16.mxu0 0
        %958 = vmatpush1.bf16.msra.mxu0 0
        %959 = vmatprep.subr.bf16.mxu0 0
        %960 = vmatpush1.bf16.msra.mxu0 0
        %961 = vmatprep.subr.bf16.mxu0 0
        %962 = vmatpush1.bf16.msra.mxu0 0
        %963 = vmatprep.subr.bf16.mxu0 0
        %964 = vmatpush1.bf16.msra.mxu0 0
        %965 = vmatprep.subr.bf16.mxu0 0
        %966 = vmatpush1.bf16.msra.mxu0 0
        %967 = vmatprep.subr.bf16.mxu0 0
        %968 = vmatpush1.bf16.msra.mxu0 0
        %969 = vmatprep.mubr.bf16.mxu0 0
        %970 = vmatmul.mubr.bf16.gmra.mrb[0].mxu0 %v812
        %v971 = vpop.f32.mrb[0].mxu0
        %v972 = vadd.f32 %v808, %v971
        %v973 = vpop.f32.mrb[0].mxu0
        %v974 = vadd.f32 %v808, %v973
        %v975 = vpop.f32.mrb[0].mxu0
        %v976 = vpop.f32.mrb[0].mxu0
        %977 = vdwg.mxu0
        %978 = vmatprep.subr.bf16.mxu0 %v481
        %979 = vmatpush1.bf16.msra.mxu0 %v480
        %980 = vmatprep.subr.bf16.mxu0 %v617
        %981 = vmatpush1.bf16.msra.mxu0 %v616
        %982 = vmatprep.subr.bf16.mxu0 %v748
        %983 = vmatpush1.bf16.msra.mxu0 %v747
        %984 = vmatprep.subr.bf16.mxu0 0
        %985 = vmatpush1.bf16.msra.mxu0 0
        %986 = vmatprep.subr.bf16.mxu0 0
        %987 = vmatpush1.bf16.msra.mxu0 0
        %988 = vmatprep.subr.bf16.mxu0 0
        %989 = vmatpush1.bf16.msra.mxu0 0
        %990 = vmatprep.subr.bf16.mxu0 0
        %991 = vmatpush1.bf16.msra.mxu0 0
        %992 = vmatprep.subr.bf16.mxu0 0
        %993 = vmatpush1.bf16.msra.mxu0 0
        %994 = vmatprep.subr.bf16.mxu0 0
        %995 = vmatpush1.bf16.msra.mxu0 0
        %996 = vmatprep.subr.bf16.mxu0 0
        %997 = vmatpush1.bf16.msra.mxu0 0
        %998 = vmatprep.subr.bf16.mxu0 0
        %999 = vmatpush1.bf16.msra.mxu0 0
        %1000 = vmatprep.subr.bf16.mxu0 0
        %1001 = vmatpush1.bf16.msra.mxu0 0
        %1002 = vmatprep.subr.bf16.mxu0 0
        %1003 = vmatpush1.bf16.msra.mxu0 0
        %1004 = vmatprep.subr.bf16.mxu0 0
        %1005 = vmatpush1.bf16.msra.mxu0 0
        %1006 = vmatprep.subr.bf16.mxu0 0
        %1007 = vmatpush1.bf16.msra.mxu0 0
        %1008 = vmatprep.subr.bf16.mxu0 0
        %1009 = vmatpush1.bf16.msra.mxu0 0
        %1010 = vmatprep.mubr.bf16.mxu0 0
        %1011 = vmatmul.mubr.bf16.gmra.mrb[0].mxu0 %v812
        %v1012 = vpop.f32.mrb[0].mxu0
        %v1013 = vadd.f32 %v808, %v1012
        %v1014 = vpop.f32.mrb[0].mxu0
        %v1015 = vadd.f32 %v808, %v1014
        %v1016 = vpop.f32.mrb[0].mxu0
        %v1017 = vpop.f32.mrb[0].mxu0
        %1018 = vdwg.mxu0
        %1019 = vmatprep.subr.bf16.mxu0 %v483
        %1020 = vmatpush1.bf16.msra.mxu0 %v482
        %1021 = vmatprep.subr.bf16.mxu0 %v619
        %1022 = vmatpush1.bf16.msra.mxu0 %v618
        %1023 = vmatprep.subr.bf16.mxu0 %v750
        %1024 = vmatpush1.bf16.msra.mxu0 %v749
        %1025 = vmatprep.subr.bf16.mxu0 0
        %1026 = vmatpush1.bf16.msra.mxu0 0
        %1027 = vmatprep.subr.bf16.mxu0 0
        %1028 = vmatpush1.bf16.msra.mxu0 0
        %1029 = vmatprep.subr.bf16.mxu0 0
        %1030 = vmatpush1.bf16.msra.mxu0 0
        %1031 = vmatprep.subr.bf16.mxu0 0
        %1032 = vmatpush1.bf16.msra.mxu0 0
        %1033 = vmatprep.subr.bf16.mxu0 0
        %1034 = vmatpush1.bf16.msra.mxu0 0
        %1035 = vmatprep.subr.bf16.mxu0 0
        %1036 = vmatpush1.bf16.msra.mxu0 0
        %1037 = vmatprep.subr.bf16.mxu0 0
        %1038 = vmatpush1.bf16.msra.mxu0 0
        %1039 = vmatprep.subr.bf16.mxu0 0
        %1040 = vmatpush1.bf16.msra.mxu0 0
        %1041 = vmatprep.subr.bf16.mxu0 0
        %1042 = vmatpush1.bf16.msra.mxu0 0
        %1043 = vmatprep.subr.bf16.mxu0 0
        %1044 = vmatpush1.bf16.msra.mxu0 0
        %1045 = vmatprep.subr.bf16.mxu0 0
        %1046 = vmatpush1.bf16.msra.mxu0 0
        %1047 = vmatprep.subr.bf16.mxu0 0
        %1048 = vmatpush1.bf16.msra.mxu0 0
        %1049 = vmatprep.subr.bf16.mxu0 0
        %1050 = vmatpush1.bf16.msra.mxu0 0
        %1051 = vmatprep.mubr.bf16.mxu0 0
        %1052 = vmatmul.mubr.bf16.gmra.mrb[0].mxu0 %v812
        %v1053 = vpop.f32.mrb[0].mxu0
        %v1054 = vadd.f32 %v808, %v1053
        %v1055 = vpop.f32.mrb[0].mxu0
        %v1056 = vadd.f32 %v808, %v1055
        %v1057 = vpop.f32.mrb[0].mxu0
        %v1058 = vpop.f32.mrb[0].mxu0
        %1059 = vdwg.mxu0
        %1060 = vmatprep.subr.bf16.mxu0 %v485
        %1061 = vmatpush1.bf16.msra.mxu0 %v484
        %1062 = vmatprep.subr.bf16.mxu0 %v621
        %1063 = vmatpush1.bf16.msra.mxu0 %v620
        %1064 = vmatprep.subr.bf16.mxu0 %v752
        %1065 = vmatpush1.bf16.msra.mxu0 %v751
        %1066 = vmatprep.subr.bf16.mxu0 0
        %1067 = vmatpush1.bf16.msra.mxu0 0
        %1068 = vmatprep.subr.bf16.mxu0 0
        %1069 = vmatpush1.bf16.msra.mxu0 0
        %1070 = vmatprep.subr.bf16.mxu0 0
        %1071 = vmatpush1.bf16.msra.mxu0 0
        %1072 = vmatprep.subr.bf16.mxu0 0
        %1073 = vmatpush1.bf16.msra.mxu0 0
        %1074 = vmatprep.subr.bf16.mxu0 0
        %1075 = vmatpush1.bf16.msra.mxu0 0
        %1076 = vmatprep.subr.bf16.mxu0 0
        %1077 = vmatpush1.bf16.msra.mxu0 0
        %1078 = vmatprep.subr.bf16.mxu0 0
        %1079 = vmatpush1.bf16.msra.mxu0 0
        %1080 = vmatprep.subr.bf16.mxu0 0
        %1081 = vmatpush1.bf16.msra.mxu0 0
        %1082 = vmatprep.subr.bf16.mxu0 0
        %1083 = vmatpush1.bf16.msra.mxu0 0
        %1084 = vmatprep.subr.bf16.mxu0 0
        %1085 = vmatpush1.bf16.msra.mxu0 0
        %1086 = vmatprep.subr.bf16.mxu0 0
        %1087 = vmatpush1.bf16.msra.mxu0 0
        %1088 = vmatprep.subr.bf16.mxu0 0
        %1089 = vmatpush1.bf16.msra.mxu0 0
        %1090 = vmatprep.subr.bf16.mxu0 0
        %1091 = vmatpush1.bf16.msra.mxu0 0
        %1092 = vmatprep.mubr.bf16.mxu0 0
        %1093 = vmatmul.mubr.bf16.gmra.mrb[0].mxu0 %v812
        %v1094 = vpop.f32.mrb[0].mxu0
        %v1095 = vadd.f32 %v808, %v1094
        %v1096 = vpop.f32.mrb[0].mxu0
        %v1097 = vadd.f32 %v808, %v1096
        %v1098 = vpop.f32.mrb[0].mxu0
        %v1099 = vpop.f32.mrb[0].mxu0
        %1100 = vdwg.mxu0
        %1101 = vmatprep.subr.bf16.mxu0 %v487
        %1102 = vmatpush1.bf16.msra.mxu0 %v486
        %1103 = vmatprep.subr.bf16.mxu0 %v623
        %1104 = vmatpush1.bf16.msra.mxu0 %v622
        %1105 = vmatprep.subr.bf16.mxu0 %v754
        %1106 = vmatpush1.bf16.msra.mxu0 %v753
        %1107 = vmatprep.subr.bf16.mxu0 0
        %1108 = vmatpush1.bf16.msra.mxu0 0
        %1109 = vmatprep.subr.bf16.mxu0 0
        %1110 = vmatpush1.bf16.msra.mxu0 0
        %1111 = vmatprep.subr.bf16.mxu0 0
        %1112 = vmatpush1.bf16.msra.mxu0 0
        %1113 = vmatprep.subr.bf16.mxu0 0
        %1114 = vmatpush1.bf16.msra.mxu0 0
        %1115 = vmatprep.subr.bf16.mxu0 0
        %1116 = vmatpush1.bf16.msra.mxu0 0
        %1117 = vmatprep.subr.bf16.mxu0 0
        %1118 = vmatpush1.bf16.msra.mxu0 0
        %1119 = vmatprep.subr.bf16.mxu0 0
        %1120 = vmatpush1.bf16.msra.mxu0 0
        %1121 = vmatprep.subr.bf16.mxu0 0
        %1122 = vmatpush1.bf16.msra.mxu0 0
        %1123 = vmatprep.subr.bf16.mxu0 0
        %1124 = vmatpush1.bf16.msra.mxu0 0
        %1125 = vmatprep.subr.bf16.mxu0 0
        %1126 = vmatpush1.bf16.msra.mxu0 0
        %1127 = vmatprep.subr.bf16.mxu0 0
        %1128 = vmatpush1.bf16.msra.mxu0 0
        %1129 = vmatprep.subr.bf16.mxu0 0
        %1130 = vmatpush1.bf16.msra.mxu0 0
        %1131 = vmatprep.subr.bf16.mxu0 0
        %1132 = vmatpush1.bf16.msra.mxu0 0
        %1133 = vmatprep.mubr.bf16.mxu0 0
        %1134 = vmatmul.mubr.bf16.gmra.mrb[0].mxu0 %v812
        %v1135 = vpop.f32.mrb[0].mxu0
        %v1136 = vadd.f32 %v808, %v1135
        %v1137 = vpop.f32.mrb[0].mxu0
        %v1138 = vadd.f32 %v808, %v1137
        %v1139 = vpop.f32.mrb[0].mxu0
        %v1140 = vpop.f32.mrb[0].mxu0
        %1141 = vdwg.mxu0
        %1142 = vmatprep.subr.bf16.mxu0 %v489
        %1143 = vmatpush1.bf16.msra.mxu0 %v488
        %1144 = vmatprep.subr.bf16.mxu0 %v625
        %1145 = vmatpush1.bf16.msra.mxu0 %v624
        %1146 = vmatprep.subr.bf16.mxu0 %v756
        %1147 = vmatpush1.bf16.msra.mxu0 %v755
        %1148 = vmatprep.subr.bf16.mxu0 0
        %1149 = vmatpush1.bf16.msra.mxu0 0
        %1150 = vmatprep.subr.bf16.mxu0 0
        %1151 = vmatpush1.bf16.msra.mxu0 0
        %1152 = vmatprep.subr.bf16.mxu0 0
        %1153 = vmatpush1.bf16.msra.mxu0 0
        %1154 = vmatprep.subr.bf16.mxu0 0
        %1155 = vmatpush1.bf16.msra.mxu0 0
        %1156 = vmatprep.subr.bf16.mxu0 0
        %1157 = vmatpush1.bf16.msra.mxu0 0
        %1158 = vmatprep.subr.bf16.mxu0 0
        %1159 = vmatpush1.bf16.msra.mxu0 0
        %1160 = vmatprep.subr.bf16.mxu0 0
        %1161 = vmatpush1.bf16.msra.mxu0 0
        %1162 = vmatprep.subr.bf16.mxu0 0
        %1163 = vmatpush1.bf16.msra.mxu0 0
        %1164 = vmatprep.subr.bf16.mxu0 0
        %1165 = vmatpush1.bf16.msra.mxu0 0
        %1166 = vmatprep.subr.bf16.mxu0 0
        %1167 = vmatpush1.bf16.msra.mxu0 0
        %1168 = vmatprep.subr.bf16.mxu0 0
        %1169 = vmatpush1.bf16.msra.mxu0 0
        %1170 = vmatprep.subr.bf16.mxu0 0
        %1171 = vmatpush1.bf16.msra.mxu0 0
        %1172 = vmatprep.subr.bf16.mxu0 0
        %1173 = vmatpush1.bf16.msra.mxu0 0
        %1174 = vmatprep.mubr.bf16.mxu0 0
        %1175 = vmatmul.mubr.bf16.gmra.mrb[0].mxu0 %v812
        %v1176 = vpop.f32.mrb[0].mxu0
        %v1177 = vadd.f32 %v808, %v1176
        %v1178 = vpop.f32.mrb[0].mxu0
        %v1179 = vadd.f32 %v808, %v1178
        %v1180 = vpop.f32.mrb[0].mxu0
        %v1181 = vpop.f32.mrb[0].mxu0
        %1182 = vdwg.mxu0
        %1183 = vmatprep.subr.bf16.mxu0 %v491
        %1184 = vmatpush1.bf16.msra.mxu0 %v490
        %1185 = vmatprep.subr.bf16.mxu0 %v627
        %1186 = vmatpush1.bf16.msra.mxu0 %v626
        %1187 = vmatprep.subr.bf16.mxu0 %v758
        %1188 = vmatpush1.bf16.msra.mxu0 %v757
        %1189 = vmatprep.subr.bf16.mxu0 0
        %1190 = vmatpush1.bf16.msra.mxu0 0
        %1191 = vmatprep.subr.bf16.mxu0 0
        %1192 = vmatpush1.bf16.msra.mxu0 0
        %1193 = vmatprep.subr.bf16.mxu0 0
        %1194 = vmatpush1.bf16.msra.mxu0 0
        %1195 = vmatprep.subr.bf16.mxu0 0
        %1196 = vmatpush1.bf16.msra.mxu0 0
        %1197 = vmatprep.subr.bf16.mxu0 0
        %1198 = vmatpush1.bf16.msra.mxu0 0
        %1199 = vmatprep.subr.bf16.mxu0 0
        %1200 = vmatpush1.bf16.msra.mxu0 0
        %1201 = vmatprep.subr.bf16.mxu0 0
        %1202 = vmatpush1.bf16.msra.mxu0 0
        %1203 = vmatprep.subr.bf16.mxu0 0
        %1204 = vmatpush1.bf16.msra.mxu0 0
        %1205 = vmatprep.subr.bf16.mxu0 0
        %1206 = vmatpush1.bf16.msra.mxu0 0
        %1207 = vmatprep.subr.bf16.mxu0 0
        %1208 = vmatpush1.bf16.msra.mxu0 0
        %1209 = vmatprep.subr.bf16.mxu0 0
        %1210 = vmatpush1.bf16.msra.mxu0 0
        %1211 = vmatprep.subr.bf16.mxu0 0
        %1212 = vmatpush1.bf16.msra.mxu0 0
        %1213 = vmatprep.subr.bf16.mxu0 0
        %1214 = vmatpush1.bf16.msra.mxu0 0
        %1215 = vmatprep.mubr.bf16.mxu0 0
        %1216 = vmatmul.mubr.bf16.gmra.mrb[0].mxu0 %v812
        %v1217 = vpop.f32.mrb[0].mxu0
        %v1218 = vadd.f32 %v808, %v1217
        %v1219 = vpop.f32.mrb[0].mxu0
        %v1220 = vadd.f32 %v808, %v1219
        %v1221 = vpop.f32.mrb[0].mxu0
        %v1222 = vpop.f32.mrb[0].mxu0
        %1223 = vdwg.mxu0
        %1224 = vmatprep.subr.bf16.mxu0 %v493
        %1225 = vmatpush1.bf16.msra.mxu0 %v492
        %1226 = vmatprep.subr.bf16.mxu0 %v629
        %1227 = vmatpush1.bf16.msra.mxu0 %v628
        %1228 = vmatprep.subr.bf16.mxu0 %v760
        %1229 = vmatpush1.bf16.msra.mxu0 %v759
        %1230 = vmatprep.subr.bf16.mxu0 0
        %1231 = vmatpush1.bf16.msra.mxu0 0
        %1232 = vmatprep.subr.bf16.mxu0 0
        %1233 = vmatpush1.bf16.msra.mxu0 0
        %1234 = vmatprep.subr.bf16.mxu0 0
        %1235 = vmatpush1.bf16.msra.mxu0 0
        %1236 = vmatprep.subr.bf16.mxu0 0
        %1237 = vmatpush1.bf16.msra.mxu0 0
        %1238 = vmatprep.subr.bf16.mxu0 0
        %1239 = vmatpush1.bf16.msra.mxu0 0
        %1240 = vmatprep.subr.bf16.mxu0 0
        %1241 = vmatpush1.bf16.msra.mxu0 0
        %1242 = vmatprep.subr.bf16.mxu0 0
        %1243 = vmatpush1.bf16.msra.mxu0 0
        %1244 = vmatprep.subr.bf16.mxu0 0
        %1245 = vmatpush1.bf16.msra.mxu0 0
        %1246 = vmatprep.subr.bf16.mxu0 0
        %1247 = vmatpush1.bf16.msra.mxu0 0
        %1248 = vmatprep.subr.bf16.mxu0 0
        %1249 = vmatpush1.bf16.msra.mxu0 0
        %1250 = vmatprep.subr.bf16.mxu0 0
        %1251 = vmatpush1.bf16.msra.mxu0 0
        %1252 = vmatprep.subr.bf16.mxu0 0
        %1253 = vmatpush1.bf16.msra.mxu0 0
        %1254 = vmatprep.subr.bf16.mxu0 0
        %1255 = vmatpush1.bf16.msra.mxu0 0
        %1256 = vmatprep.mubr.bf16.mxu0 0
        %1257 = vmatmul.mubr.bf16.gmra.mrb[0].mxu0 %v812
        %v1258 = vpop.f32.mrb[0].mxu0
        %v1259 = vadd.f32 %v808, %v1258
        %v1260 = vpop.f32.mrb[0].mxu0
        %v1261 = vadd.f32 %v808, %v1260
        %v1262 = vpop.f32.mrb[0].mxu0
        %v1263 = vpop.f32.mrb[0].mxu0
        %1264 = vdwg.mxu0
        %1265 = vmatprep.subr.bf16.mxu0 %v495
        %1266 = vmatpush1.bf16.msra.mxu0 %v494
        %1267 = vmatprep.subr.bf16.mxu0 %v631
        %1268 = vmatpush1.bf16.msra.mxu0 %v630
        %1269 = vmatprep.subr.bf16.mxu0 %v762
        %1270 = vmatpush1.bf16.msra.mxu0 %v761
        %1271 = vmatprep.subr.bf16.mxu0 0
        %1272 = vmatpush1.bf16.msra.mxu0 0
        %1273 = vmatprep.subr.bf16.mxu0 0
        %1274 = vmatpush1.bf16.msra.mxu0 0
        %1275 = vmatprep.subr.bf16.mxu0 0
        %1276 = vmatpush1.bf16.msra.mxu0 0
        %1277 = vmatprep.subr.bf16.mxu0 0
        %1278 = vmatpush1.bf16.msra.mxu0 0
        %1279 = vmatprep.subr.bf16.mxu0 0
        %1280 = vmatpush1.bf16.msra.mxu0 0
        %1281 = vmatprep.subr.bf16.mxu0 0
        %1282 = vmatpush1.bf16.msra.mxu0 0
        %1283 = vmatprep.subr.bf16.mxu0 0
        %1284 = vmatpush1.bf16.msra.mxu0 0
        %1285 = vmatprep.subr.bf16.mxu0 0
        %1286 = vmatpush1.bf16.msra.mxu0 0
        %1287 = vmatprep.subr.bf16.mxu0 0
        %1288 = vmatpush1.bf16.msra.mxu0 0
        %1289 = vmatprep.subr.bf16.mxu0 0
        %1290 = vmatpush1.bf16.msra.mxu0 0
        %1291 = vmatprep.subr.bf16.mxu0 0
        %1292 = vmatpush1.bf16.msra.mxu0 0
        %1293 = vmatprep.subr.bf16.mxu0 0
        %1294 = vmatpush1.bf16.msra.mxu0 0
        %1295 = vmatprep.subr.bf16.mxu0 0
        %1296 = vmatpush1.bf16.msra.mxu0 0
        %1297 = vmatprep.mubr.bf16.mxu0 0
        %1298 = vmatmul.mubr.bf16.gmra.mrb[0].mxu0 %v812
        %v1299 = vpop.f32.mrb[0].mxu0
        %v1300 = vadd.f32 %v808, %v1299
        %v1301 = vpop.f32.mrb[0].mxu0
        %v1302 = vadd.f32 %v808, %v1301
        %v1303 = vpop.f32.mrb[0].mxu0
        %v1304 = vpop.f32.mrb[0].mxu0
        %1305 = vdwg.mxu0
        %1306 = vmatprep.subr.bf16.mxu0 %v497
        %1307 = vmatpush1.bf16.msra.mxu0 %v496
        %1308 = vmatprep.subr.bf16.mxu0 %v633
        %1309 = vmatpush1.bf16.msra.mxu0 %v632
        %1310 = vmatprep.subr.bf16.mxu0 %v764
        %1311 = vmatpush1.bf16.msra.mxu0 %v763
        %1312 = vmatprep.subr.bf16.mxu0 0
        %1313 = vmatpush1.bf16.msra.mxu0 0
        %1314 = vmatprep.subr.bf16.mxu0 0
        %1315 = vmatpush1.bf16.msra.mxu0 0
        %1316 = vmatprep.subr.bf16.mxu0 0
        %1317 = vmatpush1.bf16.msra.mxu0 0
        %1318 = vmatprep.subr.bf16.mxu0 0
        %1319 = vmatpush1.bf16.msra.mxu0 0
        %1320 = vmatprep.subr.bf16.mxu0 0
        %1321 = vmatpush1.bf16.msra.mxu0 0
        %1322 = vmatprep.subr.bf16.mxu0 0
        %1323 = vmatpush1.bf16.msra.mxu0 0
        %1324 = vmatprep.subr.bf16.mxu0 0
        %1325 = vmatpush1.bf16.msra.mxu0 0
        %1326 = vmatprep.subr.bf16.mxu0 0
        %1327 = vmatpush1.bf16.msra.mxu0 0
        %1328 = vmatprep.subr.bf16.mxu0 0
        %1329 = vmatpush1.bf16.msra.mxu0 0
        %1330 = vmatprep.subr.bf16.mxu0 0
        %1331 = vmatpush1.bf16.msra.mxu0 0
        %1332 = vmatprep.subr.bf16.mxu0 0
        %1333 = vmatpush1.bf16.msra.mxu0 0
        %1334 = vmatprep.subr.bf16.mxu0 0
        %1335 = vmatpush1.bf16.msra.mxu0 0
        %1336 = vmatprep.subr.bf16.mxu0 0
        %1337 = vmatpush1.bf16.msra.mxu0 0
        %1338 = vmatprep.mubr.bf16.mxu0 0
        %1339 = vmatmul.mubr.bf16.gmra.mrb[0].mxu0 %v812
        %v1340 = vpop.f32.mrb[0].mxu0
        %v1341 = vadd.f32 %v808, %v1340
        %v1342 = vpop.f32.mrb[0].mxu0
        %v1343 = vadd.f32 %v808, %v1342
        %v1344 = vpop.f32.mrb[0].mxu0
        %v1345 = vpop.f32.mrb[0].mxu0
        %1346 = vdwg.mxu0
        %1347 = vmatprep.subr.bf16.mxu0 %v499
        %1348 = vmatpush1.bf16.msra.mxu0 %v498
        %1349 = vmatprep.subr.bf16.mxu0 %v635
        %1350 = vmatpush1.bf16.msra.mxu0 %v634
        %1351 = vmatprep.subr.bf16.mxu0 %v766
        %1352 = vmatpush1.bf16.msra.mxu0 %v765
        %1353 = vmatprep.subr.bf16.mxu0 0
        %1354 = vmatpush1.bf16.msra.mxu0 0
        %1355 = vmatprep.subr.bf16.mxu0 0
        %1356 = vmatpush1.bf16.msra.mxu0 0
        %1357 = vmatprep.subr.bf16.mxu0 0
        %1358 = vmatpush1.bf16.msra.mxu0 0
        %1359 = vmatprep.subr.bf16.mxu0 0
        %1360 = vmatpush1.bf16.msra.mxu0 0
        %1361 = vmatprep.subr.bf16.mxu0 0
        %1362 = vmatpush1.bf16.msra.mxu0 0
        %1363 = vmatprep.subr.bf16.mxu0 0
        %1364 = vmatpush1.bf16.msra.mxu0 0
        %1365 = vmatprep.subr.bf16.mxu0 0
        %1366 = vmatpush1.bf16.msra.mxu0 0
        %1367 = vmatprep.subr.bf16.mxu0 0
        %1368 = vmatpush1.bf16.msra.mxu0 0
        %1369 = vmatprep.subr.bf16.mxu0 0
        %1370 = vmatpush1.bf16.msra.mxu0 0
        %1371 = vmatprep.subr.bf16.mxu0 0
        %1372 = vmatpush1.bf16.msra.mxu0 0
        %1373 = vmatprep.subr.bf16.mxu0 0
        %1374 = vmatpush1.bf16.msra.mxu0 0
        %1375 = vmatprep.subr.bf16.mxu0 0
        %1376 = vmatpush1.bf16.msra.mxu0 0
        %1377 = vmatprep.subr.bf16.mxu0 0
        %1378 = vmatpush1.bf16.msra.mxu0 0
        %1379 = vmatprep.mubr.bf16.mxu0 0
        %1380 = vmatmul.mubr.bf16.gmra.mrb[0].mxu0 %v812
        %v1381 = vpop.f32.mrb[0].mxu0
        %v1382 = vadd.f32 %v808, %v1381
        %v1383 = vpop.f32.mrb[0].mxu0
        %v1384 = vadd.f32 %v808, %v1383
        %v1385 = vpop.f32.mrb[0].mxu0
        %v1386 = vpop.f32.mrb[0].mxu0
        %1387 = vdwg.mxu0
        %1388 = vmatprep.subr.bf16.mxu0 %v501
        %1389 = vmatpush1.bf16.msra.mxu0 %v500
        %1390 = vmatprep.subr.bf16.mxu0 %v637
        %1391 = vmatpush1.bf16.msra.mxu0 %v636
        %1392 = vmatprep.subr.bf16.mxu0 %v768
        %1393 = vmatpush1.bf16.msra.mxu0 %v767
        %1394 = vmatprep.subr.bf16.mxu0 0
        %1395 = vmatpush1.bf16.msra.mxu0 0
        %1396 = vmatprep.subr.bf16.mxu0 0
        %1397 = vmatpush1.bf16.msra.mxu0 0
        %1398 = vmatprep.subr.bf16.mxu0 0
        %1399 = vmatpush1.bf16.msra.mxu0 0
        %1400 = vmatprep.subr.bf16.mxu0 0
        %1401 = vmatpush1.bf16.msra.mxu0 0
        %1402 = vmatprep.subr.bf16.mxu0 0
        %1403 = vmatpush1.bf16.msra.mxu0 0
        %1404 = vmatprep.subr.bf16.mxu0 0
        %1405 = vmatpush1.bf16.msra.mxu0 0
        %1406 = vmatprep.subr.bf16.mxu0 0
        %1407 = vmatpush1.bf16.msra.mxu0 0
        %1408 = vmatprep.subr.bf16.mxu0 0
        %1409 = vmatpush1.bf16.msra.mxu0 0
        %1410 = vmatprep.subr.bf16.mxu0 0
        %1411 = vmatpush1.bf16.msra.mxu0 0
        %1412 = vmatprep.subr.bf16.mxu0 0
        %1413 = vmatpush1.bf16.msra.mxu0 0
        %1414 = vmatprep.subr.bf16.mxu0 0
        %1415 = vmatpush1.bf16.msra.mxu0 0
        %1416 = vmatprep.subr.bf16.mxu0 0
        %1417 = vmatpush1.bf16.msra.mxu0 0
        %1418 = vmatprep.subr.bf16.mxu0 0
        %1419 = vmatpush1.bf16.msra.mxu0 0
        %1420 = vmatprep.mubr.bf16.mxu0 0
        %1421 = vmatmul.mubr.bf16.gmra.mrb[0].mxu0 %v812
        %v1422 = vpop.f32.mrb[0].mxu0
        %v1423 = vadd.f32 %v808, %v1422
        %v1424 = vpop.f32.mrb[0].mxu0
        %v1425 = vadd.f32 %v808, %v1424
        %v1426 = vpop.f32.mrb[0].mxu0
        %v1427 = vpop.f32.mrb[0].mxu0
        %1428 = vdwg.mxu0
        %1429 = vmatprep.subr.bf16.mxu0 %v503
        %1430 = vmatpush1.bf16.msra.mxu0 %v502
        %1431 = vmatprep.subr.bf16.mxu0 %v639
        %1432 = vmatpush1.bf16.msra.mxu0 %v638
        %1433 = vmatprep.subr.bf16.mxu0 %v770
        %1434 = vmatpush1.bf16.msra.mxu0 %v769
        %1435 = vmatprep.subr.bf16.mxu0 0
        %1436 = vmatpush1.bf16.msra.mxu0 0
        %1437 = vmatprep.subr.bf16.mxu0 0
        %1438 = vmatpush1.bf16.msra.mxu0 0
        %1439 = vmatprep.subr.bf16.mxu0 0
        %1440 = vmatpush1.bf16.msra.mxu0 0
        %1441 = vmatprep.subr.bf16.mxu0 0
        %1442 = vmatpush1.bf16.msra.mxu0 0
        %1443 = vmatprep.subr.bf16.mxu0 0
        %1444 = vmatpush1.bf16.msra.mxu0 0
        %1445 = vmatprep.subr.bf16.mxu0 0
        %1446 = vmatpush1.bf16.msra.mxu0 0
        %1447 = vmatprep.subr.bf16.mxu0 0
        %1448 = vmatpush1.bf16.msra.mxu0 0
        %1449 = vmatprep.subr.bf16.mxu0 0
        %1450 = vmatpush1.bf16.msra.mxu0 0
        %1451 = vmatprep.subr.bf16.mxu0 0
        %1452 = vmatpush1.bf16.msra.mxu0 0
        %1453 = vmatprep.subr.bf16.mxu0 0
        %1454 = vmatpush1.bf16.msra.mxu0 0
        %1455 = vmatprep.subr.bf16.mxu0 0
        %1456 = vmatpush1.bf16.msra.mxu0 0
        %1457 = vmatprep.subr.bf16.mxu0 0
        %1458 = vmatpush1.bf16.msra.mxu0 0
        %1459 = vmatprep.subr.bf16.mxu0 0
        %1460 = vmatpush1.bf16.msra.mxu0 0
        %1461 = vmatprep.mubr.bf16.mxu0 0
        %1462 = vmatmul.mubr.bf16.gmra.mrb[0].mxu0 %v812
        %v1463 = vpop.f32.mrb[0].mxu0
        %v1464 = vadd.f32 %v808, %v1463
        %v1465 = vpop.f32.mrb[0].mxu0
        %v1466 = vadd.f32 %v808, %v1465
        %v1467 = vpop.f32.mrb[0].mxu0
        %v1468 = vpop.f32.mrb[0].mxu0
        %1469 = vdwg.mxu0
        %v1470 = vmax.f32 %v849, 0.0
        %v1471 = vmax.f32 %v851, 0.0
        %v1472 = vmax.f32 %v890, 0.0
        %v1473 = vmax.f32 %v892, 0.0
        %v1474 = vmax.f32 %v931, 0.0
        %v1475 = vmax.f32 %v933, 0.0
        %v1476 = vmax.f32 %v972, 0.0
        %v1477 = vmax.f32 %v974, 0.0
        %v1478 = vmax.f32 %v1013, 0.0
        %v1479 = vmax.f32 %v1015, 0.0
        %v1480 = vmax.f32 %v1054, 0.0
        %v1481 = vmax.f32 %v1056, 0.0
        %v1482 = vmax.f32 %v1095, 0.0
        %v1483 = vmax.f32 %v1097, 0.0
        %v1484 = vmax.f32 %v1136, 0.0
        %v1485 = vmax.f32 %v1138, 0.0
        %v1486 = vmax.f32 %v1177, 0.0
        %v1487 = vmax.f32 %v1179, 0.0
        %v1488 = vmax.f32 %v1218, 0.0
        %v1489 = vmax.f32 %v1220, 0.0
        %v1490 = vmax.f32 %v1259, 0.0
        %v1491 = vmax.f32 %v1261, 0.0
        %v1492 = vmax.f32 %v1300, 0.0
        %v1493 = vmax.f32 %v1302, 0.0
        %v1494 = vmax.f32 %v1341, 0.0
        %v1495 = vmax.f32 %v1343, 0.0
        %v1496 = vmax.f32 %v1382, 0.0
        %v1497 = vmax.f32 %v1384, 0.0
        %v1498 = vmax.f32 %v1423, 0.0
        %v1499 = vmax.f32 %v1425, 0.0
        %v1500 = vmax.f32 %v1464, 0.0
        %v1501 = vmax.f32 %v1466, 0.0
        %v1502 = vpack.c.bf16 %v1470, %v1470
        %v1503 = vpack.c.bf16 %v1471, %v1471
        %v1504 = vpack.c.bf16 %v1472, %v1472
        %v1505 = vpack.c.bf16 %v1473, %v1473
        %v1506 = vpack.c.bf16 %v1474, %v1474
        %v1507 = vpack.c.bf16 %v1475, %v1475
        %v1508 = vpack.c.bf16 %v1476, %v1476
        %v1509 = vpack.c.bf16 %v1477, %v1477
        %v1510 = vpack.c.bf16 %v1478, %v1478
        %v1511 = vpack.c.bf16 %v1479, %v1479
        %v1512 = vpack.c.bf16 %v1480, %v1480
        %v1513 = vpack.c.bf16 %v1481, %v1481
        %v1514 = vpack.c.bf16 %v1482, %v1482
        %v1515 = vpack.c.bf16 %v1483, %v1483
        %v1516 = vpack.c.bf16 %v1484, %v1484
        %v1517 = vpack.c.bf16 %v1485, %v1485
        %v1518 = vpack.c.bf16 %v1486, %v1486
        %v1519 = vpack.c.bf16 %v1487, %v1487
        %v1520 = vpack.c.bf16 %v1488, %v1488
        %v1521 = vpack.c.bf16 %v1489, %v1489
        %v1522 = vpack.c.bf16 %v1490, %v1490
        %v1523 = vpack.c.bf16 %v1491, %v1491
        %v1524 = vpack.c.bf16 %v1492, %v1492
        %v1525 = vpack.c.bf16 %v1493, %v1493
        %v1526 = vpack.c.bf16 %v1494, %v1494
        %v1527 = vpack.c.bf16 %v1495, %v1495
        %v1528 = vpack.c.bf16 %v1496, %v1496
        %v1529 = vpack.c.bf16 %v1497, %v1497
        %v1530 = vpack.c.bf16 %v1498, %v1498
        %v1531 = vpack.c.bf16 %v1499, %v1499
        %v1532 = vpack.c.bf16 %v1500, %v1500
        %v1533 = vpack.c.bf16 %v1501, %v1501
        %v1566 = vunpack.c.l.b16 %v1502
        %v1567 = vunpack.c.l.b16 %v1503
        %v1568 = vunpack.c.l.b16 %v1504
        %v1569 = vunpack.c.l.b16 %v1505
        %v1570 = vunpack.c.l.b16 %v1506
        %v1571 = vunpack.c.l.b16 %v1507
        %v1572 = vunpack.c.l.b16 %v1508
        %v1573 = vunpack.c.l.b16 %v1509
        %v1574 = vunpack.c.l.b16 %v1510
        %v1575 = vunpack.c.l.b16 %v1511
        %v1576 = vunpack.c.l.b16 %v1512
        %v1577 = vunpack.c.l.b16 %v1513
        %v1578 = vunpack.c.l.b16 %v1514
        %v1579 = vunpack.c.l.b16 %v1515
        %v1580 = vunpack.c.l.b16 %v1516
        %v1581 = vunpack.c.l.b16 %v1517
        %v1582 = vunpack.c.l.b16 %v1518
        %v1583 = vunpack.c.l.b16 %v1519
        %v1584 = vunpack.c.l.b16 %v1520
        %v1585 = vunpack.c.l.b16 %v1521
        %v1586 = vunpack.c.l.b16 %v1522
        %v1587 = vunpack.c.l.b16 %v1523
        %v1588 = vunpack.c.l.b16 %v1524
        %v1589 = vunpack.c.l.b16 %v1525
        %v1590 = vunpack.c.l.b16 %v1526
        %v1591 = vunpack.c.l.b16 %v1527
        %v1592 = vunpack.c.l.b16 %v1528
        %v1593 = vunpack.c.l.b16 %v1529
        %v1594 = vunpack.c.l.b16 %v1530
        %v1595 = vunpack.c.l.b16 %v1531
        %v1596 = vunpack.c.l.b16 %v1532
        %v1597 = vunpack.c.l.b16 %v1533
        %v1598 = vpack.c.b16 %v1567, %v1566
        %v1599 = vpack.c.b16 %v1569, %v1568
        %v1600 = vpack.c.b16 %v1571, %v1570
        %v1601 = vpack.c.b16 %v1573, %v1572
        %v1602 = vpack.c.b16 %v1575, %v1574
        %v1603 = vpack.c.b16 %v1577, %v1576
        %v1604 = vpack.c.b16 %v1579, %v1578
        %v1605 = vpack.c.b16 %v1581, %v1580
        %v1606 = vpack.c.b16 %v1583, %v1582
        %v1607 = vpack.c.b16 %v1585, %v1584
        %v1608 = vpack.c.b16 %v1587, %v1586
        %v1609 = vpack.c.b16 %v1589, %v1588
        %v1610 = vpack.c.b16 %v1591, %v1590
        %v1611 = vpack.c.b16 %v1593, %v1592
        %v1612 = vpack.c.b16 %v1595, %v1594
        %v1613 = vpack.c.b16 %v1597, %v1596
        %1630 = vst [vmem:[%s332] sm:$0xff] %v1598
        %1631 = vst [vmem:[%s332 + $0x8] sm:$0xff] %v1599
        %1632 = vst [vmem:[%s332 + $0x10] sm:$0xff] %v1600
        %1633 = vst [vmem:[%s332 + $0x18] sm:$0xff] %v1601
        %1634 = vst [vmem:[%s332 + $0x20] sm:$0xff] %v1602
        %1635 = vst [vmem:[%s332 + $0x28] sm:$0xff] %v1603
        %1636 = vst [vmem:[%s332 + $0x30] sm:$0xff] %v1604
        %1637 = vst [vmem:[%s332 + $0x38] sm:$0xff] %v1605
        %1638 = vst [vmem:[%s332 + $0x40] sm:$0xff] %v1606
        %1639 = vst [vmem:[%s332 + $0x48] sm:$0xff] %v1607
        %1640 = vst [vmem:[%s332 + $0x50] sm:$0xff] %v1608
        %1641 = vst [vmem:[%s332 + $0x58] sm:$0xff] %v1609
        %1642 = vst [vmem:[%s332 + $0x60] sm:$0xff] %v1610
        %1643 = vst [vmem:[%s332 + $0x68] sm:$0xff] %v1611
        %1644 = vst [vmem:[%s332 + $0x70] sm:$0xff] %v1612
        %1645 = vst [vmem:[%s332 + $0x78] sm:$0xff] %v1613
        %s1646 = sand.u32 %s163, 1
        %s1647 = scalar_lea.sflag [#allocation4], %s1646
        %s1648 = sand.u32 %s163, 1
        %s1649 = smul.addr %s1648, 128
        %s1650 = scalar_lea.vmem [#allocation9], %s1649
        // Predicated region
        $region53: #{forward.3} parent=35 // pred_check
          %p1651 = pneg %p173
        $region54: #{forward.3} parent=35 // pred_check_branch
          %1653 = sbr.rel (%p1651) target = $region56
        $region55: #{forward.3} parent=35 // pred_region
          %s1654 = smul.u32 32, %s27
          %s1656 = ssub.s32 2048, 2048
          %1657 = vsyncadd %s1647, %s1656
          %s1658 = smul.addr %s26, 352
          %s1659 = sadd.s32 %s1654, %s1658
          %s1660 = smul.addr %s25, 352
          %s1661 = sadd.s32 %s1659, %s1660
          %s1662 = smul.addr %s1661, 64
          %s1663 = scalar_lea.hbm %s4, %s1662
          %s1665 = sshll.u32 %s1650, 4
          %s1666 = int_to_ptr.vmem [resolvable:$true] %s1665
          %1668 = dma.vmem_to_hbm [thread:$0]  %s1666, 2048, %s1663, %s1647
        $region56: #{forward.3} parent=35 // pred_fallthru
          _
      $region36: #{forward.3} parent=5 // pred_fallthru
        _
      %p1669 = scmp.le.s32.totalorder 2, %s15
      // Predicated region
      $region57: #{forward.3} parent=5 // pred_check
        %p1670 = pneg %p1669
      $region58: #{forward.3} parent=5 // pred_check_branch
        %1672 = sbr.rel (%p1670) target = $region60
      $region59: #{forward.3} parent=5 // pred_region
        %s1673 = ssub.s32 %s15, 2
        // Predicated region
        $region61: #{forward.3} parent=59 // pred_check
          %p1674 = pneg %p179
        $region62: #{forward.3} parent=59 // pred_check_branch
          %1676 = sbr.rel (%p1674) target = $region64
        $region63: #{forward.3} parent=59 // pred_region
          %s1677 = sand.u32 %s164, 1
          %s1678 = scalar_lea.sflag [#allocation4], %s1677
          %s1679 = sand.u32 %s164, 1
          %s1680 = smul.addr %s1679, 128
          %s1681 = scalar_lea.vmem [#allocation9], %s1680
          %1682 = dma.done %s1678, 2048
        $region64: #{forward.3} parent=59 // pred_fallthru
          _
      $region60: #{forward.3} parent=5 // pred_fallthru
        _
    $region6: #{forward.3} parent=1 // loop_footer
      %s19 = sadd.s32 1, %s15
    $region7: #{forward.3} parent=1 // loop_footer_branch
      %14 = sbr.rel target = $region3
    $region8: #{forward.3} parent=1 // loop_exit
      _
    %1683 = vsyncpa [#allocation3], 1
    %s1684 = scalar_lea.sflag [#allocation3], 1
    %1685 = vsyncpa %s1684, 1
    %1686 = vsyncpa [#allocation6], 1
    %1687 = vsyncpa [#allocation4], 1
    %s1688 = scalar_lea.sflag [#allocation4], 1
    %1689 = vsyncpa %s1688, 1

// kernel: forward.4
$region0: #{forward.4}
  #allocation0 [shape = 'u32[]', space=smem, size = 0x4, offset = 0x4, fixed_abs, tag = 'smem constant byte address 0x4 - core index']
  #allocation1 [shape = 'u32[144,128]{1,0:T(1,128)}', space=vmem, size = 0x12000, scoped, tag = 'internal scratch']
  %s0 = inlined_call_operand.hbm [shape: bf16[16,216], index: 0, kind: input, shape index: {}]
  %s1 = inlined_call_operand.hbm [shape: f32[16,1], index: 1, kind: input, shape index: {}]
  %s2 = inlined_call_operand.hbm [shape: bf16[2,72,1536], index: 2, kind: input, shape index: {}, may-alias: {2,3}]
  %s3 = inlined_call_operand.hbm [shape: bf16[2,72,1536], index: 3, kind: input, shape index: {}, may-alias: {2,3}]
  %s4 = inlined_call_operand.hbm [shape: bf16[2,16,1408], index: 4, kind: output, shape index: {}]
  %s5 = sld [smem:[#allocation0]]
  $region65: #{forward.4} parent=0
    _
  %s7 = ssub.s32 1, %s5
  %s8 = scalar_select 0, %s7, %s5
  $region1: #{forward.4} parent=0
    #allocation2 [shape = 'u8[8192]{0}', space=vmem, size = 0x2000, scoped, tag = 'input window, operand 0, single buffered']
    #allocation3 [shape = 's32[2]{0}', space=sflag, size = 0x8, scoped, tag = 'scoped memory for forward.4']
    #allocation4 [shape = 's32[2]{0}', space=sflag, size = 0x8, scoped, tag = 'scoped memory for forward.4']
    #allocation5 [shape = 'u8[8192]{0}', space=vmem, size = 0x2000, scoped, tag = 'input window, operand 1, single buffered']
    #allocation6 [shape = 's32[1]{0}', space=sflag, size = 0x4, scoped, tag = 'scoped memory for forward.4']
    #allocation7 [shape = 'u8[405504]{0}', space=vmem, size = 0x63000, scoped, tag = 'input window, operand 2']
    #allocation8 [shape = 'u8[36864]{0}', space=vmem, size = 0x9000, scoped, tag = 'input window, operand 3']
    #allocation9 [shape = 'u8[90112]{0}', space=vmem, size = 0x16000, scoped, tag = 'output window, operand 0']
    %9 = vsyncpa [#allocation3], 0
    %10 = vsyncpa [#allocation6], 0
    %11 = vsyncpa [#allocation4], 0
    %s12 = scalar_lea.sflag [#allocation4], 1
    %13 = vsyncpa %s12, 0
    loop: start=0, step=1, limit=4
    $region2: #{forward.4} parent=1 // loop_pre_header
      _
    $region3: #{forward.4} parent=1 // loop_header
      %s15 = sphi 0, %s19
      %p16 = scmp.ge.s32.totalorder %s15, 4
      %s22 = sphi 0, %s41
      %s23 = sphi 0, %s37
      %s24 = sphi 0, %s33
      %s25 = sphi 0, %s22
      %s26 = sphi 0, %s23
      %s27 = sphi 0, %s24
      %s28 = sphi 0, %s25
      %s29 = sphi 0, %s26
      %s30 = sphi 0, %s27
      %s44 = sphi 0, %s46
      %s47 = sphi 0, %s44
      %s48 = sphi 0, %s47
      %s64 = sphi 0, %s48
      %s70 = sphi 0, %s72
      %s73 = sphi 0, %s70
      %s74 = sphi 0, %s73
      %s90 = sphi 0, %s74
      %s98 = sphi 0, %s100
      %s101 = sphi 0, %s98
      %s102 = sphi 0, %s101
      %s118 = sphi 0, %s102
      %s130 = sphi 0, %s132
      %s133 = sphi 0, %s130
      %s134 = sphi 0, %s133
      %s150 = sphi 0, %s134
      %s160 = sphi 0, %s162
      %s163 = sphi 0, %s160
      %s164 = sphi 0, %s163
      %s180 = sphi 0, %s164
    $region4: #{forward.4} parent=1 // loop_header_branch
      %18 = sbr.rel (%p16) target = $region8
    $region5: #{forward.4} parent=1 // loop_body
      %s20 = ssub.s32 %s15, 1
      %s21 = ssub.s32 %s15, 2
      %s31 = sadd.s32 1, %s24
      %p32 = scmp.ge.s32.totalorder %s31, 1
      %s33 = scalar_select %p32, 0, %s31
      %s34 = sadd.s32 1, %s23
      %s35 = scalar_select %p32, %s34, %s23
      %p36 = scmp.ge.s32.totalorder %s35, 1
      %s37 = scalar_select %p36, 0, %s35
      %s38 = sadd.s32 1, %s22
      %s39 = scalar_select %p36, %s38, %s22
      %p40 = scmp.ge.s32.totalorder %s39, 2
      %s41 = scalar_select %p40, 0, %s39
      %s42 = ssub.s32 %s23, %s37
      %p43 = scmp.eq.s32.totalorder %s42, 0
      %s45 = sadd.s32 %s44, 1
      %s46 = scalar_select %p43, %s44, %s45
      %p49 = pneg %p43
      %p50 = scmp.eq.s32.totalorder %s15, 1
      %p51 = por %p49, %p50
      %p52 = scmp.ne.s32.totalorder %s44, %s47
      %p53 = scmp.eq.s32.totalorder %s15, 0
      %p54 = por %p52, %p53
      %p55 = scmp.ne.s32.totalorder %s44, %s47
      %p56 = scmp.eq.s32.totalorder %s20, 1
      %p57 = por %p55, %p56
      %p58 = scmp.ne.s32.totalorder %s47, %s48
      %p59 = scmp.eq.s32.totalorder %s20, 0
      %p60 = por %p58, %p59
      %p61 = scmp.ne.s32.totalorder %s47, %s48
      %p62 = scmp.eq.s32.totalorder %s21, 1
      %p63 = por %p61, %p62
      %p65 = scmp.ne.s32.totalorder %s48, %s64
      %p66 = scmp.eq.s32.totalorder %s21, 0
      %p67 = por %p65, %p66
      %s68 = ssub.s32 %s23, %s37
      %p69 = scmp.eq.s32.totalorder %s68, 0
      %s71 = sadd.s32 %s70, 1
      %s72 = scalar_select %p69, %s70, %s71
      %p75 = pneg %p69
      %p76 = scmp.eq.s32.totalorder %s15, 1
      %p77 = por %p75, %p76
      %p78 = scmp.ne.s32.totalorder %s70, %s73
      %p79 = scmp.eq.s32.totalorder %s15, 0
      %p80 = por %p78, %p79
      %p81 = scmp.ne.s32.totalorder %s70, %s73
      %p82 = scmp.eq.s32.totalorder %s20, 1
      %p83 = por %p81, %p82
      %p84 = scmp.ne.s32.totalorder %s73, %s74
      %p85 = scmp.eq.s32.totalorder %s20, 0
      %p86 = por %p84, %p85
      %p87 = scmp.ne.s32.totalorder %s73, %s74
      %p88 = scmp.eq.s32.totalorder %s21, 1
      %p89 = por %p87, %p88
      %p91 = scmp.ne.s32.totalorder %s74, %s90
      %p92 = scmp.eq.s32.totalorder %s21, 0
      %p93 = por %p91, %p92
      %s94 = ssub.s32 %s22, %s41
      %s95 = ssub.s32 %s24, %s33
      %s96 = sor.u32 %s94, %s95
      %p97 = scmp.eq.s32.totalorder %s96, 0
      %s99 = sadd.s32 %s98, 1
      %s100 = scalar_select %p97, %s98, %s99
      %p103 = pneg %p97
      %p104 = scmp.eq.s32.totalorder %s15, 1
      %p105 = por %p103, %p104
      %p106 = scmp.ne.s32.totalorder %s98, %s101
      %p107 = scmp.eq.s32.totalorder %s15, 0
      %p108 = por %p106, %p107
      %p109 = scmp.ne.s32.totalorder %s98, %s101
      %p110 = scmp.eq.s32.totalorder %s20, 1
      %p111 = por %p109, %p110
      %p112 = scmp.ne.s32.totalorder %s101, %s102
      %p113 = scmp.eq.s32.totalorder %s20, 0
      %p114 = por %p112, %p113
      %p115 = scmp.ne.s32.totalorder %s101, %s102
      %p116 = scmp.eq.s32.totalorder %s21, 1
      %p117 = por %p115, %p116
      %p119 = scmp.ne.s32.totalorder %s102, %s118
      %p120 = scmp.eq.s32.totalorder %s21, 0
      %p121 = por %p119, %p120
      %s122 = sadd.s32 %s24, 1
      %s123 = smul.u32 %s122, 11
      %s124 = sadd.s32 %s33, 1
      %s125 = smul.u32 %s124, 11
      %s126 = ssub.s32 %s22, %s41
      %s127 = ssub.s32 %s123, %s125
      %s128 = sor.u32 %s126, %s127
      %p129 = scmp.eq.s32.totalorder %s128, 0
      %s131 = sadd.s32 %s130, 1
      %s132 = scalar_select %p129, %s130, %s131
      %p135 = pneg %p129
      %p136 = scmp.eq.s32.totalorder %s15, 1
      %p137 = por %p135, %p136
      %p138 = scmp.ne.s32.totalorder %s130, %s133
      %p139 = scmp.eq.s32.totalorder %s15, 0
      %p140 = por %p138, %p139
      %p141 = scmp.ne.s32.totalorder %s130, %s133
      %p142 = scmp.eq.s32.totalorder %s20, 1
      %p143 = por %p141, %p142
      %p144 = scmp.ne.s32.totalorder %s133, %s134
      %p145 = scmp.eq.s32.totalorder %s20, 0
      %p146 = por %p144, %p145
      %p147 = scmp.ne.s32.totalorder %s133, %s134
      %p148 = scmp.eq.s32.totalorder %s21, 1
      %p149 = por %p147, %p148
      %p151 = scmp.ne.s32.totalorder %s134, %s150
      %p152 = scmp.eq.s32.totalorder %s21, 0
      %p153 = por %p151, %p152
      %s154 = ssub.s32 %s22, %s41
      %s155 = ssub.s32 %s23, %s37
      %s156 = sor.u32 %s154, %s155
      %s157 = ssub.s32 %s24, %s33
      %s158 = sor.u32 %s156, %s157
      %p159 = scmp.eq.s32.totalorder %s158, 0
      %s161 = sadd.s32 %s160, 1
      %s162 = scalar_select %p159, %s160, %s161
      %p165 = pneg %p159
      %p166 = scmp.eq.s32.totalorder %s15, 1
      %p167 = por %p165, %p166
      %p168 = scmp.ne.s32.totalorder %s160, %s163
      %p169 = scmp.eq.s32.totalorder %s15, 0
      %p170 = por %p168, %p169
      %p171 = scmp.ne.s32.totalorder %s160, %s163
      %p172 = scmp.eq.s32.totalorder %s20, 1
      %p173 = por %p171, %p172
      %p174 = scmp.ne.s32.totalorder %s163, %s164
      %p175 = scmp.eq.s32.totalorder %s20, 0
      %p176 = por %p174, %p175
      %p177 = scmp.ne.s32.totalorder %s163, %s164
      %p178 = scmp.eq.s32.totalorder %s21, 1
      %p179 = por %p177, %p178
      %p181 = scmp.ne.s32.totalorder %s164, %s180
      %p182 = scmp.eq.s32.totalorder %s21, 0
      %p183 = por %p181, %p182
      %p184 = scmp.le.s32.totalorder 1, %s15
      %p185 = scmp.lt.s32.totalorder %s15, 3
      %p186 = pnand %p184, %p185
      %p187 = pneg %p186
      // Predicated region
      $region9: #{forward.4} parent=5 // pred_check
        _
      $region10: #{forward.4} parent=5 // pred_check_branch
        %189 = sbr.rel (%p186) target = $region12
      $region11: #{forward.4} parent=5 // pred_region
        %s190 = ssub.s32 %s15, 1
        // Predicated region
        $region13: #{forward.4} parent=11 // pred_check
          %p191 = pneg %p60
        $region14: #{forward.4} parent=11 // pred_check_branch
          %193 = sbr.rel (%p191) target = $region16
        $region15: #{forward.4} parent=11 // pred_region
          %s194 = smul.u32 2, %s26
          %s196 = ssub.s32 256, 256
          %197 = vsyncadd [#allocation3], %s196
          %s198 = smul.addr %s194, 2
          %s199 = smul.addr %s198, 64
          %s200 = scalar_lea.hbm %s0, %s199
          %s201 = sshll.u32 [#allocation2], 4
          %s202 = int_to_ptr.vmem [resolvable:$true] %s201
          %207 = dma.hbm_to_vmem [thread:$0]  %s200, 256, %s202, [#allocation3], 128, 128, 8
        $region16: #{forward.4} parent=11 // pred_fallthru
          _
        // Predicated region
        $region17: #{forward.4} parent=11 // pred_check
          %p208 = pneg %p86
        $region18: #{forward.4} parent=11 // pred_check_branch
          %210 = sbr.rel (%p208) target = $region20
        $region19: #{forward.4} parent=11 // pred_region
          %s211 = smul.u32 2, %s26
          %s213 = ssub.s32 256, 256
          %214 = vsyncadd [#allocation6], %s213
          %s215 = smul.addr %s211, 128
          %s216 = scalar_lea.hbm %s1, %s215
          %s217 = sshll.u32 [#allocation5], 4
          %s218 = int_to_ptr.vmem [resolvable:$true] %s217
          %223 = dma.hbm_to_vmem [thread:$0]  %s216, 256, %s218, [#allocation6], 128, 128, 8
        $region20: #{forward.4} parent=11 // pred_fallthru
          _
      $region12: #{forward.4} parent=5 // pred_fallthru
        _
      %p224 = scmp.lt.s32.totalorder %s15, 2
      // Predicated region
      $region21: #{forward.4} parent=5 // pred_check
        %p225 = pneg %p224
      $region22: #{forward.4} parent=5 // pred_check_branch
        %227 = sbr.rel (%p225) target = $region24
      $region23: #{forward.4} parent=5 // pred_region
        // Predicated region
        $region25: #{forward.4} parent=23 // pred_check
          %p228 = pneg %p108
        $region26: #{forward.4} parent=23 // pred_check_branch
          %230 = sbr.rel (%p228) target = $region28
        $region27: #{forward.4} parent=23 // pred_region
          %s231 = sand.u32 %s15, 1
          %s232 = scalar_lea.sflag [#allocation3], %s231
          %s233 = sand.u32 %s98, 1
          %s234 = smul.addr %s233, 396
          %s235 = scalar_lea.vmem [#allocation7], %s234
          %s236 = smul.u32 11, %s24
          %s237 = ssub.s32 12, %s236
          %p238 = scmp.lt.s32.totalorder %s237, 11
          %s239 = scalar_select %p238, %s237, 11
          %s240 = smul.u32 576, %s239
          %s242 = ssub.s32 6336, %s240
          %243 = vsyncadd %s232, %s242
          %p244 = scmp.ne.s32.totalorder 0, %s240
          %s245 = smul.addr %s22, 108
          %s246 = sadd.s32 %s236, %s245
          %s247 = smul.addr %s246, 64
          %s248 = scalar_lea.hbm %s2, %s247
          %s249 = smul.u32 %s239, 4
          %s250 = smul.u32 %s249, 9
          %s251 = sshll.u32 %s235, 4
          %s252 = int_to_ptr.vmem [resolvable:$true] %s251
          %s253 = sshll.u32 %s250, 4
          %257 = dma.hbm_to_vmem [thread:$0]  (%p244), %s248, %s253, %s252, %s232, 768, 704, %s249
        $region28: #{forward.4} parent=23 // pred_fallthru
          _
        // Predicated region
        $region29: #{forward.4} parent=23 // pred_check
          %p258 = pneg %p140
        $region30: #{forward.4} parent=23 // pred_check_branch
          %260 = sbr.rel (%p258) target = $region32
        $region31: #{forward.4} parent=23 // pred_region
          %s261 = sand.u32 %s15, 1
          %s262 = scalar_lea.sflag [#allocation3], %s261
          %s263 = sand.u32 %s130, 1
          %s264 = smul.addr %s263, 36
          %s265 = scalar_lea.vmem [#allocation8], %s264
          %s266 = sadd.s32 %s24, 1
          %s267 = smul.u32 %s266, 11
          %s269 = ssub.s32 576, 576
          %270 = vsyncadd %s262, %s269
          %s271 = smul.addr %s22, 108
          %s272 = sadd.s32 %s267, %s271
          %s273 = smul.addr %s272, 64
          %s274 = scalar_lea.hbm %s3, %s273
          %s275 = sshll.u32 %s265, 4
          %s276 = int_to_ptr.vmem [resolvable:$true] %s275
          %281 = dma.hbm_to_vmem [thread:$0]  %s274, 576, %s276, %s262, 768, 64, 4
        $region32: #{forward.4} parent=23 // pred_fallthru
          _
      $region24: #{forward.4} parent=5 // pred_fallthru
        _
      %p282 = scmp.le.s32.totalorder 1, %s15
      %p283 = scmp.lt.s32.totalorder %s15, 3
      %p284 = pnand %p282, %p283
      %p285 = pneg %p284
      // Predicated region
      $region33: #{forward.4} parent=5 // pred_check
        _
      $region34: #{forward.4} parent=5 // pred_check_branch
        %287 = sbr.rel (%p284) target = $region36
      $region35: #{forward.4} parent=5 // pred_region
        %s288 = ssub.s32 %s15, 1
        // Predicated region
        $region37: #{forward.4} parent=35 // pred_check
          %p289 = pneg %p60
        $region38: #{forward.4} parent=35 // pred_check_branch
          %291 = sbr.rel (%p289) target = $region40
        $region39: #{forward.4} parent=35 // pred_region
          %292 = dma.done [#allocation3], 256
        $region40: #{forward.4} parent=35 // pred_fallthru
          _
        // Predicated region
        $region41: #{forward.4} parent=35 // pred_check
          %p293 = pneg %p86
        $region42: #{forward.4} parent=35 // pred_check_branch
          %295 = sbr.rel (%p293) target = $region44
        $region43: #{forward.4} parent=35 // pred_region
          %296 = dma.done [#allocation6], 256
        $region44: #{forward.4} parent=35 // pred_fallthru
          _
        %s297 = sand.u32 %s20, 1
        %s298 = scalar_lea.sflag [#allocation3], %s297
        %s299 = sand.u32 %s101, 1
        %s300 = smul.addr %s299, 396
        %s301 = scalar_lea.vmem [#allocation7], %s300
        // Predicated region
        $region45: #{forward.4} parent=35 // pred_check
          %p302 = pneg %p114
        $region46: #{forward.4} parent=35 // pred_check_branch
          %304 = sbr.rel (%p302) target = $region48
        $region47: #{forward.4} parent=35 // pred_region
          %305 = dma.done %s298, 6336
        $region48: #{forward.4} parent=35 // pred_fallthru
          _
        %s306 = sand.u32 %s20, 1
        %s307 = scalar_lea.sflag [#allocation3], %s306
        %s308 = sand.u32 %s133, 1
        %s309 = smul.addr %s308, 36
        %s310 = scalar_lea.vmem [#allocation8], %s309
        // Predicated region
        $region49: #{forward.4} parent=35 // pred_check
          %p311 = pneg %p146
        $region50: #{forward.4} parent=35 // pred_check_branch
          %313 = sbr.rel (%p311) target = $region52
        $region51: #{forward.4} parent=35 // pred_region
          %314 = dma.done %s307, 576
        $region52: #{forward.4} parent=35 // pred_fallthru
          _
        %p315 = pneg %p60
        %p316 = pneg %p57
        %p317 = pneg %p86
        %p318 = pneg %p83
        %s319 = sand.u32 %s20, 1
        %s320 = scalar_lea.sflag [#allocation3], %s319
        %s321 = sand.u32 %s101, 1
        %s322 = smul.addr %s321, 396
        %s323 = scalar_lea.vmem [#allocation7], %s322
        %p324 = pneg %p114
        %p325 = pneg %p111
        %s326 = sand.u32 %s20, 1
        %s327 = scalar_lea.sflag [#allocation3], %s326
        %s328 = sand.u32 %s133, 1
        %s329 = smul.addr %s328, 36
        %s330 = scalar_lea.vmem [#allocation8], %s329
        %p331 = pneg %p146
        %p332 = pneg %p143
        %p333 = pneg %p176
        %p334 = pneg %p173
        %s335 = sand.u32 %s163, 1
        %s336 = scalar_lea.sflag [#allocation4], %s335
        %s337 = sand.u32 %s163, 1
        %s338 = smul.addr %s337, 88
        %s339 = scalar_lea.vmem [#allocation9], %s338
        %s340 = smul.u32 2, %s26
        %s341 = smul.u32 2, %s26
        %s342 = smul.u32 11, %s27
        %s343 = ssub.s32 12, %s342
        %p344 = scmp.lt.s32.totalorder %s343, 11
        %s345 = scalar_select %p344, %s343, 11
        %s346 = smul.u32 576, %s345
        %s347 = sadd.s32 %s27, 1
        %s348 = smul.u32 %s347, 11
        %s349 = smul.u32 2, %s26
        %s350 = smul.u32 11, %s27
        %v352 = vld [vmem:[%s301] sm:$0xff]
        %v353 = vld [vmem:[%s301 + $0x8] sm:$0xff]
        %v354 = vld [vmem:[%s301 + $0x10] sm:$0xff]
        %v355 = vld [vmem:[%s301 + $0x18] sm:$0xff]
        %v356 = vld [vmem:[%s301 + $0x20] sm:$0xff]
        %v357 = vld [vmem:[%s301 + $0x28] sm:$0xf]
        %v358 = vld [vmem:[%s301 + $0x2c] sm:$0xff]
        %v359 = vld [vmem:[%s301 + $0x34] sm:$0xff]
        %v360 = vld [vmem:[%s301 + $0x3c] sm:$0xff]
        %v361 = vld [vmem:[%s301 + $0x44] sm:$0xff]
        %v362 = vld [vmem:[%s301 + $0x4c] sm:$0xff]
        %v363 = vld [vmem:[%s301 + $0x54] sm:$0xf]
        %v364 = vld [vmem:[%s301 + $0x58] sm:$0xff]
        %v365 = vld [vmem:[%s301 + $0x60] sm:$0xff]
        %v366 = vld [vmem:[%s301 + $0x68] sm:$0xff]
        %v367 = vld [vmem:[%s301 + $0x70] sm:$0xff]
        %v368 = vld [vmem:[%s301 + $0x78] sm:$0xff]
        %v369 = vld [vmem:[%s301 + $0x80] sm:$0xf]
        %v370 = vld [vmem:[%s301 + $0x84] sm:$0xff]
        %v371 = vld [vmem:[%s301 + $0x8c] sm:$0xff]
        %v372 = vld [vmem:[%s301 + $0x94] sm:$0xff]
        %v373 = vld [vmem:[%s301 + $0x9c] sm:$0xff]
        %v374 = vld [vmem:[%s301 + $0xa4] sm:$0xff]
        %v375 = vld [vmem:[%s301 + $0xac] sm:$0xf]
        %v376 = vld [vmem:[%s301 + $0xb0] sm:$0xff]
        %v377 = vld [vmem:[%s301 + $0xb8] sm:$0xff]
        %v378 = vld [vmem:[%s301 + $0xc0] sm:$0xff]
        %v379 = vld [vmem:[%s301 + $0xc8] sm:$0xff]
        %v380 = vld [vmem:[%s301 + $0xd0] sm:$0xff]
        %v381 = vld [vmem:[%s301 + $0xd8] sm:$0xf]
        %v382 = vld [vmem:[%s301 + $0xdc] sm:$0xff]
        %v383 = vld [vmem:[%s301 + $0xe4] sm:$0xff]
        %v384 = vld [vmem:[%s301 + $0xec] sm:$0xff]
        %v385 = vld [vmem:[%s301 + $0xf4] sm:$0xff]
        %v386 = vld [vmem:[%s301 + $0xfc] sm:$0xff]
        %v387 = vld [vmem:[%s301 + $0x104] sm:$0xf]
        %v388 = vld [vmem:[%s301 + $0x108] sm:$0xff]
        %v389 = vld [vmem:[%s301 + $0x110] sm:$0xff]
        %v390 = vld [vmem:[%s301 + $0x118] sm:$0xff]
        %v391 = vld [vmem:[%s301 + $0x120] sm:$0xff]
        %v392 = vld [vmem:[%s301 + $0x128] sm:$0xff]
        %v393 = vld [vmem:[%s301 + $0x130] sm:$0xf]
        %v394 = vld [vmem:[%s301 + $0x134] sm:$0xff]
        %v395 = vld [vmem:[%s301 + $0x13c] sm:$0xff]
        %v396 = vld [vmem:[%s301 + $0x144] sm:$0xff]
        %v397 = vld [vmem:[%s301 + $0x14c] sm:$0xff]
        %v398 = vld [vmem:[%s301 + $0x154] sm:$0xff]
        %v399 = vld [vmem:[%s301 + $0x15c] sm:$0xf]
        %v400 = vld [vmem:[%s301 + $0x160] sm:$0xff]
        %v401 = vld [vmem:[%s301 + $0x168] sm:$0xff]
        %v402 = vld [vmem:[%s301 + $0x170] sm:$0xff]
        %v403 = vld [vmem:[%s301 + $0x178] sm:$0xff]
        %v404 = vld [vmem:[%s301 + $0x180] sm:$0xff]
        %v405 = vld [vmem:[%s301 + $0x188] sm:$0xf]
        %v406 = vld [vmem:[%s310] sm:$0xf]
        %v407 = vld [vmem:[%s310 + $0x4] sm:$0xf]
        %v408 = vld [vmem:[%s310 + $0x8] sm:$0xf]
        %v409 = vld [vmem:[%s310 + $0xc] sm:$0xf]
        %v410 = vld [vmem:[%s310 + $0x10] sm:$0xf]
        %v411 = vld [vmem:[%s310 + $0x14] sm:$0xf]
        %v412 = vld [vmem:[%s310 + $0x18] sm:$0xf]
        %v413 = vld [vmem:[%s310 + $0x1c] sm:$0xf]
        %v414 = vld [vmem:[%s310 + $0x20] sm:$0xf]
        %v469 = vunpack.c.l.b16 %v352
        %v470 = vunpack.c.h.b16 %v352
        %v471 = vunpack.c.l.b16 %v353
        %v472 = vunpack.c.h.b16 %v353
        %v473 = vunpack.c.l.b16 %v354
        %v474 = vunpack.c.h.b16 %v354
        %v475 = vunpack.c.l.b16 %v355
        %v476 = vunpack.c.h.b16 %v355
        %v477 = vunpack.c.l.b16 %v356
        %v478 = vunpack.c.h.b16 %v356
        %v479 = vunpack.c.l.b16 %v357
        %v480 = vunpack.c.l.b16 %v358
        %v481 = vunpack.c.h.b16 %v358
        %v482 = vunpack.c.l.b16 %v359
        %v483 = vunpack.c.h.b16 %v359
        %v484 = vunpack.c.l.b16 %v360
        %v485 = vunpack.c.h.b16 %v360
        %v486 = vunpack.c.l.b16 %v361
        %v487 = vunpack.c.h.b16 %v361
        %v488 = vunpack.c.l.b16 %v362
        %v489 = vunpack.c.h.b16 %v362
        %v490 = vunpack.c.l.b16 %v363
        %v491 = vunpack.c.l.b16 %v364
        %v492 = vunpack.c.h.b16 %v364
        %v493 = vunpack.c.l.b16 %v365
        %v494 = vunpack.c.h.b16 %v365
        %v495 = vunpack.c.l.b16 %v366
        %v496 = vunpack.c.h.b16 %v366
        %v497 = vunpack.c.l.b16 %v367
        %v498 = vunpack.c.h.b16 %v367
        %v499 = vunpack.c.l.b16 %v368
        %v500 = vunpack.c.h.b16 %v368
        %v501 = vunpack.c.l.b16 %v369
        %v502 = vunpack.c.l.b16 %v370
        %v503 = vunpack.c.h.b16 %v370
        %v504 = vunpack.c.l.b16 %v371
        %v505 = vunpack.c.h.b16 %v371
        %v506 = vunpack.c.l.b16 %v372
        %v507 = vunpack.c.h.b16 %v372
        %v508 = vunpack.c.l.b16 %v373
        %v509 = vunpack.c.h.b16 %v373
        %v510 = vunpack.c.l.b16 %v374
        %v511 = vunpack.c.h.b16 %v374
        %v512 = vunpack.c.l.b16 %v375
        %v513 = vunpack.c.l.b16 %v376
        %v514 = vunpack.c.h.b16 %v376
        %v515 = vunpack.c.l.b16 %v377
        %v516 = vunpack.c.h.b16 %v377
        %v517 = vunpack.c.l.b16 %v378
        %v518 = vunpack.c.h.b16 %v378
        %v519 = vunpack.c.l.b16 %v379
        %v520 = vunpack.c.h.b16 %v379
        %v521 = vunpack.c.l.b16 %v380
        %v522 = vunpack.c.h.b16 %v380
        %v523 = vunpack.c.l.b16 %v381
        %v524 = vunpack.c.l.b16 %v382
        %v525 = vunpack.c.h.b16 %v382
        %v526 = vunpack.c.l.b16 %v383
        %v527 = vunpack.c.h.b16 %v383
        %v528 = vunpack.c.l.b16 %v384
        %v529 = vunpack.c.h.b16 %v384
        %v530 = vunpack.c.l.b16 %v385
        %v531 = vunpack.c.h.b16 %v385
        %v532 = vunpack.c.l.b16 %v386
        %v533 = vunpack.c.h.b16 %v386
        %v534 = vunpack.c.l.b16 %v387
        %v535 = vunpack.c.l.b16 %v388
        %v536 = vunpack.c.h.b16 %v388
        %v537 = vunpack.c.l.b16 %v389
        %v538 = vunpack.c.h.b16 %v389
        %v539 = vunpack.c.l.b16 %v390
        %v540 = vunpack.c.h.b16 %v390
        %v541 = vunpack.c.l.b16 %v391
        %v542 = vunpack.c.h.b16 %v391
        %v543 = vunpack.c.l.b16 %v392
        %v544 = vunpack.c.h.b16 %v392
        %v545 = vunpack.c.l.b16 %v393
        %v546 = vunpack.c.l.b16 %v394
        %v547 = vunpack.c.h.b16 %v394
        %v548 = vunpack.c.l.b16 %v395
        %v549 = vunpack.c.h.b16 %v395
        %v550 = vunpack.c.l.b16 %v396
        %v551 = vunpack.c.h.b16 %v396
        %v552 = vunpack.c.l.b16 %v397
        %v553 = vunpack.c.h.b16 %v397
        %v554 = vunpack.c.l.b16 %v398
        %v555 = vunpack.c.h.b16 %v398
        %v556 = vunpack.c.l.b16 %v399
        %v557 = vunpack.c.l.b16 %v400
        %v558 = vunpack.c.h.b16 %v400
        %v559 = vunpack.c.l.b16 %v401
        %v560 = vunpack.c.h.b16 %v401
        %v561 = vunpack.c.l.b16 %v402
        %v562 = vunpack.c.h.b16 %v402
        %v563 = vunpack.c.l.b16 %v403
        %v564 = vunpack.c.h.b16 %v403
        %v565 = vunpack.c.l.b16 %v404
        %v566 = vunpack.c.h.b16 %v404
        %v567 = vunpack.c.l.b16 %v405
        %v568 = vpack.c.b16 %v480, %v469
        %v569 = vpack.c.b16 %v481, %v470
        %v570 = vpack.c.b16 %v482, %v471
        %v571 = vpack.c.b16 %v483, %v472
        %v572 = vpack.c.b16 %v484, %v473
        %v573 = vpack.c.b16 %v485, %v474
        %v574 = vpack.c.b16 %v486, %v475
        %v575 = vpack.c.b16 %v487, %v476
        %v576 = vpack.c.b16 %v488, %v477
        %v577 = vpack.c.b16 %v489, %v478
        %v578 = vpack.c.b16 %v490, %v479
        %v579 = vpack.c.b16 %v502, %v491
        %v580 = vpack.c.b16 %v503, %v492
        %v581 = vpack.c.b16 %v504, %v493
        %v582 = vpack.c.b16 %v505, %v494
        %v583 = vpack.c.b16 %v506, %v495
        %v584 = vpack.c.b16 %v507, %v496
        %v585 = vpack.c.b16 %v508, %v497
        %v586 = vpack.c.b16 %v509, %v498
        %v587 = vpack.c.b16 %v510, %v499
        %v588 = vpack.c.b16 %v511, %v500
        %v589 = vpack.c.b16 %v512, %v501
        %v590 = vpack.c.b16 %v524, %v513
        %v591 = vpack.c.b16 %v525, %v514
        %v592 = vpack.c.b16 %v526, %v515
        %v593 = vpack.c.b16 %v527, %v516
        %v594 = vpack.c.b16 %v528, %v517
        %v595 = vpack.c.b16 %v529, %v518
        %v596 = vpack.c.b16 %v530, %v519
        %v597 = vpack.c.b16 %v531, %v520
        %v598 = vpack.c.b16 %v532, %v521
        %v599 = vpack.c.b16 %v533, %v522
        %v600 = vpack.c.b16 %v534, %v523
        %v601 = vpack.c.b16 %v546, %v535
        %v602 = vpack.c.b16 %v547, %v536
        %v603 = vpack.c.b16 %v548, %v537
        %v604 = vpack.c.b16 %v549, %v538
        %v605 = vpack.c.b16 %v550, %v539
        %v606 = vpack.c.b16 %v551, %v540
        %v607 = vpack.c.b16 %v552, %v541
        %v608 = vpack.c.b16 %v553, %v542
        %v609 = vpack.c.b16 %v554, %v543
        %v610 = vpack.c.b16 %v555, %v544
        %v611 = vpack.c.b16 %v556, %v545
        %v612 = vpack.c.b16 %v557, %v557
        %v613 = vpack.c.b16 %v558, %v558
        %v614 = vpack.c.b16 %v559, %v559
        %v615 = vpack.c.b16 %v560, %v560
        %v616 = vpack.c.b16 %v561, %v561
        %v617 = vpack.c.b16 %v562, %v562
        %v618 = vpack.c.b16 %v563, %v563
        %v619 = vpack.c.b16 %v564, %v564
        %v620 = vpack.c.b16 %v565, %v565
        %v621 = vpack.c.b16 %v566, %v566
        %v622 = vpack.c.b16 %v567, %v567
        %v676 = vunpack.c.l.b16 %v406
        %v677 = vunpack.c.l.b16 %v407
        %v678 = vunpack.c.l.b16 %v408
        %v679 = vunpack.c.l.b16 %v409
        %v680 = vunpack.c.l.b16 %v410
        %v681 = vunpack.c.l.b16 %v411
        %v682 = vunpack.c.l.b16 %v412
        %v683 = vunpack.c.l.b16 %v413
        %v684 = vunpack.c.l.b16 %v414
        %v685 = vpack.c.b16 %v677, %v676
        %v686 = vpack.c.b16 %v679, %v678
        %v687 = vpack.c.b16 %v681, %v680
        %v688 = vpack.c.b16 %v683, %v682
        %v689 = vpack.c.b16 %v684, %v684
        %vm690 = vcmask 1043456
        %v691 = vrot.slane %v568, 4
        %v692 = vrot.slane %v569, 4
        %v693 = vrot.slane %v570, 4
        %v694 = vrot.slane %v571, 4
        %v695 = vrot.slane %v572, 4
        %v696 = vrot.slane %v573, 4
        %v697 = vrot.slane %v574, 4
        %v698 = vrot.slane %v575, 4
        %v699 = vrot.slane %v576, 4
        %v700 = vrot.slane %v577, 4
        %v701 = vrot.slane %v578, 4
        %v702 = vrot.slane %v685, 4
        %v703 = vrot.slane %v579, 4
        %v704 = vsel %vm690, %v691, %v703
        %v705 = vrot.slane %v580, 4
        %v706 = vsel %vm690, %v692, %v705
        %v707 = vrot.slane %v581, 4
        %v708 = vsel %vm690, %v693, %v707
        %v709 = vrot.slane %v582, 4
        %v710 = vsel %vm690, %v694, %v709
        %v711 = vrot.slane %v583, 4
        %v712 = vsel %vm690, %v695, %v711
        %v713 = vrot.slane %v584, 4
        %v714 = vsel %vm690, %v696, %v713
        %v715 = vrot.slane %v585, 4
        %v716 = vsel %vm690, %v697, %v715
        %v717 = vrot.slane %v586, 4
        %v718 = vsel %vm690, %v698, %v717
        %v719 = vrot.slane %v587, 4
        %v720 = vsel %vm690, %v699, %v719
        %v721 = vrot.slane %v588, 4
        %v722 = vsel %vm690, %v700, %v721
        %v723 = vrot.slane %v589, 4
        %v724 = vsel %vm690, %v701, %v723
        %v725 = vrot.slane %v686, 4
        %v726 = vsel %vm690, %v702, %v725
        %v727 = vrot.slane %v590, 4
        %v728 = vsel %vm690, %v703, %v727
        %v729 = vrot.slane %v591, 4
        %v730 = vsel %vm690, %v705, %v729
        %v731 = vrot.slane %v592, 4
        %v732 = vsel %vm690, %v707, %v731
        %v733 = vrot.slane %v593, 4
        %v734 = vsel %vm690, %v709, %v733
        %v735 = vrot.slane %v594, 4
        %v736 = vsel %vm690, %v711, %v735
        %v737 = vrot.slane %v595, 4
        %v738 = vsel %vm690, %v713, %v737
        %v739 = vrot.slane %v596, 4
        %v740 = vsel %vm690, %v715, %v739
        %v741 = vrot.slane %v597, 4
        %v742 = vsel %vm690, %v717, %v741
        %v743 = vrot.slane %v598, 4
        %v744 = vsel %vm690, %v719, %v743
        %v745 = vrot.slane %v599, 4
        %v746 = vsel %vm690, %v721, %v745
        %v747 = vrot.slane %v600, 4
        %v748 = vsel %vm690, %v723, %v747
        %v749 = vrot.slane %v687, 4
        %v750 = vsel %vm690, %v725, %v749
        %v751 = vrot.slane %v601, 4
        %v752 = vsel %vm690, %v727, %v751
        %v753 = vrot.slane %v602, 4
        %v754 = vsel %vm690, %v729, %v753
        %v755 = vrot.slane %v603, 4
        %v756 = vsel %vm690, %v731, %v755
        %v757 = vrot.slane %v604, 4
        %v758 = vsel %vm690, %v733, %v757
        %v759 = vrot.slane %v605, 4
        %v760 = vsel %vm690, %v735, %v759
        %v761 = vrot.slane %v606, 4
        %v762 = vsel %vm690, %v737, %v761
        %v763 = vrot.slane %v607, 4
        %v764 = vsel %vm690, %v739, %v763
        %v765 = vrot.slane %v608, 4
        %v766 = vsel %vm690, %v741, %v765
        %v767 = vrot.slane %v609, 4
        %v768 = vsel %vm690, %v743, %v767
        %v769 = vrot.slane %v610, 4
        %v770 = vsel %vm690, %v745, %v769
        %v771 = vrot.slane %v611, 4
        %v772 = vsel %vm690, %v747, %v771
        %v773 = vrot.slane %v688, 4
        %v774 = vsel %vm690, %v749, %v773
        %v775 = vrot.slane %v612, 4
        %v776 = vsel %vm690, %v751, %v775
        %v777 = vrot.slane %v613, 4
        %v778 = vsel %vm690, %v753, %v777
        %v779 = vrot.slane %v614, 4
        %v780 = vsel %vm690, %v755, %v779
        %v781 = vrot.slane %v615, 4
        %v782 = vsel %vm690, %v757, %v781
        %v783 = vrot.slane %v616, 4
        %v784 = vsel %vm690, %v759, %v783
        %v785 = vrot.slane %v617, 4
        %v786 = vsel %vm690, %v761, %v785
        %v787 = vrot.slane %v618, 4
        %v788 = vsel %vm690, %v763, %v787
        %v789 = vrot.slane %v619, 4
        %v790 = vsel %vm690, %v765, %v789
        %v791 = vrot.slane %v620, 4
        %v792 = vsel %vm690, %v767, %v791
        %v793 = vrot.slane %v621, 4
        %v794 = vsel %vm690, %v769, %v793
        %v795 = vrot.slane %v622, 4
        %v796 = vsel %vm690, %v771, %v795
        %v797 = vrot.slane %v689, 4
        %v798 = vsel %vm690, %v773, %v797
        %799 = vrot.lane.b32.xlu0 %v691, 127
        %v800 = vpop.permute.xlu0 %799
        %801 = vrot.lane.b32.xlu0 %v692, 127
        %v802 = vpop.permute.xlu0 %801
        %803 = vrot.lane.b32.xlu0 %v693, 127
        %v804 = vpop.permute.xlu0 %803
        %805 = vrot.lane.b32.xlu0 %v694, 127
        %v806 = vpop.permute.xlu0 %805
        %807 = vrot.lane.b32.xlu0 %v695, 127
        %v808 = vpop.permute.xlu0 %807
        %809 = vrot.lane.b32.xlu0 %v696, 127
        %v810 = vpop.permute.xlu0 %809
        %811 = vrot.lane.b32.xlu0 %v697, 127
        %v812 = vpop.permute.xlu0 %811
        %813 = vrot.lane.b32.xlu0 %v698, 127
        %v814 = vpop.permute.xlu0 %813
        %815 = vrot.lane.b32.xlu0 %v699, 127
        %v816 = vpop.permute.xlu0 %815
        %817 = vrot.lane.b32.xlu0 %v700, 127
        %v818 = vpop.permute.xlu0 %817
        %819 = vrot.lane.b32.xlu0 %v701, 127
        %v820 = vpop.permute.xlu0 %819
        %821 = vrot.lane.b32.xlu0 %v702, 127
        %v822 = vpop.permute.xlu0 %821
        %823 = vrot.lane.b32.xlu0 %v704, 127
        %v824 = vpop.permute.xlu0 %823
        %825 = vrot.lane.b32.xlu0 %v706, 127
        %v826 = vpop.permute.xlu0 %825
        %827 = vrot.lane.b32.xlu0 %v708, 127
        %v828 = vpop.permute.xlu0 %827
        %829 = vrot.lane.b32.xlu0 %v710, 127
        %v830 = vpop.permute.xlu0 %829
        %831 = vrot.lane.b32.xlu0 %v712, 127
        %v832 = vpop.permute.xlu0 %831
        %833 = vrot.lane.b32.xlu0 %v714, 127
        %v834 = vpop.permute.xlu0 %833
        %835 = vrot.lane.b32.xlu0 %v716, 127
        %v836 = vpop.permute.xlu0 %835
        %837 = vrot.lane.b32.xlu0 %v718, 127
        %v838 = vpop.permute.xlu0 %837
        %839 = vrot.lane.b32.xlu0 %v720, 127
        %v840 = vpop.permute.xlu0 %839
        %841 = vrot.lane.b32.xlu0 %v722, 127
        %v842 = vpop.permute.xlu0 %841
        %843 = vrot.lane.b32.xlu0 %v724, 127
        %v844 = vpop.permute.xlu0 %843
        %845 = vrot.lane.b32.xlu0 %v726, 127
        %v846 = vpop.permute.xlu0 %845
        %847 = vrot.lane.b32.xlu0 %v728, 127
        %v848 = vpop.permute.xlu0 %847
        %849 = vrot.lane.b32.xlu0 %v730, 127
        %v850 = vpop.permute.xlu0 %849
        %851 = vrot.lane.b32.xlu0 %v732, 127
        %v852 = vpop.permute.xlu0 %851
        %853 = vrot.lane.b32.xlu0 %v734, 127
        %v854 = vpop.permute.xlu0 %853
        %855 = vrot.lane.b32.xlu0 %v736, 127
        %v856 = vpop.permute.xlu0 %855
        %857 = vrot.lane.b32.xlu0 %v738, 127
        %v858 = vpop.permute.xlu0 %857
        %859 = vrot.lane.b32.xlu0 %v740, 127
        %v860 = vpop.permute.xlu0 %859
        %861 = vrot.lane.b32.xlu0 %v742, 127
        %v862 = vpop.permute.xlu0 %861
        %863 = vrot.lane.b32.xlu0 %v744, 127
        %v864 = vpop.permute.xlu0 %863
        %865 = vrot.lane.b32.xlu0 %v746, 127
        %v866 = vpop.permute.xlu0 %865
        %867 = vrot.lane.b32.xlu0 %v748, 127
        %v868 = vpop.permute.xlu0 %867
        %869 = vrot.lane.b32.xlu0 %v750, 127
        %v870 = vpop.permute.xlu0 %869
        %871 = vrot.lane.b32.xlu0 %v752, 127
        %v872 = vpop.permute.xlu0 %871
        %873 = vrot.lane.b32.xlu0 %v754, 127
        %v874 = vpop.permute.xlu0 %873
        %875 = vrot.lane.b32.xlu0 %v756, 127
        %v876 = vpop.permute.xlu0 %875
        %877 = vrot.lane.b32.xlu0 %v758, 127
        %v878 = vpop.permute.xlu0 %877
        %879 = vrot.lane.b32.xlu0 %v760, 127
        %v880 = vpop.permute.xlu0 %879
        %881 = vrot.lane.b32.xlu0 %v762, 127
        %v882 = vpop.permute.xlu0 %881
        %883 = vrot.lane.b32.xlu0 %v764, 127
        %v884 = vpop.permute.xlu0 %883
        %885 = vrot.lane.b32.xlu0 %v766, 127
        %v886 = vpop.permute.xlu0 %885
        %887 = vrot.lane.b32.xlu0 %v768, 127
        %v888 = vpop.permute.xlu0 %887
        %889 = vrot.lane.b32.xlu0 %v770, 127
        %v890 = vpop.permute.xlu0 %889
        %891 = vrot.lane.b32.xlu0 %v772, 127
        %v892 = vpop.permute.xlu0 %891
        %893 = vrot.lane.b32.xlu0 %v774, 127
        %v894 = vpop.permute.xlu0 %893
        %895 = vrot.lane.b32.xlu0 %v776, 127
        %v896 = vpop.permute.xlu0 %895
        %897 = vrot.lane.b32.xlu0 %v778, 127
        %v898 = vpop.permute.xlu0 %897
        %899 = vrot.lane.b32.xlu0 %v780, 127
        %v900 = vpop.permute.xlu0 %899
        %901 = vrot.lane.b32.xlu0 %v782, 127
        %v902 = vpop.permute.xlu0 %901
        %903 = vrot.lane.b32.xlu0 %v784, 127
        %v904 = vpop.permute.xlu0 %903
        %905 = vrot.lane.b32.xlu0 %v786, 127
        %v906 = vpop.permute.xlu0 %905
        %907 = vrot.lane.b32.xlu0 %v788, 127
        %v908 = vpop.permute.xlu0 %907
        %909 = vrot.lane.b32.xlu0 %v790, 127
        %v910 = vpop.permute.xlu0 %909
        %911 = vrot.lane.b32.xlu0 %v792, 127
        %v912 = vpop.permute.xlu0 %911
        %913 = vrot.lane.b32.xlu0 %v794, 127
        %v914 = vpop.permute.xlu0 %913
        %915 = vrot.lane.b32.xlu0 %v796, 127
        %v916 = vpop.permute.xlu0 %915
        %917 = vrot.lane.b32.xlu0 %v798, 127
        %v918 = vpop.permute.xlu0 %917
        %vm919 = vcmask 1039360
        %v920 = vsel %vm919, %v800, %v802
        %v921 = vsel %vm919, %v802, %v804
        %v922 = vsel %vm919, %v804, %v806
        %v923 = vsel %vm919, %v806, %v808
        %v924 = vsel %vm919, %v808, %v810
        %v925 = vsel %vm919, %v810, %v812
        %v926 = vsel %vm919, %v812, %v814
        %v927 = vsel %vm919, %v814, %v816
        %v928 = vsel %vm919, %v816, %v818
        %v929 = vsel %vm919, %v818, %v820
        %v930 = vsel %vm919, %v820, %v822
        %v931 = vsel %vm919, %v824, %v826
        %v932 = vsel %vm919, %v826, %v828
        %v933 = vsel %vm919, %v828, %v830
        %v934 = vsel %vm919, %v830, %v832
        %v935 = vsel %vm919, %v832, %v834
        %v936 = vsel %vm919, %v834, %v836
        %v937 = vsel %vm919, %v836, %v838
        %v938 = vsel %vm919, %v838, %v840
        %v939 = vsel %vm919, %v840, %v842
        %v940 = vsel %vm919, %v842, %v844
        %v941 = vsel %vm919, %v844, %v846
        %v942 = vsel %vm919, %v848, %v850
        %v943 = vsel %vm919, %v850, %v852
        %v944 = vsel %vm919, %v852, %v854
        %v945 = vsel %vm919, %v854, %v856
        %v946 = vsel %vm919, %v856, %v858
        %v947 = vsel %vm919, %v858, %v860
        %v948 = vsel %vm919, %v860, %v862
        %v949 = vsel %vm919, %v862, %v864
        %v950 = vsel %vm919, %v864, %v866
        %v951 = vsel %vm919, %v866, %v868
        %v952 = vsel %vm919, %v868, %v870
        %v953 = vsel %vm919, %v872, %v874
        %v954 = vsel %vm919, %v874, %v876
        %v955 = vsel %vm919, %v876, %v878
        %v956 = vsel %vm919, %v878, %v880
        %v957 = vsel %vm919, %v880, %v882
        %v958 = vsel %vm919, %v882, %v884
        %v959 = vsel %vm919, %v884, %v886
        %v960 = vsel %vm919, %v886, %v888
        %v961 = vsel %vm919, %v888, %v890
        %v962 = vsel %vm919, %v890, %v892
        %v963 = vsel %vm919, %v892, %v894
        %v964 = vsel %vm919, %v896, %v898
        %v965 = vsel %vm919, %v898, %v900
        %v966 = vsel %vm919, %v900, %v902
        %v967 = vsel %vm919, %v902, %v904
        %v968 = vsel %vm919, %v904, %v906
        %v969 = vsel %vm919, %v906, %v908
        %v970 = vsel %vm919, %v908, %v910
        %v971 = vsel %vm919, %v910, %v912
        %v972 = vsel %vm919, %v912, %v914
        %v973 = vsel %vm919, %v914, %v916
        %v974 = vsel %vm919, %v916, %v918
        %1019 = vrot.lane.b32.xlu0 %v568, 126
        %v1020 = vpop.permute.xlu0 %1019
        %1021 = vrot.lane.b32.xlu0 %v569, 126
        %v1022 = vpop.permute.xlu0 %1021
        %1023 = vrot.lane.b32.xlu0 %v570, 126
        %v1024 = vpop.permute.xlu0 %1023
        %1025 = vrot.lane.b32.xlu0 %v571, 126
        %v1026 = vpop.permute.xlu0 %1025
        %1027 = vrot.lane.b32.xlu0 %v572, 126
        %v1028 = vpop.permute.xlu0 %1027
        %1029 = vrot.lane.b32.xlu0 %v573, 126
        %v1030 = vpop.permute.xlu0 %1029
        %1031 = vrot.lane.b32.xlu0 %v574, 126
        %v1032 = vpop.permute.xlu0 %1031
        %1033 = vrot.lane.b32.xlu0 %v575, 126
        %v1034 = vpop.permute.xlu0 %1033
        %1035 = vrot.lane.b32.xlu0 %v576, 126
        %v1036 = vpop.permute.xlu0 %1035
        %1037 = vrot.lane.b32.xlu0 %v577, 126
        %v1038 = vpop.permute.xlu0 %1037
        %1039 = vrot.lane.b32.xlu0 %v578, 126
        %v1040 = vpop.permute.xlu0 %1039
        %1041 = vrot.lane.b32.xlu0 %v685, 126
        %v1042 = vpop.permute.xlu0 %1041
        %1043 = vrot.lane.b32.xlu0 %v579, 126
        %v1044 = vpop.permute.xlu0 %1043
        %1045 = vrot.lane.b32.xlu0 %v580, 126
        %v1046 = vpop.permute.xlu0 %1045
        %1047 = vrot.lane.b32.xlu0 %v581, 126
        %v1048 = vpop.permute.xlu0 %1047
        %1049 = vrot.lane.b32.xlu0 %v582, 126
        %v1050 = vpop.permute.xlu0 %1049
        %1051 = vrot.lane.b32.xlu0 %v583, 126
        %v1052 = vpop.permute.xlu0 %1051
        %1053 = vrot.lane.b32.xlu0 %v584, 126
        %v1054 = vpop.permute.xlu0 %1053
        %1055 = vrot.lane.b32.xlu0 %v585, 126
        %v1056 = vpop.permute.xlu0 %1055
        %1057 = vrot.lane.b32.xlu0 %v586, 126
        %v1058 = vpop.permute.xlu0 %1057
        %1059 = vrot.lane.b32.xlu0 %v587, 126
        %v1060 = vpop.permute.xlu0 %1059
        %1061 = vrot.lane.b32.xlu0 %v588, 126
        %v1062 = vpop.permute.xlu0 %1061
        %1063 = vrot.lane.b32.xlu0 %v589, 126
        %v1064 = vpop.permute.xlu0 %1063
        %1065 = vrot.lane.b32.xlu0 %v686, 126
        %v1066 = vpop.permute.xlu0 %1065
        %1067 = vrot.lane.b32.xlu0 %v590, 126
        %v1068 = vpop.permute.xlu0 %1067
        %1069 = vrot.lane.b32.xlu0 %v591, 126
        %v1070 = vpop.permute.xlu0 %1069
        %1071 = vrot.lane.b32.xlu0 %v592, 126
        %v1072 = vpop.permute.xlu0 %1071
        %1073 = vrot.lane.b32.xlu0 %v593, 126
        %v1074 = vpop.permute.xlu0 %1073
        %1075 = vrot.lane.b32.xlu0 %v594, 126
        %v1076 = vpop.permute.xlu0 %1075
        %1077 = vrot.lane.b32.xlu0 %v595, 126
        %v1078 = vpop.permute.xlu0 %1077
        %1079 = vrot.lane.b32.xlu0 %v596, 126
        %v1080 = vpop.permute.xlu0 %1079
        %1081 = vrot.lane.b32.xlu0 %v597, 126
        %v1082 = vpop.permute.xlu0 %1081
        %1083 = vrot.lane.b32.xlu0 %v598, 126
        %v1084 = vpop.permute.xlu0 %1083
        %1085 = vrot.lane.b32.xlu0 %v599, 126
        %v1086 = vpop.permute.xlu0 %1085
        %1087 = vrot.lane.b32.xlu0 %v600, 126
        %v1088 = vpop.permute.xlu0 %1087
        %1089 = vrot.lane.b32.xlu0 %v687, 126
        %v1090 = vpop.permute.xlu0 %1089
        %1091 = vrot.lane.b32.xlu0 %v601, 126
        %v1092 = vpop.permute.xlu0 %1091
        %1093 = vrot.lane.b32.xlu0 %v602, 126
        %v1094 = vpop.permute.xlu0 %1093
        %1095 = vrot.lane.b32.xlu0 %v603, 126
        %v1096 = vpop.permute.xlu0 %1095
        %1097 = vrot.lane.b32.xlu0 %v604, 126
        %v1098 = vpop.permute.xlu0 %1097
        %1099 = vrot.lane.b32.xlu0 %v605, 126
        %v1100 = vpop.permute.xlu0 %1099
        %1101 = vrot.lane.b32.xlu0 %v606, 126
        %v1102 = vpop.permute.xlu0 %1101
        %1103 = vrot.lane.b32.xlu0 %v607, 126
        %v1104 = vpop.permute.xlu0 %1103
        %1105 = vrot.lane.b32.xlu0 %v608, 126
        %v1106 = vpop.permute.xlu0 %1105
        %1107 = vrot.lane.b32.xlu0 %v609, 126
        %v1108 = vpop.permute.xlu0 %1107
        %1109 = vrot.lane.b32.xlu0 %v610, 126
        %v1110 = vpop.permute.xlu0 %1109
        %1111 = vrot.lane.b32.xlu0 %v611, 126
        %v1112 = vpop.permute.xlu0 %1111
        %1113 = vrot.lane.b32.xlu0 %v688, 126
        %v1114 = vpop.permute.xlu0 %1113
        %1115 = vrot.lane.b32.xlu0 %v612, 126
        %v1116 = vpop.permute.xlu0 %1115
        %1117 = vrot.lane.b32.xlu0 %v613, 126
        %v1118 = vpop.permute.xlu0 %1117
        %1119 = vrot.lane.b32.xlu0 %v614, 126
        %v1120 = vpop.permute.xlu0 %1119
        %1121 = vrot.lane.b32.xlu0 %v615, 126
        %v1122 = vpop.permute.xlu0 %1121
        %1123 = vrot.lane.b32.xlu0 %v616, 126
        %v1124 = vpop.permute.xlu0 %1123
        %1125 = vrot.lane.b32.xlu0 %v617, 126
        %v1126 = vpop.permute.xlu0 %1125
        %1127 = vrot.lane.b32.xlu0 %v618, 126
        %v1128 = vpop.permute.xlu0 %1127
        %1129 = vrot.lane.b32.xlu0 %v619, 126
        %v1130 = vpop.permute.xlu0 %1129
        %1131 = vrot.lane.b32.xlu0 %v620, 126
        %v1132 = vpop.permute.xlu0 %1131
        %1133 = vrot.lane.b32.xlu0 %v621, 126
        %v1134 = vpop.permute.xlu0 %1133
        %1135 = vrot.lane.b32.xlu0 %v622, 126
        %v1136 = vpop.permute.xlu0 %1135
        %1137 = vrot.lane.b32.xlu0 %v689, 126
        %v1138 = vpop.permute.xlu0 %1137
        %vm1139 = vcmask 1031168
        %v1140 = vsel %vm1139, %v1020, %v1022
        %v1141 = vsel %vm1139, %v1022, %v1024
        %v1142 = vsel %vm1139, %v1024, %v1026
        %v1143 = vsel %vm1139, %v1026, %v1028
        %v1144 = vsel %vm1139, %v1028, %v1030
        %v1145 = vsel %vm1139, %v1030, %v1032
        %v1146 = vsel %vm1139, %v1032, %v1034
        %v1147 = vsel %vm1139, %v1034, %v1036
        %v1148 = vsel %vm1139, %v1036, %v1038
        %v1149 = vsel %vm1139, %v1038, %v1040
        %v1150 = vsel %vm1139, %v1040, %v1042
        %v1151 = vsel %vm1139, %v1044, %v1046
        %v1152 = vsel %vm1139, %v1046, %v1048
        %v1153 = vsel %vm1139, %v1048, %v1050
        %v1154 = vsel %vm1139, %v1050, %v1052
        %v1155 = vsel %vm1139, %v1052, %v1054
        %v1156 = vsel %vm1139, %v1054, %v1056
        %v1157 = vsel %vm1139, %v1056, %v1058
        %v1158 = vsel %vm1139, %v1058, %v1060
        %v1159 = vsel %vm1139, %v1060, %v1062
        %v1160 = vsel %vm1139, %v1062, %v1064
        %v1161 = vsel %vm1139, %v1064, %v1066
        %v1162 = vsel %vm1139, %v1068, %v1070
        %v1163 = vsel %vm1139, %v1070, %v1072
        %v1164 = vsel %vm1139, %v1072, %v1074
        %v1165 = vsel %vm1139, %v1074, %v1076
        %v1166 = vsel %vm1139, %v1076, %v1078
        %v1167 = vsel %vm1139, %v1078, %v1080
        %v1168 = vsel %vm1139, %v1080, %v1082
        %v1169 = vsel %vm1139, %v1082, %v1084
        %v1170 = vsel %vm1139, %v1084, %v1086
        %v1171 = vsel %vm1139, %v1086, %v1088
        %v1172 = vsel %vm1139, %v1088, %v1090
        %v1173 = vsel %vm1139, %v1092, %v1094
        %v1174 = vsel %vm1139, %v1094, %v1096
        %v1175 = vsel %vm1139, %v1096, %v1098
        %v1176 = vsel %vm1139, %v1098, %v1100
        %v1177 = vsel %vm1139, %v1100, %v1102
        %v1178 = vsel %vm1139, %v1102, %v1104
        %v1179 = vsel %vm1139, %v1104, %v1106
        %v1180 = vsel %vm1139, %v1106, %v1108
        %v1181 = vsel %vm1139, %v1108, %v1110
        %v1182 = vsel %vm1139, %v1110, %v1112
        %v1183 = vsel %vm1139, %v1112, %v1114
        %v1184 = vsel %vm1139, %v1116, %v1118
        %v1185 = vsel %vm1139, %v1118, %v1120
        %v1186 = vsel %vm1139, %v1120, %v1122
        %v1187 = vsel %vm1139, %v1122, %v1124
        %v1188 = vsel %vm1139, %v1124, %v1126
        %v1189 = vsel %vm1139, %v1126, %v1128
        %v1190 = vsel %vm1139, %v1128, %v1130
        %v1191 = vsel %vm1139, %v1130, %v1132
        %v1192 = vsel %vm1139, %v1132, %v1134
        %v1193 = vsel %vm1139, %v1134, %v1136
        %v1194 = vsel %vm1139, %v1136, %v1138
        %vm1239 = vcmask 1043456
        %v1242 = vsel %vm1239, %v612, %v920
        %v1246 = vsel %vm1239, %v613, %v921
        %v1250 = vsel %vm1239, %v614, %v922
        %v1254 = vsel %vm1239, %v615, %v923
        %v1258 = vsel %vm1239, %v616, %v924
        %v1262 = vsel %vm1239, %v617, %v925
        %v1266 = vsel %vm1239, %v618, %v926
        %v1270 = vsel %vm1239, %v619, %v927
        %v1274 = vsel %vm1239, %v620, %v928
        %v1278 = vsel %vm1239, %v621, %v929
        %v1282 = vsel %vm1239, %v622, %v930
        %v1284 = vld [vmem:[#allocation2] sm:$0xff]
        %v1285 = vld [vmem:[#allocation2 + $0x8] sm:$0xff]
        %v1286 = vld [vmem:[#allocation5] sm:$0xff]
        %v1287 = vld [vmem:[#allocation5 + $0x8] sm:$0xff]
        %1289 = vset.pattern.permute.xlu0 0
        %1290 = vperm.xlu0 %1289, %v1286
        %v1291 = vpop.permute.xlu0 %1290
        %1294 = vset.pattern.permute.xlu0 0
        %1295 = vperm.xlu0 %1294, %v1287
        %v1296 = vpop.permute.xlu0 %1295
        %v1300 = vunpack.c.l.b16 %v1284
        %v1301 = vunpack.c.h.b16 %v1284
        %v1302 = vunpack.c.l.b16 %v1285
        %v1303 = vunpack.c.h.b16 %v1285
        %v1304 = vpack.c.b16 %v1302, %v1300
        %v1305 = vpack.c.b16 %v1303, %v1301
        %vm1307 = vcmask 719872
        %v1309 = vsel %vm1307, %v1305, 0
        %v1312 = vsel %vm1239, %v1184, 0
        %v1315 = vsel %vm1239, %v1185, 0
        %v1318 = vsel %vm1239, %v1186, 0
        %v1321 = vsel %vm1239, %v1187, 0
        %v1324 = vsel %vm1239, %v1188, 0
        %v1327 = vsel %vm1239, %v1189, 0
        %v1330 = vsel %vm1239, %v1190, 0
        %v1333 = vsel %vm1239, %v1191, 0
        %v1336 = vsel %vm1239, %v1192, 0
        %v1339 = vsel %vm1239, %v1193, 0
        %v1342 = vsel %vm1239, %v1194, 0
        %1344 = vmatprep.subr.bf16.mxu0 %v569
        %1345 = vmatpush1.bf16.msra.mxu0 %v568
        %1346 = vmatprep.subr.bf16.mxu0 %v580
        %1347 = vmatpush1.bf16.msra.mxu0 %v579
        %1348 = vmatprep.subr.bf16.mxu0 %v591
        %1349 = vmatpush1.bf16.msra.mxu0 %v590
        %1350 = vmatprep.subr.bf16.mxu0 %v602
        %1351 = vmatpush1.bf16.msra.mxu0 %v601
        %1352 = vmatprep.subr.bf16.mxu0 %v1246
        %1353 = vmatpush1.bf16.msra.mxu0 %v1242
        %1354 = vmatprep.subr.bf16.mxu0 %v932
        %1355 = vmatpush1.bf16.msra.mxu0 %v931
        %1356 = vmatprep.subr.bf16.mxu0 %v943
        %1357 = vmatpush1.bf16.msra.mxu0 %v942
        %1358 = vmatprep.subr.bf16.mxu0 %v954
        %1359 = vmatpush1.bf16.msra.mxu0 %v953
        %1360 = vmatprep.subr.bf16.mxu0 %v965
        %1361 = vmatpush1.bf16.msra.mxu0 %v964
        %1362 = vmatprep.subr.bf16.mxu0 %v1141
        %1363 = vmatpush1.bf16.msra.mxu0 %v1140
        %1364 = vmatprep.subr.bf16.mxu0 %v1152
        %1365 = vmatpush1.bf16.msra.mxu0 %v1151
        %1366 = vmatprep.subr.bf16.mxu0 %v1163
        %1367 = vmatpush1.bf16.msra.mxu0 %v1162
        %1368 = vmatprep.subr.bf16.mxu0 %v1174
        %1369 = vmatpush1.bf16.msra.mxu0 %v1173
        %1370 = vmatprep.subr.bf16.mxu0 %v1315
        %1371 = vmatpush1.bf16.msra.mxu0 %v1312
        %1372 = vmatprep.subr.bf16.mxu0 0
        %1373 = vmatpush1.bf16.msra.mxu0 0
        %1374 = vmatprep.subr.bf16.mxu0 0
        %1375 = vmatpush1.bf16.msra.mxu0 0
        %1376 = vmatprep.mubr.bf16.mxu0 %v1309
        %1377 = vmatmul.mubr.bf16.gmra.mrb[0].mxu0 %v1304
        %v1378 = vpop.f32.mrb[0].mxu0
        %v1379 = vadd.f32 %v1291, %v1378
        %v1380 = vpop.f32.mrb[0].mxu0
        %v1381 = vadd.f32 %v1291, %v1380
        %v1382 = vpop.f32.mrb[0].mxu0
        %v1383 = vadd.f32 %v1296, %v1382
        %v1384 = vpop.f32.mrb[0].mxu0
        %v1385 = vadd.f32 %v1296, %v1384
        %1386 = vdwg.mxu0
        %1387 = vmatprep.subr.bf16.mxu0 %v571
        %1388 = vmatpush1.bf16.msra.mxu0 %v570
        %1389 = vmatprep.subr.bf16.mxu0 %v582
        %1390 = vmatpush1.bf16.msra.mxu0 %v581
        %1391 = vmatprep.subr.bf16.mxu0 %v593
        %1392 = vmatpush1.bf16.msra.mxu0 %v592
        %1393 = vmatprep.subr.bf16.mxu0 %v604
        %1394 = vmatpush1.bf16.msra.mxu0 %v603
        %1395 = vmatprep.subr.bf16.mxu0 %v1254
        %1396 = vmatpush1.bf16.msra.mxu0 %v1250
        %1397 = vmatprep.subr.bf16.mxu0 %v934
        %1398 = vmatpush1.bf16.msra.mxu0 %v933
        %1399 = vmatprep.subr.bf16.mxu0 %v945
        %1400 = vmatpush1.bf16.msra.mxu0 %v944
        %1401 = vmatprep.subr.bf16.mxu0 %v956
        %1402 = vmatpush1.bf16.msra.mxu0 %v955
        %1403 = vmatprep.subr.bf16.mxu0 %v967
        %1404 = vmatpush1.bf16.msra.mxu0 %v966
        %1405 = vmatprep.subr.bf16.mxu0 %v1143
        %1406 = vmatpush1.bf16.msra.mxu0 %v1142
        %1407 = vmatprep.subr.bf16.mxu0 %v1154
        %1408 = vmatpush1.bf16.msra.mxu0 %v1153
        %1409 = vmatprep.subr.bf16.mxu0 %v1165
        %1410 = vmatpush1.bf16.msra.mxu0 %v1164
        %1411 = vmatprep.subr.bf16.mxu0 %v1176
        %1412 = vmatpush1.bf16.msra.mxu0 %v1175
        %1413 = vmatprep.subr.bf16.mxu0 %v1321
        %1414 = vmatpush1.bf16.msra.mxu0 %v1318
        %1415 = vmatprep.subr.bf16.mxu0 0
        %1416 = vmatpush1.bf16.msra.mxu0 0
        %1417 = vmatprep.subr.bf16.mxu0 0
        %1418 = vmatpush1.bf16.msra.mxu0 0
        %1419 = vmatprep.mubr.bf16.mxu0 %v1309
        %1420 = vmatmul.mubr.bf16.gmra.mrb[0].mxu0 %v1304
        %v1421 = vpop.f32.mrb[0].mxu0
        %v1422 = vadd.f32 %v1291, %v1421
        %v1423 = vpop.f32.mrb[0].mxu0
        %v1424 = vadd.f32 %v1291, %v1423
        %v1425 = vpop.f32.mrb[0].mxu0
        %v1426 = vadd.f32 %v1296, %v1425
        %v1427 = vpop.f32.mrb[0].mxu0
        %v1428 = vadd.f32 %v1296, %v1427
        %1429 = vdwg.mxu0
        %1430 = vmatprep.subr.bf16.mxu0 %v573
        %1431 = vmatpush1.bf16.msra.mxu0 %v572
        %1432 = vmatprep.subr.bf16.mxu0 %v584
        %1433 = vmatpush1.bf16.msra.mxu0 %v583
        %1434 = vmatprep.subr.bf16.mxu0 %v595
        %1435 = vmatpush1.bf16.msra.mxu0 %v594
        %1436 = vmatprep.subr.bf16.mxu0 %v606
        %1437 = vmatpush1.bf16.msra.mxu0 %v605
        %1438 = vmatprep.subr.bf16.mxu0 %v1262
        %1439 = vmatpush1.bf16.msra.mxu0 %v1258
        %1440 = vmatprep.subr.bf16.mxu0 %v936
        %1441 = vmatpush1.bf16.msra.mxu0 %v935
        %1442 = vmatprep.subr.bf16.mxu0 %v947
        %1443 = vmatpush1.bf16.msra.mxu0 %v946
        %1444 = vmatprep.subr.bf16.mxu0 %v958
        %1445 = vmatpush1.bf16.msra.mxu0 %v957
        %1446 = vmatprep.subr.bf16.mxu0 %v969
        %1447 = vmatpush1.bf16.msra.mxu0 %v968
        %1448 = vmatprep.subr.bf16.mxu0 %v1145
        %1449 = vmatpush1.bf16.msra.mxu0 %v1144
        %1450 = vmatprep.subr.bf16.mxu0 %v1156
        %1451 = vmatpush1.bf16.msra.mxu0 %v1155
        %1452 = vmatprep.subr.bf16.mxu0 %v1167
        %1453 = vmatpush1.bf16.msra.mxu0 %v1166
        %1454 = vmatprep.subr.bf16.mxu0 %v1178
        %1455 = vmatpush1.bf16.msra.mxu0 %v1177
        %1456 = vmatprep.subr.bf16.mxu0 %v1327
        %1457 = vmatpush1.bf16.msra.mxu0 %v1324
        %1458 = vmatprep.subr.bf16.mxu0 0
        %1459 = vmatpush1.bf16.msra.mxu0 0
        %1460 = vmatprep.subr.bf16.mxu0 0
        %1461 = vmatpush1.bf16.msra.mxu0 0
        %1462 = vmatprep.mubr.bf16.mxu0 %v1309
        %1463 = vmatmul.mubr.bf16.gmra.mrb[0].mxu0 %v1304
        %v1464 = vpop.f32.mrb[0].mxu0
        %v1465 = vadd.f32 %v1291, %v1464
        %v1466 = vpop.f32.mrb[0].mxu0
        %v1467 = vadd.f32 %v1291, %v1466
        %v1468 = vpop.f32.mrb[0].mxu0
        %v1469 = vadd.f32 %v1296, %v1468
        %v1470 = vpop.f32.mrb[0].mxu0
        %v1471 = vadd.f32 %v1296, %v1470
        %1472 = vdwg.mxu0
        %1473 = vmatprep.subr.bf16.mxu0 %v575
        %1474 = vmatpush1.bf16.msra.mxu0 %v574
        %1475 = vmatprep.subr.bf16.mxu0 %v586
        %1476 = vmatpush1.bf16.msra.mxu0 %v585
        %1477 = vmatprep.subr.bf16.mxu0 %v597
        %1478 = vmatpush1.bf16.msra.mxu0 %v596
        %1479 = vmatprep.subr.bf16.mxu0 %v608
        %1480 = vmatpush1.bf16.msra.mxu0 %v607
        %1481 = vmatprep.subr.bf16.mxu0 %v1270
        %1482 = vmatpush1.bf16.msra.mxu0 %v1266
        %1483 = vmatprep.subr.bf16.mxu0 %v938
        %1484 = vmatpush1.bf16.msra.mxu0 %v937
        %1485 = vmatprep.subr.bf16.mxu0 %v949
        %1486 = vmatpush1.bf16.msra.mxu0 %v948
        %1487 = vmatprep.subr.bf16.mxu0 %v960
        %1488 = vmatpush1.bf16.msra.mxu0 %v959
        %1489 = vmatprep.subr.bf16.mxu0 %v971
        %1490 = vmatpush1.bf16.msra.mxu0 %v970
        %1491 = vmatprep.subr.bf16.mxu0 %v1147
        %1492 = vmatpush1.bf16.msra.mxu0 %v1146
        %1493 = vmatprep.subr.bf16.mxu0 %v1158
        %1494 = vmatpush1.bf16.msra.mxu0 %v1157
        %1495 = vmatprep.subr.bf16.mxu0 %v1169
        %1496 = vmatpush1.bf16.msra.mxu0 %v1168
        %1497 = vmatprep.subr.bf16.mxu0 %v1180
        %1498 = vmatpush1.bf16.msra.mxu0 %v1179
        %1499 = vmatprep.subr.bf16.mxu0 %v1333
        %1500 = vmatpush1.bf16.msra.mxu0 %v1330
        %1501 = vmatprep.subr.bf16.mxu0 0
        %1502 = vmatpush1.bf16.msra.mxu0 0
        %1503 = vmatprep.subr.bf16.mxu0 0
        %1504 = vmatpush1.bf16.msra.mxu0 0
        %1505 = vmatprep.mubr.bf16.mxu0 %v1309
        %1506 = vmatmul.mubr.bf16.gmra.mrb[0].mxu0 %v1304
        %v1507 = vpop.f32.mrb[0].mxu0
        %v1508 = vadd.f32 %v1291, %v1507
        %v1509 = vpop.f32.mrb[0].mxu0
        %v1510 = vadd.f32 %v1291, %v1509
        %v1511 = vpop.f32.mrb[0].mxu0
        %v1512 = vadd.f32 %v1296, %v1511
        %v1513 = vpop.f32.mrb[0].mxu0
        %v1514 = vadd.f32 %v1296, %v1513
        %1515 = vdwg.mxu0
        %1516 = vmatprep.subr.bf16.mxu0 %v577
        %1517 = vmatpush1.bf16.msra.mxu0 %v576
        %1518 = vmatprep.subr.bf16.mxu0 %v588
        %1519 = vmatpush1.bf16.msra.mxu0 %v587
        %1520 = vmatprep.subr.bf16.mxu0 %v599
        %1521 = vmatpush1.bf16.msra.mxu0 %v598
        %1522 = vmatprep.subr.bf16.mxu0 %v610
        %1523 = vmatpush1.bf16.msra.mxu0 %v609
        %1524 = vmatprep.subr.bf16.mxu0 %v1278
        %1525 = vmatpush1.bf16.msra.mxu0 %v1274
        %1526 = vmatprep.subr.bf16.mxu0 %v940
        %1527 = vmatpush1.bf16.msra.mxu0 %v939
        %1528 = vmatprep.subr.bf16.mxu0 %v951
        %1529 = vmatpush1.bf16.msra.mxu0 %v950
        %1530 = vmatprep.subr.bf16.mxu0 %v962
        %1531 = vmatpush1.bf16.msra.mxu0 %v961
        %1532 = vmatprep.subr.bf16.mxu0 %v973
        %1533 = vmatpush1.bf16.msra.mxu0 %v972
        %1534 = vmatprep.subr.bf16.mxu0 %v1149
        %1535 = vmatpush1.bf16.msra.mxu0 %v1148
        %1536 = vmatprep.subr.bf16.mxu0 %v1160
        %1537 = vmatpush1.bf16.msra.mxu0 %v1159
        %1538 = vmatprep.subr.bf16.mxu0 %v1171
        %1539 = vmatpush1.bf16.msra.mxu0 %v1170
        %1540 = vmatprep.subr.bf16.mxu0 %v1182
        %1541 = vmatpush1.bf16.msra.mxu0 %v1181
        %1542 = vmatprep.subr.bf16.mxu0 %v1339
        %1543 = vmatpush1.bf16.msra.mxu0 %v1336
        %1544 = vmatprep.subr.bf16.mxu0 0
        %1545 = vmatpush1.bf16.msra.mxu0 0
        %1546 = vmatprep.subr.bf16.mxu0 0
        %1547 = vmatpush1.bf16.msra.mxu0 0
        %1548 = vmatprep.mubr.bf16.mxu0 %v1309
        %1549 = vmatmul.mubr.bf16.gmra.mrb[0].mxu0 %v1304
        %v1550 = vpop.f32.mrb[0].mxu0
        %v1551 = vadd.f32 %v1291, %v1550
        %v1552 = vpop.f32.mrb[0].mxu0
        %v1553 = vadd.f32 %v1291, %v1552
        %v1554 = vpop.f32.mrb[0].mxu0
        %v1555 = vadd.f32 %v1296, %v1554
        %v1556 = vpop.f32.mrb[0].mxu0
        %v1557 = vadd.f32 %v1296, %v1556
        %1558 = vdwg.mxu0
        %1559 = vmatprep.subr.bf16.mxu0 0
        %1560 = vmatpush1.bf16.msra.mxu0 %v578
        %1561 = vmatprep.subr.bf16.mxu0 0
        %1562 = vmatpush1.bf16.msra.mxu0 %v589
        %1563 = vmatprep.subr.bf16.mxu0 0
        %1564 = vmatpush1.bf16.msra.mxu0 %v600
        %1565 = vmatprep.subr.bf16.mxu0 0
        %1566 = vmatpush1.bf16.msra.mxu0 %v611
        %1567 = vmatprep.subr.bf16.mxu0 0
        %1568 = vmatpush1.bf16.msra.mxu0 %v1282
        %1569 = vmatprep.subr.bf16.mxu0 0
        %1570 = vmatpush1.bf16.msra.mxu0 %v941
        %1571 = vmatprep.subr.bf16.mxu0 0
        %1572 = vmatpush1.bf16.msra.mxu0 %v952
        %1573 = vmatprep.subr.bf16.mxu0 0
        %1574 = vmatpush1.bf16.msra.mxu0 %v963
        %1575 = vmatprep.subr.bf16.mxu0 0
        %1576 = vmatpush1.bf16.msra.mxu0 %v974
        %1577 = vmatprep.subr.bf16.mxu0 0
        %1578 = vmatpush1.bf16.msra.mxu0 %v1150
        %1579 = vmatprep.subr.bf16.mxu0 0
        %1580 = vmatpush1.bf16.msra.mxu0 %v1161
        %1581 = vmatprep.subr.bf16.mxu0 0
        %1582 = vmatpush1.bf16.msra.mxu0 %v1172
        %1583 = vmatprep.subr.bf16.mxu0 0
        %1584 = vmatpush1.bf16.msra.mxu0 %v1183
        %1585 = vmatprep.subr.bf16.mxu0 0
        %1586 = vmatpush1.bf16.msra.mxu0 %v1342
        %1587 = vmatprep.subr.bf16.mxu0 0
        %1588 = vmatpush1.bf16.msra.mxu0 0
        %1589 = vmatprep.subr.bf16.mxu0 0
        %1590 = vmatpush1.bf16.msra.mxu0 0
        %1591 = vmatprep.mubr.bf16.mxu0 %v1309
        %1592 = vmatmul.mubr.bf16.gmra.mrb[0].mxu0 %v1304
        %v1593 = vpop.f32.mrb[0].mxu0
        %v1594 = vadd.f32 %v1291, %v1593
        %v1595 = vpop.f32.mrb[0].mxu0
        %v1596 = vpop.f32.mrb[0].mxu0
        %v1597 = vadd.f32 %v1296, %v1596
        %v1598 = vpop.f32.mrb[0].mxu0
        %1599 = vdwg.mxu0
        %v1600 = vmax.f32 %v1379, 0.0
        %v1601 = vmax.f32 %v1381, 0.0
        %v1602 = vmax.f32 %v1422, 0.0
        %v1603 = vmax.f32 %v1424, 0.0
        %v1604 = vmax.f32 %v1465, 0.0
        %v1605 = vmax.f32 %v1467, 0.0
        %v1606 = vmax.f32 %v1508, 0.0
        %v1607 = vmax.f32 %v1510, 0.0
        %v1608 = vmax.f32 %v1551, 0.0
        %v1609 = vmax.f32 %v1553, 0.0
        %v1610 = vmax.f32 %v1594, 0.0
        %v1611 = vmax.f32 %v1383, 0.0
        %v1612 = vmax.f32 %v1385, 0.0
        %v1613 = vmax.f32 %v1426, 0.0
        %v1614 = vmax.f32 %v1428, 0.0
        %v1615 = vmax.f32 %v1469, 0.0
        %v1616 = vmax.f32 %v1471, 0.0
        %v1617 = vmax.f32 %v1512, 0.0
        %v1618 = vmax.f32 %v1514, 0.0
        %v1619 = vmax.f32 %v1555, 0.0
        %v1620 = vmax.f32 %v1557, 0.0
        %v1621 = vmax.f32 %v1597, 0.0
        %v1622 = vpack.c.bf16 %v1611, %v1600
        %v1623 = vpack.c.bf16 %v1612, %v1601
        %v1624 = vpack.c.bf16 %v1613, %v1602
        %v1625 = vpack.c.bf16 %v1614, %v1603
        %v1626 = vpack.c.bf16 %v1615, %v1604
        %v1627 = vpack.c.bf16 %v1616, %v1605
        %v1628 = vpack.c.bf16 %v1617, %v1606
        %v1629 = vpack.c.bf16 %v1618, %v1607
        %v1630 = vpack.c.bf16 %v1619, %v1608
        %v1631 = vpack.c.bf16 %v1620, %v1609
        %v1632 = vpack.c.bf16 %v1621, %v1610
        %v1644 = vunpack.c.l.b16 %v1622
        %v1645 = vunpack.c.l.b16 %v1623
        %v1646 = vunpack.c.l.b16 %v1624
        %v1647 = vunpack.c.l.b16 %v1625
        %v1648 = vunpack.c.l.b16 %v1626
        %v1649 = vunpack.c.l.b16 %v1627
        %v1650 = vunpack.c.l.b16 %v1628
        %v1651 = vunpack.c.l.b16 %v1629
        %v1652 = vunpack.c.l.b16 %v1630
        %v1653 = vunpack.c.l.b16 %v1631
        %v1654 = vunpack.c.l.b16 %v1632
        %v1655 = vunpack.c.h.b16 %v1622
        %v1656 = vunpack.c.h.b16 %v1623
        %v1657 = vunpack.c.h.b16 %v1624
        %v1658 = vunpack.c.h.b16 %v1625
        %v1659 = vunpack.c.h.b16 %v1626
        %v1660 = vunpack.c.h.b16 %v1627
        %v1661 = vunpack.c.h.b16 %v1628
        %v1662 = vunpack.c.h.b16 %v1629
        %v1663 = vunpack.c.h.b16 %v1630
        %v1664 = vunpack.c.h.b16 %v1631
        %v1665 = vunpack.c.h.b16 %v1632
        %v1666 = vpack.c.b16 %v1645, %v1644
        %v1667 = vpack.c.b16 %v1647, %v1646
        %v1668 = vpack.c.b16 %v1649, %v1648
        %v1669 = vpack.c.b16 %v1651, %v1650
        %v1670 = vpack.c.b16 %v1653, %v1652
        %v1671 = vpack.c.b16 %v1654, %v1654
        %v1672 = vpack.c.b16 %v1656, %v1655
        %v1673 = vpack.c.b16 %v1658, %v1657
        %v1674 = vpack.c.b16 %v1660, %v1659
        %v1675 = vpack.c.b16 %v1662, %v1661
        %v1676 = vpack.c.b16 %v1664, %v1663
        %v1677 = vpack.c.b16 %v1665, %v1665
        %1690 = vst [vmem:[%s339] sm:$0xff] %v1666
        %1691 = vst [vmem:[%s339 + $0x8] sm:$0xff] %v1667
        %1692 = vst [vmem:[%s339 + $0x10] sm:$0xff] %v1668
        %1693 = vst [vmem:[%s339 + $0x18] sm:$0xff] %v1669
        %1694 = vst [vmem:[%s339 + $0x20] sm:$0xff] %v1670
        %1695 = vst [vmem:[%s339 + $0x28] sm:$0xf] %v1671
        %1696 = vst [vmem:[%s339 + $0x2c] sm:$0xff] %v1672
        %1697 = vst [vmem:[%s339 + $0x34] sm:$0xff] %v1673
        %1698 = vst [vmem:[%s339 + $0x3c] sm:$0xff] %v1674
        %1699 = vst [vmem:[%s339 + $0x44] sm:$0xff] %v1675
        %1700 = vst [vmem:[%s339 + $0x4c] sm:$0xff] %v1676
        %1701 = vst [vmem:[%s339 + $0x54] sm:$0xf] %v1677
        %s1702 = sand.u32 %s163, 1
        %s1703 = scalar_lea.sflag [#allocation4], %s1702
        %s1704 = sand.u32 %s163, 1
        %s1705 = smul.addr %s1704, 88
        %s1706 = scalar_lea.vmem [#allocation9], %s1705
        // Predicated region
        $region53: #{forward.4} parent=35 // pred_check
          %p1707 = pneg %p173
        $region54: #{forward.4} parent=35 // pred_check_branch
          %1709 = sbr.rel (%p1707) target = $region56
        $region55: #{forward.4} parent=35 // pred_region
          %s1710 = smul.u32 2, %s26
          %s1711 = smul.u32 11, %s27
          %s1713 = ssub.s32 1408, 1408
          %1714 = vsyncadd %s1703, %s1713
          %s1715 = smul.addr %s1710, 11
          %s1716 = sadd.s32 %s1711, %s1715
          %s1717 = smul.addr %s25, 22
          %s1718 = sadd.s32 %s1716, %s1717
          %s1719 = smul.addr %s1718, 64
          %s1720 = scalar_lea.hbm %s4, %s1719
          %s1721 = sshll.u32 %s1706, 4
          %s1722 = int_to_ptr.vmem [resolvable:$true] %s1721
          %1727 = dma.vmem_to_hbm [thread:$0]  %s1722, 1408, %s1720, %s1703, 704, 704, 44
        $region56: #{forward.4} parent=35 // pred_fallthru
          _
      $region36: #{forward.4} parent=5 // pred_fallthru
        _
      %p1728 = scmp.le.s32.totalorder 2, %s15
      // Predicated region
      $region57: #{forward.4} parent=5 // pred_check
        %p1729 = pneg %p1728
      $region58: #{forward.4} parent=5 // pred_check_branch
        %1731 = sbr.rel (%p1729) target = $region60
      $region59: #{forward.4} parent=5 // pred_region
        %s1732 = ssub.s32 %s15, 2
        // Predicated region
        $region61: #{forward.4} parent=59 // pred_check
          %p1733 = pneg %p179
        $region62: #{forward.4} parent=59 // pred_check_branch
          %1735 = sbr.rel (%p1733) target = $region64
        $region63: #{forward.4} parent=59 // pred_region
          %s1736 = sand.u32 %s164, 1
          %s1737 = scalar_lea.sflag [#allocation4], %s1736
          %s1738 = sand.u32 %s164, 1
          %s1739 = smul.addr %s1738, 88
          %s1740 = scalar_lea.vmem [#allocation9], %s1739
          %1741 = dma.done %s1737, 1408
        $region64: #{forward.4} parent=59 // pred_fallthru
          _
      $region60: #{forward.4} parent=5 // pred_fallthru
        _
    $region6: #{forward.4} parent=1 // loop_footer
      %s19 = sadd.s32 1, %s15
    $region7: #{forward.4} parent=1 // loop_footer_branch
      %14 = sbr.rel target = $region3
    $region8: #{forward.4} parent=1 // loop_exit
      _
    %1742 = vsyncpa [#allocation3], 1
    %s1743 = scalar_lea.sflag [#allocation3], 1
    %1744 = vsyncpa %s1743, 1
    %1745 = vsyncpa [#allocation6], 1
    %1746 = vsyncpa [#allocation4], 1
    %s1747 = scalar_lea.sflag [#allocation4], 1
    %1748 = vsyncpa %s1747, 1

// kernel: forward.5
$region0: #{forward.5}
  #allocation0 [shape = 'u32[]', space=smem, size = 0x4, offset = 0x4, fixed_abs, tag = 'smem constant byte address 0x4 - core index']
  #allocation1 [shape = 'u32[144,128]{1,0:T(1,128)}', space=vmem, size = 0x12000, scoped, tag = 'internal scratch']
  %s0 = inlined_call_operand.hbm [shape: bf16[32,432], index: 0, kind: input, shape index: {}]
  %s1 = inlined_call_operand.hbm [shape: f32[32,1], index: 1, kind: input, shape index: {}]
  %s2 = inlined_call_operand.hbm [shape: bf16[2,144,256], index: 2, kind: input, shape index: {}, may-alias: {2,3}]
  %s3 = inlined_call_operand.hbm [shape: bf16[2,144,256], index: 3, kind: input, shape index: {}, may-alias: {2,3}]
  %s4 = inlined_call_operand.hbm [shape: bf16[2,32,128], index: 4, kind: output, shape index: {}]
  %s5 = sld [smem:[#allocation0]]
  $region65: #{forward.5} parent=0
    _
  %s7 = ssub.s32 1, %s5
  %s8 = scalar_select 0, %s7, %s5
  $region1: #{forward.5} parent=0
    #allocation2 [shape = 'u8[32768]{0}', space=vmem, size = 0x8000, scoped, tag = 'input window, operand 0, single buffered']
    #allocation3 [shape = 's32[2]{0}', space=sflag, size = 0x8, scoped, tag = 'scoped memory for forward.5']
    #allocation4 [shape = 's32[2]{0}', space=sflag, size = 0x8, scoped, tag = 'scoped memory for forward.5']
    #allocation5 [shape = 'u8[16384]{0}', space=vmem, size = 0x4000, scoped, tag = 'input window, operand 1, single buffered']
    #allocation6 [shape = 's32[1]{0}', space=sflag, size = 0x4, scoped, tag = 'scoped memory for forward.5']
    #allocation7 [shape = 'u8[73728]{0}', space=vmem, size = 0x12000, scoped, tag = 'input window, operand 2']
    #allocation8 [shape = 'u8[73728]{0}', space=vmem, size = 0x12000, scoped, tag = 'input window, operand 3']
    #allocation9 [shape = 'u8[16384]{0}', space=vmem, size = 0x4000, scoped, tag = 'output window, operand 0']
    %9 = vsyncpa [#allocation3], 0
    %10 = vsyncpa [#allocation6], 0
    %11 = vsyncpa [#allocation4], 0
    %s12 = scalar_lea.sflag [#allocation4], 1
    %13 = vsyncpa %s12, 0
    loop: start=0, step=1, limit=4
    $region2: #{forward.5} parent=1 // loop_pre_header
      _
    $region3: #{forward.5} parent=1 // loop_header
      %s15 = sphi 0, %s19
      %p16 = scmp.ge.s32.totalorder %s15, 4
      %s22 = sphi 0, %s41
      %s23 = sphi 0, %s37
      %s24 = sphi 0, %s33
      %s25 = sphi 0, %s22
      %s26 = sphi 0, %s23
      %s27 = sphi 0, %s24
      %s28 = sphi 0, %s25
      %s29 = sphi 0, %s26
      %s30 = sphi 0, %s27
      %s44 = sphi 0, %s46
      %s47 = sphi 0, %s44
      %s48 = sphi 0, %s47
      %s64 = sphi 0, %s48
      %s70 = sphi 0, %s72
      %s73 = sphi 0, %s70
      %s74 = sphi 0, %s73
      %s90 = sphi 0, %s74
      %s98 = sphi 0, %s100
      %s101 = sphi 0, %s98
      %s102 = sphi 0, %s101
      %s118 = sphi 0, %s102
      %s128 = sphi 0, %s130
      %s131 = sphi 0, %s128
      %s132 = sphi 0, %s131
      %s148 = sphi 0, %s132
      %s158 = sphi 0, %s160
      %s161 = sphi 0, %s158
      %s162 = sphi 0, %s161
      %s178 = sphi 0, %s162
    $region4: #{forward.5} parent=1 // loop_header_branch
      %18 = sbr.rel (%p16) target = $region8
    $region5: #{forward.5} parent=1 // loop_body
      %s20 = ssub.s32 %s15, 1
      %s21 = ssub.s32 %s15, 2
      %s31 = sadd.s32 1, %s24
      %p32 = scmp.ge.s32.totalorder %s31, 1
      %s33 = scalar_select %p32, 0, %s31
      %s34 = sadd.s32 1, %s23
      %s35 = scalar_select %p32, %s34, %s23
      %p36 = scmp.ge.s32.totalorder %s35, 1
      %s37 = scalar_select %p36, 0, %s35
      %s38 = sadd.s32 1, %s22
      %s39 = scalar_select %p36, %s38, %s22
      %p40 = scmp.ge.s32.totalorder %s39, 2
      %s41 = scalar_select %p40, 0, %s39
      %s42 = ssub.s32 %s23, %s37
      %p43 = scmp.eq.s32.totalorder %s42, 0
      %s45 = sadd.s32 %s44, 1
      %s46 = scalar_select %p43, %s44, %s45
      %p49 = pneg %p43
      %p50 = scmp.eq.s32.totalorder %s15, 1
      %p51 = por %p49, %p50
      %p52 = scmp.ne.s32.totalorder %s44, %s47
      %p53 = scmp.eq.s32.totalorder %s15, 0
      %p54 = por %p52, %p53
      %p55 = scmp.ne.s32.totalorder %s44, %s47
      %p56 = scmp.eq.s32.totalorder %s20, 1
      %p57 = por %p55, %p56
      %p58 = scmp.ne.s32.totalorder %s47, %s48
      %p59 = scmp.eq.s32.totalorder %s20, 0
      %p60 = por %p58, %p59
      %p61 = scmp.ne.s32.totalorder %s47, %s48
      %p62 = scmp.eq.s32.totalorder %s21, 1
      %p63 = por %p61, %p62
      %p65 = scmp.ne.s32.totalorder %s48, %s64
      %p66 = scmp.eq.s32.totalorder %s21, 0
      %p67 = por %p65, %p66
      %s68 = ssub.s32 %s23, %s37
      %p69 = scmp.eq.s32.totalorder %s68, 0
      %s71 = sadd.s32 %s70, 1
      %s72 = scalar_select %p69, %s70, %s71
      %p75 = pneg %p69
      %p76 = scmp.eq.s32.totalorder %s15, 1
      %p77 = por %p75, %p76
      %p78 = scmp.ne.s32.totalorder %s70, %s73
      %p79 = scmp.eq.s32.totalorder %s15, 0
      %p80 = por %p78, %p79
      %p81 = scmp.ne.s32.totalorder %s70, %s73
      %p82 = scmp.eq.s32.totalorder %s20, 1
      %p83 = por %p81, %p82
      %p84 = scmp.ne.s32.totalorder %s73, %s74
      %p85 = scmp.eq.s32.totalorder %s20, 0
      %p86 = por %p84, %p85
      %p87 = scmp.ne.s32.totalorder %s73, %s74
      %p88 = scmp.eq.s32.totalorder %s21, 1
      %p89 = por %p87, %p88
      %p91 = scmp.ne.s32.totalorder %s74, %s90
      %p92 = scmp.eq.s32.totalorder %s21, 0
      %p93 = por %p91, %p92
      %s94 = ssub.s32 %s22, %s41
      %s95 = ssub.s32 %s24, %s33
      %s96 = sor.u32 %s94, %s95
      %p97 = scmp.eq.s32.totalorder %s96, 0
      %s99 = sadd.s32 %s98, 1
      %s100 = scalar_select %p97, %s98, %s99
      %p103 = pneg %p97
      %p104 = scmp.eq.s32.totalorder %s15, 1
      %p105 = por %p103, %p104
      %p106 = scmp.ne.s32.totalorder %s98, %s101
      %p107 = scmp.eq.s32.totalorder %s15, 0
      %p108 = por %p106, %p107
      %p109 = scmp.ne.s32.totalorder %s98, %s101
      %p110 = scmp.eq.s32.totalorder %s20, 1
      %p111 = por %p109, %p110
      %p112 = scmp.ne.s32.totalorder %s101, %s102
      %p113 = scmp.eq.s32.totalorder %s20, 0
      %p114 = por %p112, %p113
      %p115 = scmp.ne.s32.totalorder %s101, %s102
      %p116 = scmp.eq.s32.totalorder %s21, 1
      %p117 = por %p115, %p116
      %p119 = scmp.ne.s32.totalorder %s102, %s118
      %p120 = scmp.eq.s32.totalorder %s21, 0
      %p121 = por %p119, %p120
      %s122 = sadd.s32 %s24, 1
      %s123 = sadd.s32 %s33, 1
      %s124 = ssub.s32 %s22, %s41
      %s125 = ssub.s32 %s122, %s123
      %s126 = sor.u32 %s124, %s125
      %p127 = scmp.eq.s32.totalorder %s126, 0
      %s129 = sadd.s32 %s128, 1
      %s130 = scalar_select %p127, %s128, %s129
      %p133 = pneg %p127
      %p134 = scmp.eq.s32.totalorder %s15, 1
      %p135 = por %p133, %p134
      %p136 = scmp.ne.s32.totalorder %s128, %s131
      %p137 = scmp.eq.s32.totalorder %s15, 0
      %p138 = por %p136, %p137
      %p139 = scmp.ne.s32.totalorder %s128, %s131
      %p140 = scmp.eq.s32.totalorder %s20, 1
      %p141 = por %p139, %p140
      %p142 = scmp.ne.s32.totalorder %s131, %s132
      %p143 = scmp.eq.s32.totalorder %s20, 0
      %p144 = por %p142, %p143
      %p145 = scmp.ne.s32.totalorder %s131, %s132
      %p146 = scmp.eq.s32.totalorder %s21, 1
      %p147 = por %p145, %p146
      %p149 = scmp.ne.s32.totalorder %s132, %s148
      %p150 = scmp.eq.s32.totalorder %s21, 0
      %p151 = por %p149, %p150
      %s152 = ssub.s32 %s22, %s41
      %s153 = ssub.s32 %s23, %s37
      %s154 = sor.u32 %s152, %s153
      %s155 = ssub.s32 %s24, %s33
      %s156 = sor.u32 %s154, %s155
      %p157 = scmp.eq.s32.totalorder %s156, 0
      %s159 = sadd.s32 %s158, 1
      %s160 = scalar_select %p157, %s158, %s159
      %p163 = pneg %p157
      %p164 = scmp.eq.s32.totalorder %s15, 1
      %p165 = por %p163, %p164
      %p166 = scmp.ne.s32.totalorder %s158, %s161
      %p167 = scmp.eq.s32.totalorder %s15, 0
      %p168 = por %p166, %p167
      %p169 = scmp.ne.s32.totalorder %s158, %s161
      %p170 = scmp.eq.s32.totalorder %s20, 1
      %p171 = por %p169, %p170
      %p172 = scmp.ne.s32.totalorder %s161, %s162
      %p173 = scmp.eq.s32.totalorder %s20, 0
      %p174 = por %p172, %p173
      %p175 = scmp.ne.s32.totalorder %s161, %s162
      %p176 = scmp.eq.s32.totalorder %s21, 1
      %p177 = por %p175, %p176
      %p179 = scmp.ne.s32.totalorder %s162, %s178
      %p180 = scmp.eq.s32.totalorder %s21, 0
      %p181 = por %p179, %p180
      %p182 = scmp.le.s32.totalorder 1, %s15
      %p183 = scmp.lt.s32.totalorder %s15, 3
      %p184 = pnand %p182, %p183
      %p185 = pneg %p184
      // Predicated region
      $region9: #{forward.5} parent=5 // pred_check
        _
      $region10: #{forward.5} parent=5 // pred_check_branch
        %187 = sbr.rel (%p184) target = $region12
      $region11: #{forward.5} parent=5 // pred_region
        %s188 = ssub.s32 %s15, 1
        // Predicated region
        $region13: #{forward.5} parent=11 // pred_check
          %p189 = pneg %p60
        $region14: #{forward.5} parent=11 // pred_check_branch
          %191 = sbr.rel (%p189) target = $region16
        $region15: #{forward.5} parent=11 // pred_region
          %s192 = smul.u32 4, %s26
          %s194 = ssub.s32 1024, 1024
          %195 = vsyncadd [#allocation3], %s194
          %s196 = smul.addr %s192, 4
          %s197 = smul.addr %s196, 64
          %s198 = scalar_lea.hbm %s0, %s197
          %s199 = sshll.u32 [#allocation2], 4
          %s200 = int_to_ptr.vmem [resolvable:$true] %s199
          %205 = dma.hbm_to_vmem [thread:$0]  %s198, 1024, %s200, [#allocation3], 256, 256, 16
        $region16: #{forward.5} parent=11 // pred_fallthru
          _
        // Predicated region
        $region17: #{forward.5} parent=11 // pred_check
          %p206 = pneg %p86
        $region18: #{forward.5} parent=11 // pred_check_branch
          %208 = sbr.rel (%p206) target = $region20
        $region19: #{forward.5} parent=11 // pred_region
          %s209 = smul.u32 4, %s26
          %s211 = ssub.s32 512, 512
          %212 = vsyncadd [#allocation6], %s211
          %s213 = smul.addr %s209, 128
          %s214 = scalar_lea.hbm %s1, %s213
          %s215 = sshll.u32 [#allocation5], 4
          %s216 = int_to_ptr.vmem [resolvable:$true] %s215
          %221 = dma.hbm_to_vmem [thread:$0]  %s214, 512, %s216, [#allocation6], 128, 128, 8
        $region20: #{forward.5} parent=11 // pred_fallthru
          _
      $region12: #{forward.5} parent=5 // pred_fallthru
        _
      %p222 = scmp.lt.s32.totalorder %s15, 2
      // Predicated region
      $region21: #{forward.5} parent=5 // pred_check
        %p223 = pneg %p222
      $region22: #{forward.5} parent=5 // pred_check_branch
        %225 = sbr.rel (%p223) target = $region24
      $region23: #{forward.5} parent=5 // pred_region
        // Predicated region
        $region25: #{forward.5} parent=23 // pred_check
          %p226 = pneg %p108
        $region26: #{forward.5} parent=23 // pred_check_branch
          %228 = sbr.rel (%p226) target = $region28
        $region27: #{forward.5} parent=23 // pred_region
          %s229 = sand.u32 %s15, 1
          %s230 = scalar_lea.sflag [#allocation3], %s229
          %s231 = sand.u32 %s98, 1
          %s232 = smul.addr %s231, 72
          %s233 = scalar_lea.vmem [#allocation7], %s232
          %s235 = ssub.s32 1152, 1152
          %236 = vsyncadd %s230, %s235
          %s237 = smul.addr %s22, 36
          %s238 = sadd.s32 %s24, %s237
          %s239 = smul.addr %s238, 64
          %s240 = scalar_lea.hbm %s2, %s239
          %s241 = sshll.u32 %s233, 4
          %s242 = int_to_ptr.vmem [resolvable:$true] %s241
          %247 = dma.hbm_to_vmem [thread:$0]  %s240, 1152, %s242, %s230, 128, 64, 4
        $region28: #{forward.5} parent=23 // pred_fallthru
          _
        // Predicated region
        $region29: #{forward.5} parent=23 // pred_check
          %p248 = pneg %p138
        $region30: #{forward.5} parent=23 // pred_check_branch
          %250 = sbr.rel (%p248) target = $region32
        $region31: #{forward.5} parent=23 // pred_region
          %s251 = sand.u32 %s15, 1
          %s252 = scalar_lea.sflag [#allocation3], %s251
          %s253 = sand.u32 %s128, 1
          %s254 = smul.addr %s253, 72
          %s255 = scalar_lea.vmem [#allocation8], %s254
          %s256 = sadd.s32 %s24, 1
          %s258 = ssub.s32 1152, 1152
          %259 = vsyncadd %s252, %s258
          %s260 = smul.addr %s22, 36
          %s261 = sadd.s32 %s256, %s260
          %s262 = smul.addr %s261, 64
          %s263 = scalar_lea.hbm %s3, %s262
          %s264 = sshll.u32 %s255, 4
          %s265 = int_to_ptr.vmem [resolvable:$true] %s264
          %270 = dma.hbm_to_vmem [thread:$0]  %s263, 1152, %s265, %s252, 128, 64, 4
        $region32: #{forward.5} parent=23 // pred_fallthru
          _
      $region24: #{forward.5} parent=5 // pred_fallthru
        _
      %p271 = scmp.le.s32.totalorder 1, %s15
      %p272 = scmp.lt.s32.totalorder %s15, 3
      %p273 = pnand %p271, %p272
      %p274 = pneg %p273
      // Predicated region
      $region33: #{forward.5} parent=5 // pred_check
        _
      $region34: #{forward.5} parent=5 // pred_check_branch
        %276 = sbr.rel (%p273) target = $region36
      $region35: #{forward.5} parent=5 // pred_region
        %s277 = ssub.s32 %s15, 1
        // Predicated region
        $region37: #{forward.5} parent=35 // pred_check
          %p278 = pneg %p60
        $region38: #{forward.5} parent=35 // pred_check_branch
          %280 = sbr.rel (%p278) target = $region40
        $region39: #{forward.5} parent=35 // pred_region
          %281 = dma.done [#allocation3], 1024
        $region40: #{forward.5} parent=35 // pred_fallthru
          _
        // Predicated region
        $region41: #{forward.5} parent=35 // pred_check
          %p282 = pneg %p86
        $region42: #{forward.5} parent=35 // pred_check_branch
          %284 = sbr.rel (%p282) target = $region44
        $region43: #{forward.5} parent=35 // pred_region
          %285 = dma.done [#allocation6], 512
        $region44: #{forward.5} parent=35 // pred_fallthru
          _
        %s286 = sand.u32 %s20, 1
        %s287 = scalar_lea.sflag [#allocation3], %s286
        %s288 = sand.u32 %s101, 1
        %s289 = smul.addr %s288, 72
        %s290 = scalar_lea.vmem [#allocation7], %s289
        // Predicated region
        $region45: #{forward.5} parent=35 // pred_check
          %p291 = pneg %p114
        $region46: #{forward.5} parent=35 // pred_check_branch
          %293 = sbr.rel (%p291) target = $region48
        $region47: #{forward.5} parent=35 // pred_region
          %294 = dma.done %s287, 1152
        $region48: #{forward.5} parent=35 // pred_fallthru
          _
        %s295 = sand.u32 %s20, 1
        %s296 = scalar_lea.sflag [#allocation3], %s295
        %s297 = sand.u32 %s131, 1
        %s298 = smul.addr %s297, 72
        %s299 = scalar_lea.vmem [#allocation8], %s298
        // Predicated region
        $region49: #{forward.5} parent=35 // pred_check
          %p300 = pneg %p144
        $region50: #{forward.5} parent=35 // pred_check_branch
          %302 = sbr.rel (%p300) target = $region52
        $region51: #{forward.5} parent=35 // pred_region
          %303 = dma.done %s296, 1152
        $region52: #{forward.5} parent=35 // pred_fallthru
          _
        %p304 = pneg %p60
        %p305 = pneg %p57
        %p306 = pneg %p86
        %p307 = pneg %p83
        %s308 = sand.u32 %s20, 1
        %s309 = scalar_lea.sflag [#allocation3], %s308
        %s310 = sand.u32 %s101, 1
        %s311 = smul.addr %s310, 72
        %s312 = scalar_lea.vmem [#allocation7], %s311
        %p313 = pneg %p114
        %p314 = pneg %p111
        %s315 = sand.u32 %s20, 1
        %s316 = scalar_lea.sflag [#allocation3], %s315
        %s317 = sand.u32 %s131, 1
        %s318 = smul.addr %s317, 72
        %s319 = scalar_lea.vmem [#allocation8], %s318
        %p320 = pneg %p144
        %p321 = pneg %p141
        %p322 = pneg %p174
        %p323 = pneg %p171
        %s324 = sand.u32 %s161, 1
        %s325 = scalar_lea.sflag [#allocation4], %s324
        %s326 = sand.u32 %s161, 1
        %s327 = smul.addr %s326, 16
        %s328 = scalar_lea.vmem [#allocation9], %s327
        %s329 = smul.u32 4, %s26
        %s330 = smul.u32 4, %s26
        %s331 = sadd.s32 %s27, 1
        %s332 = smul.u32 4, %s26
        %v334 = vld [vmem:[%s290] sm:$0xf]
        %v335 = vld [vmem:[%s290 + $0x4] sm:$0xf]
        %v336 = vld [vmem:[%s290 + $0x8] sm:$0xf]
        %v337 = vld [vmem:[%s290 + $0xc] sm:$0xf]
        %v338 = vld [vmem:[%s290 + $0x10] sm:$0xf]
        %v339 = vld [vmem:[%s290 + $0x14] sm:$0xf]
        %v340 = vld [vmem:[%s290 + $0x18] sm:$0xf]
        %v341 = vld [vmem:[%s290 + $0x1c] sm:$0xf]
        %v342 = vld [vmem:[%s290 + $0x20] sm:$0xf]
        %v343 = vld [vmem:[%s290 + $0x24] sm:$0xf]
        %v344 = vld [vmem:[%s290 + $0x28] sm:$0xf]
        %v345 = vld [vmem:[%s290 + $0x2c] sm:$0xf]
        %v346 = vld [vmem:[%s290 + $0x30] sm:$0xf]
        %v347 = vld [vmem:[%s290 + $0x34] sm:$0xf]
        %v348 = vld [vmem:[%s290 + $0x38] sm:$0xf]
        %v349 = vld [vmem:[%s290 + $0x3c] sm:$0xf]
        %v350 = vld [vmem:[%s290 + $0x40] sm:$0xf]
        %v351 = vld [vmem:[%s290 + $0x44] sm:$0xf]
        %v352 = vld [vmem:[%s299] sm:$0xf]
        %v353 = vld [vmem:[%s299 + $0x4] sm:$0xf]
        %v354 = vld [vmem:[%s299 + $0x8] sm:$0xf]
        %v355 = vld [vmem:[%s299 + $0xc] sm:$0xf]
        %v356 = vld [vmem:[%s299 + $0x10] sm:$0xf]
        %v357 = vld [vmem:[%s299 + $0x14] sm:$0xf]
        %v358 = vld [vmem:[%s299 + $0x18] sm:$0xf]
        %v359 = vld [vmem:[%s299 + $0x1c] sm:$0xf]
        %v360 = vld [vmem:[%s299 + $0x20] sm:$0xf]
        %v361 = vld [vmem:[%s299 + $0x24] sm:$0xf]
        %v362 = vld [vmem:[%s299 + $0x28] sm:$0xf]
        %v363 = vld [vmem:[%s299 + $0x2c] sm:$0xf]
        %v364 = vld [vmem:[%s299 + $0x30] sm:$0xf]
        %v365 = vld [vmem:[%s299 + $0x34] sm:$0xf]
        %v366 = vld [vmem:[%s299 + $0x38] sm:$0xf]
        %v367 = vld [vmem:[%s299 + $0x3c] sm:$0xf]
        %v368 = vld [vmem:[%s299 + $0x40] sm:$0xf]
        %v369 = vld [vmem:[%s299 + $0x44] sm:$0xf]
        %v388 = vunpack.c.l.b16 %v334
        %v389 = vunpack.c.l.b16 %v335
        %v390 = vunpack.c.l.b16 %v336
        %v391 = vunpack.c.l.b16 %v337
        %v392 = vunpack.c.l.b16 %v338
        %v393 = vunpack.c.l.b16 %v339
        %v394 = vunpack.c.l.b16 %v340
        %v395 = vunpack.c.l.b16 %v341
        %v396 = vunpack.c.l.b16 %v342
        %v397 = vunpack.c.l.b16 %v343
        %v398 = vunpack.c.l.b16 %v344
        %v399 = vunpack.c.l.b16 %v345
        %v400 = vunpack.c.l.b16 %v346
        %v401 = vunpack.c.l.b16 %v347
        %v402 = vunpack.c.l.b16 %v348
        %v403 = vunpack.c.l.b16 %v349
        %v404 = vunpack.c.l.b16 %v350
        %v405 = vunpack.c.l.b16 %v351
        %v406 = vpack.c.b16 %v389, %v388
        %v407 = vpack.c.b16 %v391, %v390
        %v408 = vpack.c.b16 %v393, %v392
        %v409 = vpack.c.b16 %v395, %v394
        %v410 = vpack.c.b16 %v397, %v396
        %v411 = vpack.c.b16 %v399, %v398
        %v412 = vpack.c.b16 %v401, %v400
        %v413 = vpack.c.b16 %v403, %v402
        %v414 = vpack.c.b16 %v405, %v404
        %v442 = vunpack.c.l.b16 %v352
        %v443 = vunpack.c.l.b16 %v353
        %v444 = vunpack.c.l.b16 %v354
        %v445 = vunpack.c.l.b16 %v355
        %v446 = vunpack.c.l.b16 %v356
        %v447 = vunpack.c.l.b16 %v357
        %v448 = vunpack.c.l.b16 %v358
        %v449 = vunpack.c.l.b16 %v359
        %v450 = vunpack.c.l.b16 %v360
        %v451 = vunpack.c.l.b16 %v361
        %v452 = vunpack.c.l.b16 %v362
        %v453 = vunpack.c.l.b16 %v363
        %v454 = vunpack.c.l.b16 %v364
        %v455 = vunpack.c.l.b16 %v365
        %v456 = vunpack.c.l.b16 %v366
        %v457 = vunpack.c.l.b16 %v367
        %v458 = vunpack.c.l.b16 %v368
        %v459 = vunpack.c.l.b16 %v369
        %v460 = vpack.c.b16 %v443, %v442
        %v461 = vpack.c.b16 %v445, %v444
        %v462 = vpack.c.b16 %v447, %v446
        %v463 = vpack.c.b16 %v449, %v448
        %v464 = vpack.c.b16 %v451, %v450
        %v465 = vpack.c.b16 %v453, %v452
        %v466 = vpack.c.b16 %v455, %v454
        %v467 = vpack.c.b16 %v457, %v456
        %v468 = vpack.c.b16 %v459, %v458
        %469 = vrot.lane.b32.xlu0 %v406, 127
        %v470 = vpop.permute.xlu0 %469
        %471 = vrot.lane.b32.xlu0 %v460, 127
        %v472 = vpop.permute.xlu0 %471
        %473 = vrot.lane.b32.xlu0 %v407, 127
        %v474 = vpop.permute.xlu0 %473
        %475 = vrot.lane.b32.xlu0 %v461, 127
        %v476 = vpop.permute.xlu0 %475
        %477 = vrot.lane.b32.xlu0 %v408, 127
        %v478 = vpop.permute.xlu0 %477
        %479 = vrot.lane.b32.xlu0 %v462, 127
        %v480 = vpop.permute.xlu0 %479
        %481 = vrot.lane.b32.xlu0 %v409, 127
        %v482 = vpop.permute.xlu0 %481
        %483 = vrot.lane.b32.xlu0 %v463, 127
        %v484 = vpop.permute.xlu0 %483
        %485 = vrot.lane.b32.xlu0 %v410, 127
        %v486 = vpop.permute.xlu0 %485
        %487 = vrot.lane.b32.xlu0 %v464, 127
        %v488 = vpop.permute.xlu0 %487
        %489 = vrot.lane.b32.xlu0 %v411, 127
        %v490 = vpop.permute.xlu0 %489
        %491 = vrot.lane.b32.xlu0 %v465, 127
        %v492 = vpop.permute.xlu0 %491
        %493 = vrot.lane.b32.xlu0 %v412, 127
        %v494 = vpop.permute.xlu0 %493
        %495 = vrot.lane.b32.xlu0 %v466, 127
        %v496 = vpop.permute.xlu0 %495
        %497 = vrot.lane.b32.xlu0 %v413, 127
        %v498 = vpop.permute.xlu0 %497
        %499 = vrot.lane.b32.xlu0 %v467, 127
        %v500 = vpop.permute.xlu0 %499
        %501 = vrot.lane.b32.xlu0 %v414, 127
        %v502 = vpop.permute.xlu0 %501
        %503 = vrot.lane.b32.xlu0 %v468, 127
        %v504 = vpop.permute.xlu0 %503
        %vm505 = vcmask 1039360
        %v506 = vsel %vm505, %v470, %v472
        %v507 = vsel %vm505, %v474, %v476
        %v508 = vsel %vm505, %v478, %v480
        %v509 = vsel %vm505, %v482, %v484
        %v510 = vsel %vm505, %v486, %v488
        %v511 = vsel %vm505, %v490, %v492
        %v512 = vsel %vm505, %v494, %v496
        %v513 = vsel %vm505, %v498, %v500
        %v514 = vsel %vm505, %v502, %v504
        %524 = vrot.lane.b32.xlu0 %v406, 126
        %v525 = vpop.permute.xlu0 %524
        %526 = vrot.lane.b32.xlu0 %v460, 126
        %v527 = vpop.permute.xlu0 %526
        %528 = vrot.lane.b32.xlu0 %v407, 126
        %v529 = vpop.permute.xlu0 %528
        %530 = vrot.lane.b32.xlu0 %v461, 126
        %v531 = vpop.permute.xlu0 %530
        %532 = vrot.lane.b32.xlu0 %v408, 126
        %v533 = vpop.permute.xlu0 %532
        %534 = vrot.lane.b32.xlu0 %v462, 126
        %v535 = vpop.permute.xlu0 %534
        %536 = vrot.lane.b32.xlu0 %v409, 126
        %v537 = vpop.permute.xlu0 %536
        %538 = vrot.lane.b32.xlu0 %v463, 126
        %v539 = vpop.permute.xlu0 %538
        %540 = vrot.lane.b32.xlu0 %v410, 126
        %v541 = vpop.permute.xlu0 %540
        %542 = vrot.lane.b32.xlu0 %v464, 126
        %v543 = vpop.permute.xlu0 %542
        %544 = vrot.lane.b32.xlu0 %v411, 126
        %v545 = vpop.permute.xlu0 %544
        %546 = vrot.lane.b32.xlu0 %v465, 126
        %v547 = vpop.permute.xlu0 %546
        %548 = vrot.lane.b32.xlu0 %v412, 126
        %v549 = vpop.permute.xlu0 %548
        %550 = vrot.lane.b32.xlu0 %v466, 126
        %v551 = vpop.permute.xlu0 %550
        %552 = vrot.lane.b32.xlu0 %v413, 126
        %v553 = vpop.permute.xlu0 %552
        %554 = vrot.lane.b32.xlu0 %v467, 126
        %v555 = vpop.permute.xlu0 %554
        %556 = vrot.lane.b32.xlu0 %v414, 126
        %v557 = vpop.permute.xlu0 %556
        %558 = vrot.lane.b32.xlu0 %v468, 126
        %v559 = vpop.permute.xlu0 %558
        %vm560 = vcmask 1031168
        %v561 = vsel %vm560, %v525, %v527
        %v562 = vsel %vm560, %v529, %v531
        %v563 = vsel %vm560, %v533, %v535
        %v564 = vsel %vm560, %v537, %v539
        %v565 = vsel %vm560, %v541, %v543
        %v566 = vsel %vm560, %v545, %v547
        %v567 = vsel %vm560, %v549, %v551
        %v568 = vsel %vm560, %v553, %v555
        %v569 = vsel %vm560, %v557, %v559
        %v579 = vld [vmem:[#allocation2] sm:$0xff]
        %v580 = vld [vmem:[#allocation2 + $0x8] sm:$0xff]
        %v581 = vld [vmem:[#allocation2 + $0x10] sm:$0xff]
        %v582 = vld [vmem:[#allocation2 + $0x18] sm:$0xff]
        %v583 = vld [vmem:[#allocation2 + $0x20] sm:$0xff]
        %v584 = vld [vmem:[#allocation2 + $0x28] sm:$0xff]
        %v585 = vld [vmem:[#allocation2 + $0x30] sm:$0xff]
        %v586 = vld [vmem:[#allocation2 + $0x38] sm:$0xff]
        %v587 = vld [vmem:[#allocation5] sm:$0xff]
        %v588 = vld [vmem:[#allocation5 + $0x8] sm:$0xff]
        %v589 = vld [vmem:[#allocation5 + $0x10] sm:$0xff]
        %v590 = vld [vmem:[#allocation5 + $0x18] sm:$0xff]
        %592 = vset.pattern.permute.xlu0 0
        %593 = vperm.xlu0 %592, %v587
        %v594 = vpop.permute.xlu0 %593
        %597 = vset.pattern.permute.xlu0 0
        %598 = vperm.xlu0 %597, %v588
        %v599 = vpop.permute.xlu0 %598
        %602 = vset.pattern.permute.xlu0 0
        %603 = vperm.xlu0 %602, %v589
        %v604 = vpop.permute.xlu0 %603
        %607 = vset.pattern.permute.xlu0 0
        %608 = vperm.xlu0 %607, %v590
        %v609 = vpop.permute.xlu0 %608
        %v619 = vunpack.c.l.b16 %v579
        %v620 = vunpack.c.h.b16 %v579
        %v621 = vunpack.c.l.b16 %v580
        %v622 = vunpack.c.h.b16 %v580
        %v623 = vunpack.c.l.b16 %v581
        %v624 = vunpack.c.h.b16 %v581
        %v625 = vunpack.c.l.b16 %v582
        %v626 = vunpack.c.h.b16 %v582
        %v627 = vunpack.c.l.b16 %v583
        %v628 = vunpack.c.h.b16 %v583
        %v629 = vunpack.c.l.b16 %v584
        %v630 = vunpack.c.h.b16 %v584
        %v631 = vunpack.c.l.b16 %v585
        %v632 = vunpack.c.h.b16 %v585
        %v633 = vunpack.c.l.b16 %v586
        %v634 = vunpack.c.h.b16 %v586
        %v635 = vpack.c.b16 %v623, %v619
        %v636 = vpack.c.b16 %v624, %v620
        %v637 = vpack.c.b16 %v625, %v621
        %v638 = vpack.c.b16 %v626, %v622
        %v639 = vpack.c.b16 %v631, %v627
        %v640 = vpack.c.b16 %v632, %v628
        %v641 = vpack.c.b16 %v633, %v629
        %v642 = vpack.c.b16 %v634, %v630
        %vm649 = vcmask 392192
        %v651 = vsel %vm649, %v638, 0
        %v654 = vsel %vm649, %v642, 0
        %656 = vmatprep.subr.bf16.mxu0 0
        %657 = vmatpush1.bf16.msra.mxu0 %v406
        %658 = vmatprep.subr.bf16.mxu0 0
        %659 = vmatpush1.bf16.msra.mxu0 %v407
        %660 = vmatprep.subr.bf16.mxu0 0
        %661 = vmatpush1.bf16.msra.mxu0 %v408
        %662 = vmatprep.subr.bf16.mxu0 0
        %663 = vmatpush1.bf16.msra.mxu0 %v409
        %664 = vmatprep.subr.bf16.mxu0 0
        %665 = vmatpush1.bf16.msra.mxu0 %v410
        %666 = vmatprep.subr.bf16.mxu0 0
        %667 = vmatpush1.bf16.msra.mxu0 %v411
        %668 = vmatprep.subr.bf16.mxu0 0
        %669 = vmatpush1.bf16.msra.mxu0 %v412
        %670 = vmatprep.subr.bf16.mxu0 0
        %671 = vmatpush1.bf16.msra.mxu0 %v413
        %672 = vmatprep.subr.bf16.mxu0 0
        %673 = vmatpush1.bf16.msra.mxu0 %v414
        %674 = vmatprep.subr.bf16.mxu0 0
        %675 = vmatpush1.bf16.msra.mxu0 %v506
        %676 = vmatprep.subr.bf16.mxu0 0
        %677 = vmatpush1.bf16.msra.mxu0 %v507
        %678 = vmatprep.subr.bf16.mxu0 0
        %679 = vmatpush1.bf16.msra.mxu0 %v508
        %680 = vmatprep.subr.bf16.mxu0 0
        %681 = vmatpush1.bf16.msra.mxu0 %v509
        %682 = vmatprep.subr.bf16.mxu0 0
        %683 = vmatpush1.bf16.msra.mxu0 %v510
        %684 = vmatprep.subr.bf16.mxu0 0
        %685 = vmatpush1.bf16.msra.mxu0 %v511
        %686 = vmatprep.subr.bf16.mxu0 0
        %687 = vmatpush1.bf16.msra.mxu0 %v512
        %688 = vmatprep.mubr.bf16.mxu0 %v636
        %689 = vmatmul.mubr.bf16.gmra.mrb[0].mxu0 %v635
        %v690 = vpop.f32.mrb[0].mxu0
        %v691 = vadd.f32 %v594, %v690
        %v692 = vpop.f32.mrb[0].mxu0
        %v693 = vpop.f32.mrb[0].mxu0
        %v694 = vadd.f32 %v599, %v693
        %v695 = vpop.f32.mrb[0].mxu0
        %696 = vmatprep.mubr.bf16.mxu0 %v640
        %697 = vmatmul.mubr.bf16.gmra.mrb[0].mxu0 %v639
        %v698 = vpop.f32.mrb[0].mxu0
        %v699 = vadd.f32 %v604, %v698
        %v700 = vpop.f32.mrb[0].mxu0
        %v701 = vpop.f32.mrb[0].mxu0
        %v702 = vadd.f32 %v609, %v701
        %v703 = vpop.f32.mrb[0].mxu0
        %704 = vdwg.mxu0
        %705 = vmatprep.subr.bf16.mxu0 0
        %706 = vmatpush1.bf16.msra.mxu0 %v513
        %707 = vmatprep.subr.bf16.mxu0 0
        %708 = vmatpush1.bf16.msra.mxu0 %v514
        %709 = vmatprep.subr.bf16.mxu0 0
        %710 = vmatpush1.bf16.msra.mxu0 %v561
        %711 = vmatprep.subr.bf16.mxu0 0
        %712 = vmatpush1.bf16.msra.mxu0 %v562
        %713 = vmatprep.subr.bf16.mxu0 0
        %714 = vmatpush1.bf16.msra.mxu0 %v563
        %715 = vmatprep.subr.bf16.mxu0 0
        %716 = vmatpush1.bf16.msra.mxu0 %v564
        %717 = vmatprep.subr.bf16.mxu0 0
        %718 = vmatpush1.bf16.msra.mxu0 %v565
        %719 = vmatprep.subr.bf16.mxu0 0
        %720 = vmatpush1.bf16.msra.mxu0 %v566
        %721 = vmatprep.subr.bf16.mxu0 0
        %722 = vmatpush1.bf16.msra.mxu0 %v567
        %723 = vmatprep.subr.bf16.mxu0 0
        %724 = vmatpush1.bf16.msra.mxu0 %v568
        %725 = vmatprep.subr.bf16.mxu0 0
        %726 = vmatpush1.bf16.msra.mxu0 %v569
        %727 = vmatprep.subr.bf16.mxu0 0
        %728 = vmatpush1.bf16.msra.mxu0 0
        %729 = vmatprep.subr.bf16.mxu0 0
        %730 = vmatpush1.bf16.msra.mxu0 0
        %731 = vmatprep.subr.bf16.mxu0 0
        %732 = vmatpush1.bf16.msra.mxu0 0
        %733 = vmatprep.subr.bf16.mxu0 0
        %734 = vmatpush1.bf16.msra.mxu0 0
        %735 = vmatprep.subr.bf16.mxu0 0
        %736 = vmatpush1.bf16.msra.mxu0 0
        %737 = vmatprep.mubr.bf16.mxu0 %v651
        %738 = vmatmul.mubr.bf16.gmra.mrb[0].mxu0 %v637
        %v739 = vpop.f32.mrb[0].mxu0
        %v740 = vadd.f32 %v691, %v739
        %v741 = vpop.f32.mrb[0].mxu0
        %v742 = vpop.f32.mrb[0].mxu0
        %v743 = vadd.f32 %v694, %v742
        %v744 = vpop.f32.mrb[0].mxu0
        %745 = vmatprep.mubr.bf16.mxu0 %v654
        %746 = vmatmul.mubr.bf16.gmra.mrb[0].mxu0 %v641
        %v747 = vpop.f32.mrb[0].mxu0
        %v748 = vadd.f32 %v699, %v747
        %v749 = vpop.f32.mrb[0].mxu0
        %v750 = vpop.f32.mrb[0].mxu0
        %v751 = vadd.f32 %v702, %v750
        %v752 = vpop.f32.mrb[0].mxu0
        %753 = vdwg.mxu0
        %v754 = vmax.f32 %v740, 0.0
        %v755 = vmax.f32 %v743, 0.0
        %v756 = vmax.f32 %v748, 0.0
        %v757 = vmax.f32 %v751, 0.0
        %v758 = vpack.c.bf16 %v755, %v754
        %v759 = vpack.c.bf16 %v757, %v756
        %v762 = vunpack.c.l.b16 %v758
        %v763 = vunpack.c.h.b16 %v758
        %v764 = vunpack.c.l.b16 %v759
        %v765 = vunpack.c.h.b16 %v759
        %v766 = vpack.c.b16 %v762, %v762
        %v767 = vpack.c.b16 %v763, %v763
        %v768 = vpack.c.b16 %v764, %v764
        %v769 = vpack.c.b16 %v765, %v765
        %774 = vst [vmem:[%s328] sm:$0xf] %v766
        %775 = vst [vmem:[%s328 + $0x4] sm:$0xf] %v767
        %776 = vst [vmem:[%s328 + $0x8] sm:$0xf] %v768
        %777 = vst [vmem:[%s328 + $0xc] sm:$0xf] %v769
        %s778 = sand.u32 %s161, 1
        %s779 = scalar_lea.sflag [#allocation4], %s778
        %s780 = sand.u32 %s161, 1
        %s781 = smul.addr %s780, 16
        %s782 = scalar_lea.vmem [#allocation9], %s781
        // Predicated region
        $region53: #{forward.5} parent=35 // pred_check
          %p783 = pneg %p171
        $region54: #{forward.5} parent=35 // pred_check_branch
          %785 = sbr.rel (%p783) target = $region56
        $region55: #{forward.5} parent=35 // pred_region
          %s786 = smul.u32 4, %s26
          %s788 = ssub.s32 256, 256
          %789 = vsyncadd %s779, %s788
          %s790 = sadd.s32 %s27, %s786
          %s791 = smul.addr %s25, 4
          %s792 = sadd.s32 %s790, %s791
          %s793 = smul.addr %s792, 64
          %s794 = scalar_lea.hbm %s4, %s793
          %s795 = sshll.u32 %s782, 4
          %s796 = int_to_ptr.vmem [resolvable:$true] %s795
          %801 = dma.vmem_to_hbm [thread:$0]  %s796, 256, %s794, %s779, 64, 64, 4
        $region56: #{forward.5} parent=35 // pred_fallthru
          _
      $region36: #{forward.5} parent=5 // pred_fallthru
        _
      %p802 = scmp.le.s32.totalorder 2, %s15
      // Predicated region
      $region57: #{forward.5} parent=5 // pred_check
        %p803 = pneg %p802
      $region58: #{forward.5} parent=5 // pred_check_branch
        %805 = sbr.rel (%p803) target = $region60
      $region59: #{forward.5} parent=5 // pred_region
        %s806 = ssub.s32 %s15, 2
        // Predicated region
        $region61: #{forward.5} parent=59 // pred_check
          %p807 = pneg %p177
        $region62: #{forward.5} parent=59 // pred_check_branch
          %809 = sbr.rel (%p807) target = $region64
        $region63: #{forward.5} parent=59 // pred_region
          %s810 = sand.u32 %s162, 1
          %s811 = scalar_lea.sflag [#allocation4], %s810
          %s812 = sand.u32 %s162, 1
          %s813 = smul.addr %s812, 16
          %s814 = scalar_lea.vmem [#allocation9], %s813
          %815 = dma.done %s811, 256
        $region64: #{forward.5} parent=59 // pred_fallthru
          _
      $region60: #{forward.5} parent=5 // pred_fallthru
        _
    $region6: #{forward.5} parent=1 // loop_footer
      %s19 = sadd.s32 1, %s15
    $region7: #{forward.5} parent=1 // loop_footer_branch
      %14 = sbr.rel target = $region3
    $region8: #{forward.5} parent=1 // loop_exit
      _
    %816 = vsyncpa [#allocation3], 1
    %s817 = scalar_lea.sflag [#allocation3], 1
    %818 = vsyncpa %s817, 1
    %819 = vsyncpa [#allocation6], 1
    %820 = vsyncpa [#allocation4], 1
    %s821 = scalar_lea.sflag [#allocation4], 1
    %822 = vsyncpa %s821, 1

</llo_original>
